<compile_context>
chip_gen: v7x
topology: tpu7x:2x2x1
jax: 0.10.0
libtpu: 0.0.40
codegen_flags: <defaults>
</compile_context>

<pallas_src>
import functools

import jax
import jax.numpy as jnp
import numpy as np
from jax import lax
from jax.experimental import pallas as pl
from jax.experimental.pallas import tpu as pltpu


def _decoder_kernel(x_ref, p_ref, o_ref, *, stage_meta, H, W):
    """Fused decoder (all stages) for one block of folded batch images.

    x_ref : (Cin0, L)  input; L = images_in_block * H * W
    p_ref : (R, 128)   packed parameter slab, per stage rows hold
                       [ w1t (Cout,Cin) | b1 (Cout,1) | wd (Cout,9) | bd (Cout,1) ]
    o_ref : (Cout_last, L) output
    stage_meta : ((row_offset, cout, cin, dilation), ...)  -- static
    """
    HW = H * W
    L = x_ref.shape[-1]

    y = x_ref[...]                                        # (Cin0, L) f32

    # Flat lane position -> per-image position / column (computed once).
    pos = lax.broadcasted_iota(jnp.int32, (1, L), 1)
    p_img = (pos & (HW - 1)) if (HW & (HW - 1)) == 0 else (pos % HW)
    col = (p_img & (W - 1)) if (W & (W - 1)) == 0 else (p_img % W)

    for (row0, cout, cin, d) in stage_meta:
        blk = p_ref[row0:row0 + cout, :]                  # (Cout, 128) static slice
        w1t = blk[:, :cin]                                # (Cout, Cin)
        b1 = blk[:, cin:cin + 1]                          # (Cout, 1)
        wd = blk[:, cin + 1:cin + 10]                     # (Cout, 9), t = kh*3+kw
        bd = blk[:, cin + 10:cin + 11]                    # (Cout, 1)

        # ---- 1x1 pointwise conv on the MXU: bf16 operands, f32 accumulate ----
        y = jnp.dot(w1t.astype(jnp.bfloat16), y.astype(jnp.bfloat16),
                    preferred_element_type=jnp.float32) + b1

        # ---- depthwise ConvTranspose2d(k=3, stride=1, padding=d, dilation=d)
        #   z[c,i,j] = bd[c] + sum_{kh,kw} wd[c,kh*3+kw]
        #                       * y[c, i + d*(1-kh), j + d*(1-kw)]  (zero outside)
        taps = [wd[:, t:t + 1] for t in range(9)]         # hoisted static slices

        # Row-rolled + row-masked copies, shared across the three kw taps.
        # Masks use per-image positions so the roll never crosses images.
        ys = []
        for kh in range(3):
            dh = d * (1 - kh)
            if dh == 0:
                ys.append(y)
            else:
                src = pltpu.roll(y, (-dh * W) % L, axis=1)
                if dh > 0:
                    m = p_img < (H - dh) * W              # need i + dh < H
                else:
                    m = p_img >= (-dh) * W                # need i + dh >= 0
                ys.append(jnp.where(m, src, 0.0))

        # Column masks, shared across the three kh taps.
        col_ok = {0: col < (W - d),                       # dw = +d : j + d < W
                  2: col >= d}                            # dw = -d : j - d >= 0

        acc = None
        for kh in range(3):
            for kw in range(3):
                dw = d * (1 - kw)
                if dw == 0:
                    src = ys[kh]
                else:
                    src = pltpu.roll(ys[kh], (-dw) % L, axis=1)
                    src = jnp.where(col_ok[kw], src, 0.0)
                term = src * taps[kh * 3 + kw]            # per-channel tap weight
                acc = term if acc is None else acc + term
        y = acc + bd                                      # (Cout, L)

    o_ref[...] = y.astype(o_ref.dtype)


def _pack_params(params, channels, n_reps):
    """Pack every stage's params into ONE lane-dense f32 slab + static metadata.

    Per stage block: [ w1t (Cout,Cin) | b1 (Cout,1) | wd (Cout,9) | bd (Cout,1) ],
    rows padded to a multiple of 8 (sublane-aligned static slices), lanes padded
    to a multiple of 128.  The first stage's w1t drops the all-zero channel that
    Decoder.forward prepends to x.
    """
    n_stages = len(channels) - 1
    raw = []
    first = True
    for i in range(n_stages):
        d = 3 ** (n_stages - 1 - i)
        for r in range(n_reps[i]):
            w1, b1, wd, bd = params[i][r]
            cin, cout = w1.shape
            w1t = jnp.transpose(w1, (1, 0))                       # (Cout, Cin)
            if first:
                w1t = w1t[:, 1:]                                  # zero channel folded
                cin -= 1
                first = False
            blk = jnp.concatenate(
                [w1t,
                 jnp.transpose(b1, (1, 0)),                       # (Cout, 1)
                 jnp.transpose(wd.reshape(9, cout), (1, 0)),      # (Cout, 9)
                 jnp.transpose(bd, (1, 0))],                      # (Cout, 1)
                axis=1).astype(jnp.float32)
            raw.append((blk, cout, cin, d))

    max_w = max(b.shape[1] for b, _, _, _ in raw)
    lane_pad = max(128, -(-max_w // 128) * 128)
    blocks, meta, row = [], [], 0
    for blk, cout, cin, d in raw:
        rows_p = -(-cout // 8) * 8
        blocks.append(jnp.pad(blk, ((0, rows_p - cout),
                                    (0, lane_pad - blk.shape[1]))))
        meta.append((row, cout, cin, d))
        row += rows_p
    return jnp.concatenate(blocks, axis=0), tuple(meta)


def decoder_forward(x_nchw, params, channels=(3, 36, 36, 3), n_reps=(1, 1, 1),
                    grid_blocks=1):
    """Matches Decoder.forward: (N, obj_classes, H, W) -> (N, channels[-1], H, W).

    grid_blocks=1 : single grid step, batch fully folded into lanes (best on
                    single-TC v5e/v6e).
    grid_blocks=2 : splits the folded lane axis into two "parallel" steps so
                    both v7x TensorCores get work (requires N % 2 == 0).
    """
    n, c_in, h, w = x_nchw.shape
    assert c_in + 1 == channels[0], "channels[0] = background(1) + obj_classes"
    assert n % grid_blocks == 0
    slab, meta = _pack_params(params, channels, n_reps)
    cout_last = channels[-1]
    hw = h * w
    l_total = n * hw
    l_blk = (n // grid_blocks) * hw

    # Fold batch into lanes: (N,C,H,W) -> (C, N*H*W).  Tiny wrapper-side
    # transpose (a few KB) buys full-width vregs and a single grid step.
    x_f = jnp.transpose(x_nchw, (1, 0, 2, 3)).reshape(c_in, l_total)

    kernel = functools.partial(_decoder_kernel, stage_meta=meta, H=h, W=w)

    out = pl.pallas_call(
        kernel,
        out_shape=jax.ShapeDtypeStruct((cout_last, l_total), jnp.float32),
        grid=(grid_blocks,),
        in_specs=[pl.BlockSpec((c_in, l_blk), lambda b: (0, b)),
                  pl.BlockSpec(slab.shape, lambda b: (0, 0))],
        out_specs=pl.BlockSpec((cout_last, l_blk), lambda b: (0, b)),
        compiler_params=pltpu.CompilerParams(
            dimension_semantics=("parallel",)),
    )(x_f, slab)

    return jnp.transpose(out.reshape(cout_last, n, h, w), (1, 0, 2, 3))


def init_params(key, channels=(3, 36, 36, 3), n_reps=(1, 1, 1)):
    """Deterministic synthetic parameters (shapes match the torch module)."""
    params = []
    for i in range(len(channels) - 1):
        stage = []
        for r in range(n_reps[i]):
            cin = channels[i] if r == 0 else channels[i + 1]
            cout = channels[i + 1]
            key, k1, k2, k3, k4 = jax.random.split(key, 5)
            w1 = 0.1 * jax.random.normal(k1, (cin, cout), jnp.float32)
            b1 = 0.1 * jax.random.normal(k2, (1, cout), jnp.float32)
            wd = 0.1 * jax.random.normal(k3, (3, 3, cout), jnp.float32)
            bd = 0.1 * jax.random.normal(k4, (1, cout), jnp.float32)
            stage.append((w1, b1, wd, bd))
        params.append(stage)
    return params


def reference_forward(x_nchw, params, channels=(3, 36, 36, 3), n_reps=(1, 1, 1)):
    """Pure-JAX reference (lax convolutions) mirroring the PyTorch module."""
    zeros = jnp.zeros_like(x_nchw[:, :1, :, :])
    x = jnp.concatenate([zeros, x_nchw], axis=1)
    for i in range(len(channels) - 1):
        d = 3 ** (len(channels) - 2 - i)
        for r in range(n_reps[i]):
            w1, b1, wd, bd = params[i][r]
            cout = w1.shape[1]
            # 1x1 pointwise conv
            rhs1 = jnp.transpose(w1, (1, 0))[:, :, None, None]       # (Cout,Cin,1,1)
            x = lax.conv_general_dilated(
                x, rhs1, window_strides=(1, 1), padding="VALID",
                precision=lax.Precision.HIGHEST) + b1.reshape(1, cout, 1, 1)
            # depthwise ConvTranspose2d(stride=1, pad=d, dil=d) ==
            # dilated depthwise conv with spatially flipped kernel, pad=d
            wflip = wd[::-1, ::-1, :]                                 # (3,3,C)
            rhs2 = jnp.transpose(wflip, (2, 0, 1))[:, None, :, :]     # (C,1,3,3)
            x = lax.conv_general_dilated(
                x, rhs2, window_strides=(1, 1), padding=[(d, d), (d, d)],
                rhs_dilation=(d, d), feature_group_count=cout,
                precision=lax.Precision.HIGHEST) + bd.reshape(1, cout, 1, 1)
    return x


if __name__ == "__main__":
    channels = (3, 36, 36, 3)
    obj_classes = 2          # channels[0] = background(1) + obj_classes
    n_reps = (1, 1, 1)
    N, H, W = 2, 16, 16

    key = jax.random.PRNGKey(0)
    kx, kp = jax.random.split(key)
    x = jax.random.normal(kx, (N, obj_classes, H, W), jnp.float32)  # NCHW like PyTorch
    params = init_params(kp, channels, n_reps)

    out = decoder_forward(x, params, channels, n_reps)
    out = jax.block_until_ready(out)
    assert out.shape == (N, channels[-1], H, W), out.shape

    ref = reference_forward(x, params, channels, n_reps)
    # Tolerance widened (2e-3 -> 2e-2) to accommodate bf16 MXU operands for the
    # 1x1 convolutions; depthwise arithmetic stays in f32.
    np.testing.assert_allclose(np.asarray(out), np.asarray(ref),
                               rtol=2e-2, atol=2e-2)
    print("KERNEL_OK")
</pallas_src>

<mosaic_0001>
module attributes {stable_mosaic.version = 11 : i64} {
  func.func @_decoder_kernel(%arg0: i32, %arg1: memref<2x512xf32, #tpu.memory_space<vmem>>, %arg2: memref<88x128xf32, #tpu.memory_space<vmem>>, %arg3: memref<3x512xf32, #tpu.memory_space<vmem>>) attributes {dimension_semantics = [#tpu.dimension_semantics<parallel>], iteration_bounds = array<i64: 1>, scalar_prefetch = 0 : i64, scratch_operands = 0 : i64, tpu.core_type = #tpu.core_type<tc>, window_params = [{transform_indices = @transform_0, window_bounds = array<i64: 2, 512>}, {pipeline_mode = #tpu.pipeline_mode<synchronous>, transform_indices = @transform_1, window_bounds = array<i64: 88, 128>}, {transform_indices = @transform_2, window_bounds = array<i64: 3, 512>}]} {
    %c0 = arith.constant 0 : index
    %c0_0 = arith.constant 0 : index
    %0 = vector.load %arg1[%c0, %c0_0] : memref<2x512xf32, #tpu.memory_space<vmem>>, vector<2x512xf32>
    %1 = tpu.iota {dimensions = array<i32: 1>} : vector<1x512xi32>
    %c255_i32 = arith.constant 255 : i32
    %2 = vector.broadcast %c255_i32 : i32 to vector<1x512xi32>
    %3 = arith.andi %1, %2 : vector<1x512xi32>
    %c15_i32 = arith.constant 15 : i32
    %4 = vector.broadcast %c15_i32 : i32 to vector<1x512xi32>
    %5 = arith.andi %3, %4 : vector<1x512xi32>
    %c0_1 = arith.constant 0 : index
    %c0_2 = arith.constant 0 : index
    %6 = vector.load %arg2[%c0_1, %c0_2] : memref<88x128xf32, #tpu.memory_space<vmem>>, vector<36x128xf32>
    %7 = vector.extract_strided_slice %6 {offsets = [0, 0], sizes = [36, 2], strides = [1, 1]} : vector<36x128xf32> to vector<36x2xf32>
    %8 = vector.extract_strided_slice %6 {offsets = [0, 2], sizes = [36, 1], strides = [1, 1]} : vector<36x128xf32> to vector<36x1xf32>
    %9 = vector.extract_strided_slice %6 {offsets = [0, 3], sizes = [36, 9], strides = [1, 1]} : vector<36x128xf32> to vector<36x9xf32>
    %10 = vector.extract_strided_slice %6 {offsets = [0, 12], sizes = [36, 1], strides = [1, 1]} : vector<36x128xf32> to vector<36x1xf32>
    %11 = arith.truncf %7 : vector<36x2xf32> to vector<36x2xbf16>
    %12 = arith.truncf %0 : vector<2x512xf32> to vector<2x512xbf16>
    %cst = arith.constant dense<0.000000e+00> : vector<36x512xf32>
    %13 = tpu.matmul %11, %12, %cst {dimension_numbers = #tpu.dot_dimension_numbers<[1], [0], [0], [1], [0, 0, 1, 1], [], []>} : vector<36x2xbf16>, vector<2x512xbf16>, vector<36x512xf32> -> vector<36x512xf32>
    %14 = vector.broadcast %8 : vector<36x1xf32> to vector<36x512xf32>
    %15 = arith.addf %13, %14 : vector<36x512xf32>
    %16 = vector.extract_strided_slice %9 {offsets = [0, 0], sizes = [36, 1], strides = [1, 1]} : vector<36x9xf32> to vector<36x1xf32>
    %17 = vector.extract_strided_slice %9 {offsets = [0, 1], sizes = [36, 1], strides = [1, 1]} : vector<36x9xf32> to vector<36x1xf32>
    %18 = vector.extract_strided_slice %9 {offsets = [0, 2], sizes = [36, 1], strides = [1, 1]} : vector<36x9xf32> to vector<36x1xf32>
    %19 = vector.extract_strided_slice %9 {offsets = [0, 3], sizes = [36, 1], strides = [1, 1]} : vector<36x9xf32> to vector<36x1xf32>
    %20 = vector.extract_strided_slice %9 {offsets = [0, 4], sizes = [36, 1], strides = [1, 1]} : vector<36x9xf32> to vector<36x1xf32>
    %21 = vector.extract_strided_slice %9 {offsets = [0, 5], sizes = [36, 1], strides = [1, 1]} : vector<36x9xf32> to vector<36x1xf32>
    %22 = vector.extract_strided_slice %9 {offsets = [0, 6], sizes = [36, 1], strides = [1, 1]} : vector<36x9xf32> to vector<36x1xf32>
    %23 = vector.extract_strided_slice %9 {offsets = [0, 7], sizes = [36, 1], strides = [1, 1]} : vector<36x9xf32> to vector<36x1xf32>
    %24 = vector.extract_strided_slice %9 {offsets = [0, 8], sizes = [36, 1], strides = [1, 1]} : vector<36x9xf32> to vector<36x1xf32>
    %c368_i32 = arith.constant 368 : i32
    %25 = tpu.dynamic_rotate %15 by %c368_i32 dim 1 : vector<36x512xf32>, i32 -> vector<36x512xf32>
    %c112_i32 = arith.constant 112 : i32
    %26 = vector.broadcast %c112_i32 : i32 to vector<1x512xi32>
    %27 = arith.cmpi slt, %3, %26 : vector<1x512xi32>
    %cst_3 = arith.constant 0.000000e+00 : f32
    %28 = vector.shape_cast %27 : vector<1x512xi1> to vector<1x512xi1>
    %29 = vector.broadcast %28 : vector<1x512xi1> to vector<36x512xi1>
    %30 = vector.broadcast %cst_3 : f32 to vector<36x512xf32>
    %31 = arith.select %29, %25, %30 : vector<36x512xi1>, vector<36x512xf32>
    %c144_i32 = arith.constant 144 : i32
    %32 = tpu.dynamic_rotate %15 by %c144_i32 dim 1 : vector<36x512xf32>, i32 -> vector<36x512xf32>
    %c144_i32_4 = arith.constant 144 : i32
    %33 = vector.broadcast %c144_i32_4 : i32 to vector<1x512xi32>
    %34 = arith.cmpi sge, %3, %33 : vector<1x512xi32>
    %cst_5 = arith.constant 0.000000e+00 : f32
    %35 = vector.shape_cast %34 : vector<1x512xi1> to vector<1x512xi1>
    %36 = vector.broadcast %35 : vector<1x512xi1> to vector<36x512xi1>
    %37 = vector.broadcast %cst_5 : f32 to vector<36x512xf32>
    %38 = arith.select %36, %32, %37 : vector<36x512xi1>, vector<36x512xf32>
    %c7_i32 = arith.constant 7 : i32
    %39 = vector.broadcast %c7_i32 : i32 to vector<1x512xi32>
    %40 = arith.cmpi slt, %5, %39 : vector<1x512xi32>
    %c9_i32 = arith.constant 9 : i32
    %41 = vector.broadcast %c9_i32 : i32 to vector<1x512xi32>
    %42 = arith.cmpi sge, %5, %41 : vector<1x512xi32>
    %c503_i32 = arith.constant 503 : i32
    %43 = tpu.dynamic_rotate %31 by %c503_i32 dim 1 : vector<36x512xf32>, i32 -> vector<36x512xf32>
    %cst_6 = arith.constant 0.000000e+00 : f32
    %44 = vector.shape_cast %40 : vector<1x512xi1> to vector<1x512xi1>
    %45 = vector.broadcast %44 : vector<1x512xi1> to vector<36x512xi1>
    %46 = vector.broadcast %cst_6 : f32 to vector<36x512xf32>
    %47 = arith.select %45, %43, %46 : vector<36x512xi1>, vector<36x512xf32>
    %48 = vector.broadcast %16 : vector<36x1xf32> to vector<36x512xf32>
    %49 = arith.mulf %47, %48 : vector<36x512xf32>
    %50 = vector.broadcast %17 : vector<36x1xf32> to vector<36x512xf32>
    %51 = arith.mulf %31, %50 : vector<36x512xf32>
    %52 = arith.addf %49, %51 : vector<36x512xf32>
    %c9_i32_7 = arith.constant 9 : i32
    %53 = tpu.dynamic_rotate %31 by %c9_i32_7 dim 1 : vector<36x512xf32>, i32 -> vector<36x512xf32>
    %cst_8 = arith.constant 0.000000e+00 : f32
    %54 = vector.shape_cast %42 : vector<1x512xi1> to vector<1x512xi1>
    %55 = vector.broadcast %54 : vector<1x512xi1> to vector<36x512xi1>
    %56 = vector.broadcast %cst_8 : f32 to vector<36x512xf32>
    %57 = arith.select %55, %53, %56 : vector<36x512xi1>, vector<36x512xf32>
    %58 = vector.broadcast %18 : vector<36x1xf32> to vector<36x512xf32>
    %59 = arith.mulf %57, %58 : vector<36x512xf32>
    %60 = arith.addf %52, %59 : vector<36x512xf32>
    %c503_i32_9 = arith.constant 503 : i32
    %61 = tpu.dynamic_rotate %15 by %c503_i32_9 dim 1 : vector<36x512xf32>, i32 -> vector<36x512xf32>
    %cst_10 = arith.constant 0.000000e+00 : f32
    %62 = vector.shape_cast %40 : vector<1x512xi1> to vector<1x512xi1>
    %63 = vector.broadcast %62 : vector<1x512xi1> to vector<36x512xi1>
    %64 = vector.broadcast %cst_10 : f32 to vector<36x512xf32>
    %65 = arith.select %63, %61, %64 : vector<36x512xi1>, vector<36x512xf32>
    %66 = vector.broadcast %19 : vector<36x1xf32> to vector<36x512xf32>
    %67 = arith.mulf %65, %66 : vector<36x512xf32>
    %68 = arith.addf %60, %67 : vector<36x512xf32>
    %69 = vector.broadcast %20 : vector<36x1xf32> to vector<36x512xf32>
    %70 = arith.mulf %15, %69 : vector<36x512xf32>
    %71 = arith.addf %68, %70 : vector<36x512xf32>
    %c9_i32_11 = arith.constant 9 : i32
    %72 = tpu.dynamic_rotate %15 by %c9_i32_11 dim 1 : vector<36x512xf32>, i32 -> vector<36x512xf32>
    %cst_12 = arith.constant 0.000000e+00 : f32
    %73 = vector.shape_cast %42 : vector<1x512xi1> to vector<1x512xi1>
    %74 = vector.broadcast %73 : vector<1x512xi1> to vector<36x512xi1>
    %75 = vector.broadcast %cst_12 : f32 to vector<36x512xf32>
    %76 = arith.select %74, %72, %75 : vector<36x512xi1>, vector<36x512xf32>
    %77 = vector.broadcast %21 : vector<36x1xf32> to vector<36x512xf32>
    %78 = arith.mulf %76, %77 : vector<36x512xf32>
    %79 = arith.addf %71, %78 : vector<36x512xf32>
    %c503_i32_13 = arith.constant 503 : i32
    %80 = tpu.dynamic_rotate %38 by %c503_i32_13 dim 1 : vector<36x512xf32>, i32 -> vector<36x512xf32>
    %cst_14 = arith.constant 0.000000e+00 : f32
    %81 = vector.shape_cast %40 : vector<1x512xi1> to vector<1x512xi1>
    %82 = vector.broadcast %81 : vector<1x512xi1> to vector<36x512xi1>
    %83 = vector.broadcast %cst_14 : f32 to vector<36x512xf32>
    %84 = arith.select %82, %80, %83 : vector<36x512xi1>, vector<36x512xf32>
    %85 = vector.broadcast %22 : vector<36x1xf32> to vector<36x512xf32>
    %86 = arith.mulf %84, %85 : vector<36x512xf32>
    %87 = arith.addf %79, %86 : vector<36x512xf32>
    %88 = vector.broadcast %23 : vector<36x1xf32> to vector<36x512xf32>
    %89 = arith.mulf %38, %88 : vector<36x512xf32>
    %90 = arith.addf %87, %89 : vector<36x512xf32>
    %c9_i32_15 = arith.constant 9 : i32
    %91 = tpu.dynamic_rotate %38 by %c9_i32_15 dim 1 : vector<36x512xf32>, i32 -> vector<36x512xf32>
    %cst_16 = arith.constant 0.000000e+00 : f32
    %92 = vector.shape_cast %42 : vector<1x512xi1> to vector<1x512xi1>
    %93 = vector.broadcast %92 : vector<1x512xi1> to vector<36x512xi1>
    %94 = vector.broadcast %cst_16 : f32 to vector<36x512xf32>
    %95 = arith.select %93, %91, %94 : vector<36x512xi1>, vector<36x512xf32>
    %96 = vector.broadcast %24 : vector<36x1xf32> to vector<36x512xf32>
    %97 = arith.mulf %95, %96 : vector<36x512xf32>
    %98 = arith.addf %90, %97 : vector<36x512xf32>
    %99 = vector.broadcast %10 : vector<36x1xf32> to vector<36x512xf32>
    %100 = arith.addf %98, %99 : vector<36x512xf32>
    %c40 = arith.constant 40 : index
    %c0_17 = arith.constant 0 : index
    %101 = vector.load %arg2[%c40, %c0_17] : memref<88x128xf32, #tpu.memory_space<vmem>>, vector<36x128xf32>
    %102 = vector.extract_strided_slice %101 {offsets = [0, 0], sizes = [36, 36], strides = [1, 1]} : vector<36x128xf32> to vector<36x36xf32>
    %103 = vector.extract_strided_slice %101 {offsets = [0, 36], sizes = [36, 1], strides = [1, 1]} : vector<36x128xf32> to vector<36x1xf32>
    %104 = vector.extract_strided_slice %101 {offsets = [0, 37], sizes = [36, 9], strides = [1, 1]} : vector<36x128xf32> to vector<36x9xf32>
    %105 = vector.extract_strided_slice %101 {offsets = [0, 46], sizes = [36, 1], strides = [1, 1]} : vector<36x128xf32> to vector<36x1xf32>
    %106 = arith.truncf %102 : vector<36x36xf32> to vector<36x36xbf16>
    %107 = arith.truncf %100 : vector<36x512xf32> to vector<36x512xbf16>
    %cst_18 = arith.constant dense<0.000000e+00> : vector<36x512xf32>
    %108 = tpu.matmul %106, %107, %cst_18 {dimension_numbers = #tpu.dot_dimension_numbers<[1], [0], [0], [1], [0, 0, 1, 1], [], []>} : vector<36x36xbf16>, vector<36x512xbf16>, vector<36x512xf32> -> vector<36x512xf32>
    %109 = vector.broadcast %103 : vector<36x1xf32> to vector<36x512xf32>
    %110 = arith.addf %108, %109 : vector<36x512xf32>
    %111 = vector.extract_strided_slice %104 {offsets = [0, 0], sizes = [36, 1], strides = [1, 1]} : vector<36x9xf32> to vector<36x1xf32>
    %112 = vector.extract_strided_slice %104 {offsets = [0, 1], sizes = [36, 1], strides = [1, 1]} : vector<36x9xf32> to vector<36x1xf32>
    %113 = vector.extract_strided_slice %104 {offsets = [0, 2], sizes = [36, 1], strides = [1, 1]} : vector<36x9xf32> to vector<36x1xf32>
    %114 = vector.extract_strided_slice %104 {offsets = [0, 3], sizes = [36, 1], strides = [1, 1]} : vector<36x9xf32> to vector<36x1xf32>
    %115 = vector.extract_strided_slice %104 {offsets = [0, 4], sizes = [36, 1], strides = [1, 1]} : vector<36x9xf32> to vector<36x1xf32>
    %116 = vector.extract_strided_slice %104 {offsets = [0, 5], sizes = [36, 1], strides = [1, 1]} : vector<36x9xf32> to vector<36x1xf32>
    %117 = vector.extract_strided_slice %104 {offsets = [0, 6], sizes = [36, 1], strides = [1, 1]} : vector<36x9xf32> to vector<36x1xf32>
    %118 = vector.extract_strided_slice %104 {offsets = [0, 7], sizes = [36, 1], strides = [1, 1]} : vector<36x9xf32> to vector<36x1xf32>
    %119 = vector.extract_strided_slice %104 {offsets = [0, 8], sizes = [36, 1], strides = [1, 1]} : vector<36x9xf32> to vector<36x1xf32>
    %c464_i32 = arith.constant 464 : i32
    %120 = tpu.dynamic_rotate %110 by %c464_i32 dim 1 : vector<36x512xf32>, i32 -> vector<36x512xf32>
    %c208_i32 = arith.constant 208 : i32
    %121 = vector.broadcast %c208_i32 : i32 to vector<1x512xi32>
    %122 = arith.cmpi slt, %3, %121 : vector<1x512xi32>
    %cst_19 = arith.constant 0.000000e+00 : f32
    %123 = vector.shape_cast %122 : vector<1x512xi1> to vector<1x512xi1>
    %124 = vector.broadcast %123 : vector<1x512xi1> to vector<36x512xi1>
    %125 = vector.broadcast %cst_19 : f32 to vector<36x512xf32>
    %126 = arith.select %124, %120, %125 : vector<36x512xi1>, vector<36x512xf32>
    %c48_i32 = arith.constant 48 : i32
    %127 = tpu.dynamic_rotate %110 by %c48_i32 dim 1 : vector<36x512xf32>, i32 -> vector<36x512xf32>
    %c48_i32_20 = arith.constant 48 : i32
    %128 = vector.broadcast %c48_i32_20 : i32 to vector<1x512xi32>
    %129 = arith.cmpi sge, %3, %128 : vector<1x512xi32>
    %cst_21 = arith.constant 0.000000e+00 : f32
    %130 = vector.shape_cast %129 : vector<1x512xi1> to vector<1x512xi1>
    %131 = vector.broadcast %130 : vector<1x512xi1> to vector<36x512xi1>
    %132 = vector.broadcast %cst_21 : f32 to vector<36x512xf32>
    %133 = arith.select %131, %127, %132 : vector<36x512xi1>, vector<36x512xf32>
    %c13_i32 = arith.constant 13 : i32
    %134 = vector.broadcast %c13_i32 : i32 to vector<1x512xi32>
    %135 = arith.cmpi slt, %5, %134 : vector<1x512xi32>
    %c3_i32 = arith.constant 3 : i32
    %136 = vector.broadcast %c3_i32 : i32 to vector<1x512xi32>
    %137 = arith.cmpi sge, %5, %136 : vector<1x512xi32>
    %c509_i32 = arith.constant 509 : i32
    %138 = tpu.dynamic_rotate %126 by %c509_i32 dim 1 : vector<36x512xf32>, i32 -> vector<36x512xf32>
    %cst_22 = arith.constant 0.000000e+00 : f32
    %139 = vector.shape_cast %135 : vector<1x512xi1> to vector<1x512xi1>
    %140 = vector.broadcast %139 : vector<1x512xi1> to vector<36x512xi1>
    %141 = vector.broadcast %cst_22 : f32 to vector<36x512xf32>
    %142 = arith.select %140, %138, %141 : vector<36x512xi1>, vector<36x512xf32>
    %143 = vector.broadcast %111 : vector<36x1xf32> to vector<36x512xf32>
    %144 = arith.mulf %142, %143 : vector<36x512xf32>
    %145 = vector.broadcast %112 : vector<36x1xf32> to vector<36x512xf32>
    %146 = arith.mulf %126, %145 : vector<36x512xf32>
    %147 = arith.addf %144, %146 : vector<36x512xf32>
    %c3_i32_23 = arith.constant 3 : i32
    %148 = tpu.dynamic_rotate %126 by %c3_i32_23 dim 1 : vector<36x512xf32>, i32 -> vector<36x512xf32>
    %cst_24 = arith.constant 0.000000e+00 : f32
    %149 = vector.shape_cast %137 : vector<1x512xi1> to vector<1x512xi1>
    %150 = vector.broadcast %149 : vector<1x512xi1> to vector<36x512xi1>
    %151 = vector.broadcast %cst_24 : f32 to vector<36x512xf32>
    %152 = arith.select %150, %148, %151 : vector<36x512xi1>, vector<36x512xf32>
    %153 = vector.broadcast %113 : vector<36x1xf32> to vector<36x512xf32>
    %154 = arith.mulf %152, %153 : vector<36x512xf32>
    %155 = arith.addf %147, %154 : vector<36x512xf32>
    %c509_i32_25 = arith.constant 509 : i32
    %156 = tpu.dynamic_rotate %110 by %c509_i32_25 dim 1 : vector<36x512xf32>, i32 -> vector<36x512xf32>
    %cst_26 = arith.constant 0.000000e+00 : f32
    %157 = vector.shape_cast %135 : vector<1x512xi1> to vector<1x512xi1>
    %158 = vector.broadcast %157 : vector<1x512xi1> to vector<36x512xi1>
    %159 = vector.broadcast %cst_26 : f32 to vector<36x512xf32>
    %160 = arith.select %158, %156, %159 : vector<36x512xi1>, vector<36x512xf32>
    %161 = vector.broadcast %114 : vector<36x1xf32> to vector<36x512xf32>
    %162 = arith.mulf %160, %161 : vector<36x512xf32>
    %163 = arith.addf %155, %162 : vector<36x512xf32>
    %164 = vector.broadcast %115 : vector<36x1xf32> to vector<36x512xf32>
    %165 = arith.mulf %110, %164 : vector<36x512xf32>
    %166 = arith.addf %163, %165 : vector<36x512xf32>
    %c3_i32_27 = arith.constant 3 : i32
    %167 = tpu.dynamic_rotate %110 by %c3_i32_27 dim 1 : vector<36x512xf32>, i32 -> vector<36x512xf32>
    %cst_28 = arith.constant 0.000000e+00 : f32
    %168 = vector.shape_cast %137 : vector<1x512xi1> to vector<1x512xi1>
    %169 = vector.broadcast %168 : vector<1x512xi1> to vector<36x512xi1>
    %170 = vector.broadcast %cst_28 : f32 to vector<36x512xf32>
    %171 = arith.select %169, %167, %170 : vector<36x512xi1>, vector<36x512xf32>
    %172 = vector.broadcast %116 : vector<36x1xf32> to vector<36x512xf32>
    %173 = arith.mulf %171, %172 : vector<36x512xf32>
    %174 = arith.addf %166, %173 : vector<36x512xf32>
    %c509_i32_29 = arith.constant 509 : i32
    %175 = tpu.dynamic_rotate %133 by %c509_i32_29 dim 1 : vector<36x512xf32>, i32 -> vector<36x512xf32>
    %cst_30 = arith.constant 0.000000e+00 : f32
    %176 = vector.shape_cast %135 : vector<1x512xi1> to vector<1x512xi1>
    %177 = vector.broadcast %176 : vector<1x512xi1> to vector<36x512xi1>
    %178 = vector.broadcast %cst_30 : f32 to vector<36x512xf32>
    %179 = arith.select %177, %175, %178 : vector<36x512xi1>, vector<36x512xf32>
    %180 = vector.broadcast %117 : vector<36x1xf32> to vector<36x512xf32>
    %181 = arith.mulf %179, %180 : vector<36x512xf32>
    %182 = arith.addf %174, %181 : vector<36x512xf32>
    %183 = vector.broadcast %118 : vector<36x1xf32> to vector<36x512xf32>
    %184 = arith.mulf %133, %183 : vector<36x512xf32>
    %185 = arith.addf %182, %184 : vector<36x512xf32>
    %c3_i32_31 = arith.constant 3 : i32
    %186 = tpu.dynamic_rotate %133 by %c3_i32_31 dim 1 : vector<36x512xf32>, i32 -> vector<36x512xf32>
    %cst_32 = arith.constant 0.000000e+00 : f32
    %187 = vector.shape_cast %137 : vector<1x512xi1> to vector<1x512xi1>
    %188 = vector.broadcast %187 : vector<1x512xi1> to vector<36x512xi1>
    %189 = vector.broadcast %cst_32 : f32 to vector<36x512xf32>
    %190 = arith.select %188, %186, %189 : vector<36x512xi1>, vector<36x512xf32>
    %191 = vector.broadcast %119 : vector<36x1xf32> to vector<36x512xf32>
    %192 = arith.mulf %190, %191 : vector<36x512xf32>
    %193 = arith.addf %185, %192 : vector<36x512xf32>
    %194 = vector.broadcast %105 : vector<36x1xf32> to vector<36x512xf32>
    %195 = arith.addf %193, %194 : vector<36x512xf32>
    %c80 = arith.constant 80 : index
    %c0_33 = arith.constant 0 : index
    %196 = vector.load %arg2[%c80, %c0_33] : memref<88x128xf32, #tpu.memory_space<vmem>>, vector<3x128xf32>
    %197 = vector.extract_strided_slice %196 {offsets = [0, 0], sizes = [3, 36], strides = [1, 1]} : vector<3x128xf32> to vector<3x36xf32>
    %198 = vector.extract_strided_slice %196 {offsets = [0, 36], sizes = [3, 1], strides = [1, 1]} : vector<3x128xf32> to vector<3x1xf32>
    %199 = vector.extract_strided_slice %196 {offsets = [0, 37], sizes = [3, 9], strides = [1, 1]} : vector<3x128xf32> to vector<3x9xf32>
    %200 = vector.extract_strided_slice %196 {offsets = [0, 46], sizes = [3, 1], strides = [1, 1]} : vector<3x128xf32> to vector<3x1xf32>
    %201 = arith.truncf %197 : vector<3x36xf32> to vector<3x36xbf16>
    %202 = arith.truncf %195 : vector<36x512xf32> to vector<36x512xbf16>
    %cst_34 = arith.constant dense<0.000000e+00> : vector<3x512xf32>
    %203 = tpu.matmul %201, %202, %cst_34 {dimension_numbers = #tpu.dot_dimension_numbers<[1], [0], [0], [1], [0, 0, 1, 1], [], []>} : vector<3x36xbf16>, vector<36x512xbf16>, vector<3x512xf32> -> vector<3x512xf32>
    %204 = vector.broadcast %198 : vector<3x1xf32> to vector<3x512xf32>
    %205 = arith.addf %203, %204 : vector<3x512xf32>
    %206 = vector.extract_strided_slice %199 {offsets = [0, 0], sizes = [3, 1], strides = [1, 1]} : vector<3x9xf32> to vector<3x1xf32>
    %207 = vector.extract_strided_slice %199 {offsets = [0, 1], sizes = [3, 1], strides = [1, 1]} : vector<3x9xf32> to vector<3x1xf32>
    %208 = vector.extract_strided_slice %199 {offsets = [0, 2], sizes = [3, 1], strides = [1, 1]} : vector<3x9xf32> to vector<3x1xf32>
    %209 = vector.extract_strided_slice %199 {offsets = [0, 3], sizes = [3, 1], strides = [1, 1]} : vector<3x9xf32> to vector<3x1xf32>
    %210 = vector.extract_strided_slice %199 {offsets = [0, 4], sizes = [3, 1], strides = [1, 1]} : vector<3x9xf32> to vector<3x1xf32>
    %211 = vector.extract_strided_slice %199 {offsets = [0, 5], sizes = [3, 1], strides = [1, 1]} : vector<3x9xf32> to vector<3x1xf32>
    %212 = vector.extract_strided_slice %199 {offsets = [0, 6], sizes = [3, 1], strides = [1, 1]} : vector<3x9xf32> to vector<3x1xf32>
    %213 = vector.extract_strided_slice %199 {offsets = [0, 7], sizes = [3, 1], strides = [1, 1]} : vector<3x9xf32> to vector<3x1xf32>
    %214 = vector.extract_strided_slice %199 {offsets = [0, 8], sizes = [3, 1], strides = [1, 1]} : vector<3x9xf32> to vector<3x1xf32>
    %c496_i32 = arith.constant 496 : i32
    %215 = tpu.dynamic_rotate %205 by %c496_i32 dim 1 : vector<3x512xf32>, i32 -> vector<3x512xf32>
    %c240_i32 = arith.constant 240 : i32
    %216 = vector.broadcast %c240_i32 : i32 to vector<1x512xi32>
    %217 = arith.cmpi slt, %3, %216 : vector<1x512xi32>
    %cst_35 = arith.constant 0.000000e+00 : f32
    %218 = vector.shape_cast %217 : vector<1x512xi1> to vector<1x512xi1>
    %219 = vector.broadcast %218 : vector<1x512xi1> to vector<3x512xi1>
    %220 = vector.broadcast %cst_35 : f32 to vector<3x512xf32>
    %221 = arith.select %219, %215, %220 : vector<3x512xi1>, vector<3x512xf32>
    %c16_i32 = arith.constant 16 : i32
    %222 = tpu.dynamic_rotate %205 by %c16_i32 dim 1 : vector<3x512xf32>, i32 -> vector<3x512xf32>
    %c16_i32_36 = arith.constant 16 : i32
    %223 = vector.broadcast %c16_i32_36 : i32 to vector<1x512xi32>
    %224 = arith.cmpi sge, %3, %223 : vector<1x512xi32>
    %cst_37 = arith.constant 0.000000e+00 : f32
    %225 = vector.shape_cast %224 : vector<1x512xi1> to vector<1x512xi1>
    %226 = vector.broadcast %225 : vector<1x512xi1> to vector<3x512xi1>
    %227 = vector.broadcast %cst_37 : f32 to vector<3x512xf32>
    %228 = arith.select %226, %222, %227 : vector<3x512xi1>, vector<3x512xf32>
    %c15_i32_38 = arith.constant 15 : i32
    %229 = vector.broadcast %c15_i32_38 : i32 to vector<1x512xi32>
    %230 = arith.cmpi slt, %5, %229 : vector<1x512xi32>
    %c1_i32 = arith.constant 1 : i32
    %231 = vector.broadcast %c1_i32 : i32 to vector<1x512xi32>
    %232 = arith.cmpi sge, %5, %231 : vector<1x512xi32>
    %c511_i32 = arith.constant 511 : i32
    %233 = tpu.dynamic_rotate %221 by %c511_i32 dim 1 : vector<3x512xf32>, i32 -> vector<3x512xf32>
    %cst_39 = arith.constant 0.000000e+00 : f32
    %234 = vector.shape_cast %230 : vector<1x512xi1> to vector<1x512xi1>
    %235 = vector.broadcast %234 : vector<1x512xi1> to vector<3x512xi1>
    %236 = vector.broadcast %cst_39 : f32 to vector<3x512xf32>
    %237 = arith.select %235, %233, %236 : vector<3x512xi1>, vector<3x512xf32>
    %238 = vector.broadcast %206 : vector<3x1xf32> to vector<3x512xf32>
    %239 = arith.mulf %237, %238 : vector<3x512xf32>
    %240 = vector.broadcast %207 : vector<3x1xf32> to vector<3x512xf32>
    %241 = arith.mulf %221, %240 : vector<3x512xf32>
    %242 = arith.addf %239, %241 : vector<3x512xf32>
    %c1_i32_40 = arith.constant 1 : i32
    %243 = tpu.dynamic_rotate %221 by %c1_i32_40 dim 1 : vector<3x512xf32>, i32 -> vector<3x512xf32>
    %cst_41 = arith.constant 0.000000e+00 : f32
    %244 = vector.shape_cast %232 : vector<1x512xi1> to vector<1x512xi1>
    %245 = vector.broadcast %244 : vector<1x512xi1> to vector<3x512xi1>
    %246 = vector.broadcast %cst_41 : f32 to vector<3x512xf32>
    %247 = arith.select %245, %243, %246 : vector<3x512xi1>, vector<3x512xf32>
    %248 = vector.broadcast %208 : vector<3x1xf32> to vector<3x512xf32>
    %249 = arith.mulf %247, %248 : vector<3x512xf32>
    %250 = arith.addf %242, %249 : vector<3x512xf32>
    %c511_i32_42 = arith.constant 511 : i32
    %251 = tpu.dynamic_rotate %205 by %c511_i32_42 dim 1 : vector<3x512xf32>, i32 -> vector<3x512xf32>
    %cst_43 = arith.constant 0.000000e+00 : f32
    %252 = vector.shape_cast %230 : vector<1x512xi1> to vector<1x512xi1>
    %253 = vector.broadcast %252 : vector<1x512xi1> to vector<3x512xi1>
    %254 = vector.broadcast %cst_43 : f32 to vector<3x512xf32>
    %255 = arith.select %253, %251, %254 : vector<3x512xi1>, vector<3x512xf32>
    %256 = vector.broadcast %209 : vector<3x1xf32> to vector<3x512xf32>
    %257 = arith.mulf %255, %256 : vector<3x512xf32>
    %258 = arith.addf %250, %257 : vector<3x512xf32>
    %259 = vector.broadcast %210 : vector<3x1xf32> to vector<3x512xf32>
    %260 = arith.mulf %205, %259 : vector<3x512xf32>
    %261 = arith.addf %258, %260 : vector<3x512xf32>
    %c1_i32_44 = arith.constant 1 : i32
    %262 = tpu.dynamic_rotate %205 by %c1_i32_44 dim 1 : vector<3x512xf32>, i32 -> vector<3x512xf32>
    %cst_45 = arith.constant 0.000000e+00 : f32
    %263 = vector.shape_cast %232 : vector<1x512xi1> to vector<1x512xi1>
    %264 = vector.broadcast %263 : vector<1x512xi1> to vector<3x512xi1>
    %265 = vector.broadcast %cst_45 : f32 to vector<3x512xf32>
    %266 = arith.select %264, %262, %265 : vector<3x512xi1>, vector<3x512xf32>
    %267 = vector.broadcast %211 : vector<3x1xf32> to vector<3x512xf32>
    %268 = arith.mulf %266, %267 : vector<3x512xf32>
    %269 = arith.addf %261, %268 : vector<3x512xf32>
    %c511_i32_46 = arith.constant 511 : i32
    %270 = tpu.dynamic_rotate %228 by %c511_i32_46 dim 1 : vector<3x512xf32>, i32 -> vector<3x512xf32>
    %cst_47 = arith.constant 0.000000e+00 : f32
    %271 = vector.shape_cast %230 : vector<1x512xi1> to vector<1x512xi1>
    %272 = vector.broadcast %271 : vector<1x512xi1> to vector<3x512xi1>
    %273 = vector.broadcast %cst_47 : f32 to vector<3x512xf32>
    %274 = arith.select %272, %270, %273 : vector<3x512xi1>, vector<3x512xf32>
    %275 = vector.broadcast %212 : vector<3x1xf32> to vector<3x512xf32>
    %276 = arith.mulf %274, %275 : vector<3x512xf32>
    %277 = arith.addf %269, %276 : vector<3x512xf32>
    %278 = vector.broadcast %213 : vector<3x1xf32> to vector<3x512xf32>
    %279 = arith.mulf %228, %278 : vector<3x512xf32>
    %280 = arith.addf %277, %279 : vector<3x512xf32>
    %c1_i32_48 = arith.constant 1 : i32
    %281 = tpu.dynamic_rotate %228 by %c1_i32_48 dim 1 : vector<3x512xf32>, i32 -> vector<3x512xf32>
    %cst_49 = arith.constant 0.000000e+00 : f32
    %282 = vector.shape_cast %232 : vector<1x512xi1> to vector<1x512xi1>
    %283 = vector.broadcast %282 : vector<1x512xi1> to vector<3x512xi1>
    %284 = vector.broadcast %cst_49 : f32 to vector<3x512xf32>
    %285 = arith.select %283, %281, %284 : vector<3x512xi1>, vector<3x512xf32>
    %286 = vector.broadcast %214 : vector<3x1xf32> to vector<3x512xf32>
    %287 = arith.mulf %285, %286 : vector<3x512xf32>
    %288 = arith.addf %280, %287 : vector<3x512xf32>
    %289 = vector.broadcast %200 : vector<3x1xf32> to vector<3x512xf32>
    %290 = arith.addf %288, %289 : vector<3x512xf32>
    %c0_50 = arith.constant 0 : index
    %c0_51 = arith.constant 0 : index
    %291 = vector.load %arg3[%c0_50, %c0_51] : memref<3x512xf32, #tpu.memory_space<vmem>>, vector<3x512xf32>
    tpu.vector_store %arg3[%c0_50, %c0_51], %290 {strides = array<i32>} : memref<3x512xf32, #tpu.memory_space<vmem>>, vector<3x512xf32>,
    return
  }
  func.func @transform_0(%arg0: i32) -> (i32, i32) {
    %c0_i32 = arith.constant 0 : i32
    %c0_i32_0 = arith.constant 0 : i32
    return %c0_i32, %arg0 : i32, i32
  }
  func.func @transform_1(%arg0: i32) -> (i32, i32) {
    %c0_i32 = arith.constant 0 : i32
    %c0_i32_0 = arith.constant 0 : i32
    %c0_i32_1 = arith.constant 0 : i32
    return %c0_i32, %c0_i32_0 : i32, i32
  }
  func.func @transform_2(%arg0: i32) -> (i32, i32) {
    %c0_i32 = arith.constant 0 : i32
    %c0_i32_0 = arith.constant 0 : i32
    return %c0_i32, %arg0 : i32, i32
  }
}

</mosaic_0001>

<llo_original>
// kernel: tpu_custom_call.1
$region0: #{tpu_custom_call.1}
  #allocation0 [shape = 'u32[]', space=smem, size = 0x4, offset = 0x4, fixed_abs, tag = 'smem constant byte address 0x4 - core index']
  #allocation1 [shape = 'u32[144,128]{1,0:T(1,128)}', space=vmem, size = 0x12000, scoped, tag = 'internal scratch']
  %s0 = inlined_call_operand.hbm [shape: f32[2,512], index: 0, kind: input, shape index: {}]
  %s1 = inlined_call_operand.hbm [shape: f32[88,128], index: 1, kind: input, shape index: {}]
  %s2 = inlined_call_operand.hbm [shape: f32[3,512], index: 2, kind: output, shape index: {}]
  %s3 = sld [smem:[#allocation0]]
  $region26: #{tpu_custom_call.1} parent=0
    _
  %s5 = ssub.s32 1, %s3
  %s6 = scalar_select 0, %s5, %s3
  $region1: #{tpu_custom_call.1} parent=0
    #allocation2 [shape = 'u8[4096]{0}', space=vmem, size = 0x1000, scoped, tag = 'input window, operand 0, single buffered']
    #allocation3 [shape = 's32[1]{0}', space=sflag, size = 0x4, scoped, tag = 'scoped memory for tpu_custom_call.1']
    #allocation4 [shape = 's32[1]{0}', space=sflag, size = 0x4, scoped, tag = 'scoped memory for tpu_custom_call.1']
    #allocation5 [shape = 'u8[45056]{0}', space=vmem, size = 0xb000, scoped, tag = 'input window, operand 1, single buffered']
    #allocation6 [shape = 's32[1]{0}', space=sflag, size = 0x4, scoped, tag = 'scoped memory for tpu_custom_call.1']
    #allocation7 [shape = 'u8[8192]{0}', space=vmem, size = 0x2000, scoped, tag = 'output window, operand 0, single buffered']
    %7 = vsyncpa [#allocation3], 0
    %8 = vsyncpa [#allocation6], 0
    %9 = vsyncpa [#allocation4], 0
    // Predicated region
    $region2: #{tpu_custom_call.1} parent=1 // pred_check
      _
    $region3: #{tpu_custom_call.1} parent=1 // pred_check_branch
      %11 = sbr.rel (0) target = $region5
    $region4: #{tpu_custom_call.1} parent=1 // pred_region
      %s13 = ssub.s32 128, 128
      %14 = vsyncadd [#allocation3], %s13
      %s16 = sshll.u32 [#allocation2], 4
      %s17 = int_to_ptr.vmem [resolvable:$true] %s16
      %19 = dma.hbm_to_vmem [thread:$0]  %s0, 128, %s17, [#allocation3]
    $region5: #{tpu_custom_call.1} parent=1 // pred_fallthru
      _
    // Predicated region
    $region6: #{tpu_custom_call.1} parent=1 // pred_check
      _
    $region7: #{tpu_custom_call.1} parent=1 // pred_check_branch
      %21 = sbr.rel (0) target = $region9
    $region8: #{tpu_custom_call.1} parent=1 // pred_region
      %s23 = ssub.s32 1408, 1408
      %24 = vsyncadd [#allocation6], %s23
      %s25 = sshll.u32 [#allocation5], 4
      %s26 = int_to_ptr.vmem [resolvable:$true] %s25
      %31 = dma.hbm_to_vmem [thread:$0]  %s1, 1408, %s26, [#allocation6], 128, 128, 8
    $region9: #{tpu_custom_call.1} parent=1 // pred_fallthru
      _
    // Predicated region
    $region10: #{tpu_custom_call.1} parent=1 // pred_check
      _
    $region11: #{tpu_custom_call.1} parent=1 // pred_check_branch
      %33 = sbr.rel (0) target = $region13
    $region12: #{tpu_custom_call.1} parent=1 // pred_region
      %34 = dma.done [#allocation3], 128
    $region13: #{tpu_custom_call.1} parent=1 // pred_fallthru
      _
    // Predicated region
    $region14: #{tpu_custom_call.1} parent=1 // pred_check
      _
    $region15: #{tpu_custom_call.1} parent=1 // pred_check_branch
      %36 = sbr.rel (0) target = $region17
    $region16: #{tpu_custom_call.1} parent=1 // pred_region
      %37 = dma.done [#allocation6], 1408
    $region17: #{tpu_custom_call.1} parent=1 // pred_fallthru
      _
    %v39 = vld [vmem:[#allocation2] sm:$0xff]
    %v40 = vlaneseq
    %v41 = vand.u32 %v40, 127
    %v42 = vadd.s32 %v41, 128
    %v43 = vadd.s32 %v41, 256
    %v44 = vadd.s32 %v41, 384
    %v45 = vand.u32 %v41, 255
    %v46 = vand.u32 %v42, 255
    %v47 = vand.u32 %v43, 255
    %v48 = vand.u32 %v44, 255
    %v49 = vand.u32 %v45, 15
    %v50 = vand.u32 %v46, 15
    %v51 = vand.u32 %v47, 15
    %v52 = vand.u32 %v48, 15
    %v53 = vld [vmem:[#allocation5] sm:$0xff]
    %v54 = vld [vmem:[#allocation5 + $0x8] sm:$0xff]
    %v55 = vld [vmem:[#allocation5 + $0x10] sm:$0xff]
    %v56 = vld [vmem:[#allocation5 + $0x18] sm:$0xff]
    %v57 = vld [vmem:[#allocation5 + $0x20] sm:$0xf]
    %v58 = vpack.c.bf16 %v54, %v53
    %v59 = vpack.c.bf16 %v56, %v55
    %v60 = vpack.c.bf16 %v57, %v57
    %v62 = vcombine.high %v39, %v39
    %v64 = vunpack.c.l.s4 1983009808
    %v65 = vunpack.c.0.s8 %v64
    %v66 = vlaneseq
    %v67 = vshrl.u32 %v66, 7
    %v68 = vsub.s32 %v65, %v67
    %v69 = vrot.slane %v39, %v68
    %v71 = vunpack.c.l.s4 1983009808
    %v72 = vunpack.c.0.s8 %v71
    %v73 = vlaneseq
    %v74 = vshrl.u32 %v73, 7
    %v75 = vsub.s32 %v72, %v74
    %v76 = vrot.slane %v62, %v75
    %v77 = vcombine.high %v69, %v69
    %v78 = vcombine.high %v76, %v76
    %v83 = vpack.c.bf16 %v69, %v69
    %v84 = vpack.c.bf16 %v77, %v77
    %v85 = vpack.c.bf16 %v76, %v76
    %v86 = vpack.c.bf16 %v78, %v78
    %88 = vset.pattern.permute.xlu0 2
    %89 = vperm.xlu0 %88, %v53
    %v90 = vpop.permute.xlu0 %89
    %93 = vset.pattern.permute.xlu0 2
    %94 = vperm.xlu0 %93, %v54
    %v95 = vpop.permute.xlu0 %94
    %98 = vset.pattern.permute.xlu0 2
    %99 = vperm.xlu0 %98, %v55
    %v100 = vpop.permute.xlu0 %99
    %103 = vset.pattern.permute.xlu0 2
    %104 = vperm.xlu0 %103, %v56
    %v105 = vpop.permute.xlu0 %104
    %108 = vset.pattern.permute.xlu0 2
    %109 = vperm.xlu0 %108, %v57
    %v110 = vpop.permute.xlu0 %109
    %vm112 = vcmask 15360
    %v114 = vsel %vm112, %v58, 0
    %v117 = vsel %vm112, %v59, 0
    %v120 = vsel %vm112, %v60, 0
    %vm122 = vcmask 1040384
    %v124 = vsel %vm122, %v83, 0
    %v127 = vsel %vm122, %v84, 0
    %v130 = vsel %vm122, %v85, 0
    %v133 = vsel %vm122, %v86, 0
    %135 = vmatprep.subr.bf16.mxu0 %v127
    %136 = vmatpush1.bf16.msra.mxu0 %v124
    %137 = vmatprep.subr.bf16.mxu0 0
    %138 = vmatpush1.bf16.msra.mxu0 0
    %139 = vmatprep.subr.bf16.mxu0 0
    %140 = vmatpush1.bf16.msra.mxu0 0
    %141 = vmatprep.subr.bf16.mxu0 0
    %142 = vmatpush1.bf16.msra.mxu0 0
    %143 = vmatprep.subr.bf16.mxu0 0
    %144 = vmatpush1.bf16.msra.mxu0 0
    %145 = vmatprep.subr.bf16.mxu0 0
    %146 = vmatpush1.bf16.msra.mxu0 0
    %147 = vmatprep.subr.bf16.mxu0 0
    %148 = vmatpush1.bf16.msra.mxu0 0
    %149 = vmatprep.subr.bf16.mxu0 0
    %150 = vmatpush1.bf16.msra.mxu0 0
    %151 = vmatprep.subr.bf16.mxu0 0
    %152 = vmatpush1.bf16.msra.mxu0 0
    %153 = vmatprep.subr.bf16.mxu0 0
    %154 = vmatpush1.bf16.msra.mxu0 0
    %155 = vmatprep.subr.bf16.mxu0 0
    %156 = vmatpush1.bf16.msra.mxu0 0
    %157 = vmatprep.subr.bf16.mxu0 0
    %158 = vmatpush1.bf16.msra.mxu0 0
    %159 = vmatprep.subr.bf16.mxu0 0
    %160 = vmatpush1.bf16.msra.mxu0 0
    %161 = vmatprep.subr.bf16.mxu0 0
    %162 = vmatpush1.bf16.msra.mxu0 0
    %163 = vmatprep.subr.bf16.mxu0 0
    %164 = vmatpush1.bf16.msra.mxu0 0
    %165 = vmatprep.subr.bf16.mxu0 0
    %166 = vmatpush1.bf16.msra.mxu0 0
    %167 = vmatprep.mubr.bf16.mxu0 0
    %168 = vmatmul.mubr.bf16.gmra.mrb[0].mxu0 %v114
    %v169 = vpop.f32.mrb[0].mxu0
    %v170 = vadd.f32 %v90, %v169
    %v171 = vpop.f32.mrb[0].mxu0
    %v172 = vadd.f32 %v90, %v171
    %v173 = vpop.f32.mrb[0].mxu0
    %v174 = vadd.f32 %v95, %v173
    %v175 = vpop.f32.mrb[0].mxu0
    %v176 = vadd.f32 %v95, %v175
    %177 = vmatprep.mubr.bf16.mxu0 0
    %178 = vmatmul.mubr.bf16.gmra.mrb[0].mxu0 %v117
    %v179 = vpop.f32.mrb[0].mxu0
    %v180 = vadd.f32 %v100, %v179
    %v181 = vpop.f32.mrb[0].mxu0
    %v182 = vadd.f32 %v100, %v181
    %v183 = vpop.f32.mrb[0].mxu0
    %v184 = vadd.f32 %v105, %v183
    %v185 = vpop.f32.mrb[0].mxu0
    %v186 = vadd.f32 %v105, %v185
    %187 = vmatprep.mubr.bf16.mxu0 0
    %188 = vmatmul.mubr.bf16.gmra.mrb[0].mxu0 %v120
    %v189 = vpop.f32.mrb[0].mxu0
    %v190 = vadd.f32 %v110, %v189
    %v191 = vpop.f32.mrb[0].mxu0
    %v192 = vadd.f32 %v110, %v191
    %v193 = vpop.f32.mrb[0].mxu0
    %v194 = vpop.f32.mrb[0].mxu0
    %195 = vdwg.mxu0
    %196 = vmatprep.subr.bf16.mxu0 %v133
    %197 = vmatpush1.bf16.msra.mxu0 %v130
    %198 = vmatprep.subr.bf16.mxu0 0
    %199 = vmatpush1.bf16.msra.mxu0 0
    %200 = vmatprep.subr.bf16.mxu0 0
    %201 = vmatpush1.bf16.msra.mxu0 0
    %202 = vmatprep.subr.bf16.mxu0 0
    %203 = vmatpush1.bf16.msra.mxu0 0
    %204 = vmatprep.subr.bf16.mxu0 0
    %205 = vmatpush1.bf16.msra.mxu0 0
    %206 = vmatprep.subr.bf16.mxu0 0
    %207 = vmatpush1.bf16.msra.mxu0 0
    %208 = vmatprep.subr.bf16.mxu0 0
    %209 = vmatpush1.bf16.msra.mxu0 0
    %210 = vmatprep.subr.bf16.mxu0 0
    %211 = vmatpush1.bf16.msra.mxu0 0
    %212 = vmatprep.subr.bf16.mxu0 0
    %213 = vmatpush1.bf16.msra.mxu0 0
    %214 = vmatprep.subr.bf16.mxu0 0
    %215 = vmatpush1.bf16.msra.mxu0 0
    %216 = vmatprep.subr.bf16.mxu0 0
    %217 = vmatpush1.bf16.msra.mxu0 0
    %218 = vmatprep.subr.bf16.mxu0 0
    %219 = vmatpush1.bf16.msra.mxu0 0
    %220 = vmatprep.subr.bf16.mxu0 0
    %221 = vmatpush1.bf16.msra.mxu0 0
    %222 = vmatprep.subr.bf16.mxu0 0
    %223 = vmatpush1.bf16.msra.mxu0 0
    %224 = vmatprep.subr.bf16.mxu0 0
    %225 = vmatpush1.bf16.msra.mxu0 0
    %226 = vmatprep.subr.bf16.mxu0 0
    %227 = vmatpush1.bf16.msra.mxu0 0
    %228 = vmatprep.mubr.bf16.mxu0 0
    %229 = vmatmul.mubr.bf16.gmra.mrb[0].mxu0 %v114
    %v230 = vpop.f32.mrb[0].mxu0
    %v231 = vadd.f32 %v90, %v230
    %v232 = vpop.f32.mrb[0].mxu0
    %v233 = vadd.f32 %v90, %v232
    %v234 = vpop.f32.mrb[0].mxu0
    %v235 = vadd.f32 %v95, %v234
    %v236 = vpop.f32.mrb[0].mxu0
    %v237 = vadd.f32 %v95, %v236
    %238 = vmatprep.mubr.bf16.mxu0 0
    %239 = vmatmul.mubr.bf16.gmra.mrb[0].mxu0 %v117
    %v240 = vpop.f32.mrb[0].mxu0
    %v241 = vadd.f32 %v100, %v240
    %v242 = vpop.f32.mrb[0].mxu0
    %v243 = vadd.f32 %v100, %v242
    %v244 = vpop.f32.mrb[0].mxu0
    %v245 = vadd.f32 %v105, %v244
    %v246 = vpop.f32.mrb[0].mxu0
    %v247 = vadd.f32 %v105, %v246
    %248 = vmatprep.mubr.bf16.mxu0 0
    %249 = vmatmul.mubr.bf16.gmra.mrb[0].mxu0 %v120
    %v250 = vpop.f32.mrb[0].mxu0
    %v251 = vadd.f32 %v110, %v250
    %v252 = vpop.f32.mrb[0].mxu0
    %v253 = vadd.f32 %v110, %v252
    %v254 = vpop.f32.mrb[0].mxu0
    %v255 = vpop.f32.mrb[0].mxu0
    %256 = vdwg.mxu0
    %257 = vrot.lane.b32.xlu0 %v170, 112
    %v258 = vpop.permute.xlu0 %257
    %259 = vrot.lane.b32.xlu0 %v174, 112
    %v260 = vpop.permute.xlu0 %259
    %261 = vrot.lane.b32.xlu0 %v180, 112
    %v262 = vpop.permute.xlu0 %261
    %263 = vrot.lane.b32.xlu0 %v184, 112
    %v264 = vpop.permute.xlu0 %263
    %265 = vrot.lane.b32.xlu0 %v190, 112
    %v266 = vpop.permute.xlu0 %265
    %267 = vrot.lane.b32.xlu0 %v172, 112
    %v268 = vpop.permute.xlu0 %267
    %269 = vrot.lane.b32.xlu0 %v176, 112
    %v270 = vpop.permute.xlu0 %269
    %271 = vrot.lane.b32.xlu0 %v182, 112
    %v272 = vpop.permute.xlu0 %271
    %273 = vrot.lane.b32.xlu0 %v186, 112
    %v274 = vpop.permute.xlu0 %273
    %275 = vrot.lane.b32.xlu0 %v192, 112
    %v276 = vpop.permute.xlu0 %275
    %277 = vrot.lane.b32.xlu0 %v231, 112
    %v278 = vpop.permute.xlu0 %277
    %279 = vrot.lane.b32.xlu0 %v235, 112
    %v280 = vpop.permute.xlu0 %279
    %281 = vrot.lane.b32.xlu0 %v241, 112
    %v282 = vpop.permute.xlu0 %281
    %283 = vrot.lane.b32.xlu0 %v245, 112
    %v284 = vpop.permute.xlu0 %283
    %285 = vrot.lane.b32.xlu0 %v251, 112
    %v286 = vpop.permute.xlu0 %285
    %287 = vrot.lane.b32.xlu0 %v233, 112
    %v288 = vpop.permute.xlu0 %287
    %289 = vrot.lane.b32.xlu0 %v237, 112
    %v290 = vpop.permute.xlu0 %289
    %291 = vrot.lane.b32.xlu0 %v243, 112
    %v292 = vpop.permute.xlu0 %291
    %293 = vrot.lane.b32.xlu0 %v247, 112
    %v294 = vpop.permute.xlu0 %293
    %295 = vrot.lane.b32.xlu0 %v253, 112
    %v296 = vpop.permute.xlu0 %295
    %vm297 = vcmp.lt.s32.totalorder %v41, 112
    %v298 = vsel %vm297, %v278, %v288
    %v299 = vsel %vm297, %v280, %v290
    %v300 = vsel %vm297, %v282, %v292
    %v301 = vsel %vm297, %v284, %v294
    %v302 = vsel %vm297, %v286, %v296
    %v303 = vsel %vm297, %v268, %v278
    %v304 = vsel %vm297, %v270, %v280
    %v305 = vsel %vm297, %v272, %v282
    %v306 = vsel %vm297, %v274, %v284
    %v307 = vsel %vm297, %v276, %v286
    %v308 = vsel %vm297, %v258, %v268
    %v309 = vsel %vm297, %v260, %v270
    %v310 = vsel %vm297, %v262, %v272
    %v311 = vsel %vm297, %v264, %v274
    %v312 = vsel %vm297, %v266, %v276
    %v313 = vsel %vm297, %v288, %v258
    %v314 = vsel %vm297, %v290, %v260
    %v315 = vsel %vm297, %v292, %v262
    %v316 = vsel %vm297, %v294, %v264
    %v317 = vsel %vm297, %v296, %v266
    %vm318 = vcmp.lt.s32.totalorder %v45, 112
    %vm319 = vcmp.lt.s32.totalorder %v46, 112
    %vm320 = vcmp.lt.s32.totalorder %v47, 112
    %vm321 = vcmp.lt.s32.totalorder %v48, 112
    %v322 = vsel %vm318, 1, 0
    %v323 = vsel %vm319, 1, 0
    %v324 = vsel %vm320, 1, 0
    %v325 = vsel %vm321, 1, 0
    %vm326 = vcmp.eq.s32.totalorder %v322, 1
    %vm327 = vcmp.eq.s32.totalorder %v323, 1
    %vm328 = vcmp.eq.s32.totalorder %v324, 1
    %vm329 = vcmp.eq.s32.totalorder %v325, 1
    %v330 = vsel %vm326, %v303, 0.0
    %v331 = vsel %vm327, %v298, 0.0
    %v332 = vsel %vm328, %v313, 0.0
    %v333 = vsel %vm329, %v308, 0.0
    %v334 = vsel %vm326, %v304, 0.0
    %v335 = vsel %vm327, %v299, 0.0
    %v336 = vsel %vm328, %v314, 0.0
    %v337 = vsel %vm329, %v309, 0.0
    %v338 = vsel %vm326, %v305, 0.0
    %v339 = vsel %vm327, %v300, 0.0
    %v340 = vsel %vm328, %v315, 0.0
    %v341 = vsel %vm329, %v310, 0.0
    %v342 = vsel %vm326, %v306, 0.0
    %v343 = vsel %vm327, %v301, 0.0
    %v344 = vsel %vm328, %v316, 0.0
    %v345 = vsel %vm329, %v311, 0.0
    %v346 = vsel %vm326, %v307, 0.0
    %v347 = vsel %vm327, %v302, 0.0
    %v348 = vsel %vm328, %v317, 0.0
    %v349 = vsel %vm329, %v312, 0.0
    %350 = vrot.lane.b32.xlu0 %v170, 16
    %v351 = vpop.permute.xlu0 %350
    %352 = vrot.lane.b32.xlu0 %v174, 16
    %v353 = vpop.permute.xlu0 %352
    %354 = vrot.lane.b32.xlu0 %v180, 16
    %v355 = vpop.permute.xlu0 %354
    %356 = vrot.lane.b32.xlu0 %v184, 16
    %v357 = vpop.permute.xlu0 %356
    %358 = vrot.lane.b32.xlu0 %v190, 16
    %v359 = vpop.permute.xlu0 %358
    %360 = vrot.lane.b32.xlu0 %v172, 16
    %v361 = vpop.permute.xlu0 %360
    %362 = vrot.lane.b32.xlu0 %v176, 16
    %v363 = vpop.permute.xlu0 %362
    %364 = vrot.lane.b32.xlu0 %v182, 16
    %v365 = vpop.permute.xlu0 %364
    %366 = vrot.lane.b32.xlu0 %v186, 16
    %v367 = vpop.permute.xlu0 %366
    %368 = vrot.lane.b32.xlu0 %v192, 16
    %v369 = vpop.permute.xlu0 %368
    %370 = vrot.lane.b32.xlu0 %v231, 16
    %v371 = vpop.permute.xlu0 %370
    %372 = vrot.lane.b32.xlu0 %v235, 16
    %v373 = vpop.permute.xlu0 %372
    %374 = vrot.lane.b32.xlu0 %v241, 16
    %v375 = vpop.permute.xlu0 %374
    %376 = vrot.lane.b32.xlu0 %v245, 16
    %v377 = vpop.permute.xlu0 %376
    %378 = vrot.lane.b32.xlu0 %v251, 16
    %v379 = vpop.permute.xlu0 %378
    %380 = vrot.lane.b32.xlu0 %v233, 16
    %v381 = vpop.permute.xlu0 %380
    %382 = vrot.lane.b32.xlu0 %v237, 16
    %v383 = vpop.permute.xlu0 %382
    %384 = vrot.lane.b32.xlu0 %v243, 16
    %v385 = vpop.permute.xlu0 %384
    %386 = vrot.lane.b32.xlu0 %v247, 16
    %v387 = vpop.permute.xlu0 %386
    %388 = vrot.lane.b32.xlu0 %v253, 16
    %v389 = vpop.permute.xlu0 %388
    %vm390 = vcmp.lt.s32.totalorder %v41, 16
    %v391 = vsel %vm390, %v371, %v381
    %v392 = vsel %vm390, %v373, %v383
    %v393 = vsel %vm390, %v375, %v385
    %v394 = vsel %vm390, %v377, %v387
    %v395 = vsel %vm390, %v379, %v389
    %v396 = vsel %vm390, %v361, %v371
    %v397 = vsel %vm390, %v363, %v373
    %v398 = vsel %vm390, %v365, %v375
    %v399 = vsel %vm390, %v367, %v377
    %v400 = vsel %vm390, %v369, %v379
    %v401 = vsel %vm390, %v351, %v361
    %v402 = vsel %vm390, %v353, %v363
    %v403 = vsel %vm390, %v355, %v365
    %v404 = vsel %vm390, %v357, %v367
    %v405 = vsel %vm390, %v359, %v369
    %v406 = vsel %vm390, %v381, %v351
    %v407 = vsel %vm390, %v383, %v353
    %v408 = vsel %vm390, %v385, %v355
    %v409 = vsel %vm390, %v387, %v357
    %v410 = vsel %vm390, %v389, %v359
    %vm411 = vcmp.ge.s32.totalorder %v45, 144
    %vm412 = vcmp.ge.s32.totalorder %v46, 144
    %vm413 = vcmp.ge.s32.totalorder %v47, 144
    %vm414 = vcmp.ge.s32.totalorder %v48, 144
    %v415 = vsel %vm411, 1, 0
    %v416 = vsel %vm412, 1, 0
    %v417 = vsel %vm413, 1, 0
    %v418 = vsel %vm414, 1, 0
    %vm419 = vcmp.eq.s32.totalorder %v415, 1
    %vm420 = vcmp.eq.s32.totalorder %v416, 1
    %vm421 = vcmp.eq.s32.totalorder %v417, 1
    %vm422 = vcmp.eq.s32.totalorder %v418, 1
    %v423 = vsel %vm419, %v391, 0.0
    %v424 = vsel %vm420, %v406, 0.0
    %v425 = vsel %vm421, %v401, 0.0
    %v426 = vsel %vm422, %v396, 0.0
    %v427 = vsel %vm419, %v392, 0.0
    %v428 = vsel %vm420, %v407, 0.0
    %v429 = vsel %vm421, %v402, 0.0
    %v430 = vsel %vm422, %v397, 0.0
    %v431 = vsel %vm419, %v393, 0.0
    %v432 = vsel %vm420, %v408, 0.0
    %v433 = vsel %vm421, %v403, 0.0
    %v434 = vsel %vm422, %v398, 0.0
    %v435 = vsel %vm419, %v394, 0.0
    %v436 = vsel %vm420, %v409, 0.0
    %v437 = vsel %vm421, %v404, 0.0
    %v438 = vsel %vm422, %v399, 0.0
    %v439 = vsel %vm419, %v395, 0.0
    %v440 = vsel %vm420, %v410, 0.0
    %v441 = vsel %vm421, %v405, 0.0
    %v442 = vsel %vm422, %v400, 0.0
    %vm443 = vcmp.lt.s32.totalorder %v49, 7
    %vm444 = vcmp.lt.s32.totalorder %v50, 7
    %vm445 = vcmp.lt.s32.totalorder %v51, 7
    %vm446 = vcmp.lt.s32.totalorder %v52, 7
    %vm447 = vcmp.ge.s32.totalorder %v49, 9
    %vm448 = vcmp.ge.s32.totalorder %v50, 9
    %vm449 = vcmp.ge.s32.totalorder %v51, 9
    %vm450 = vcmp.ge.s32.totalorder %v52, 9
    %451 = vrot.lane.b32.xlu0 %v330, 119
    %v452 = vpop.permute.xlu0 %451
    %453 = vrot.lane.b32.xlu0 %v334, 119
    %v454 = vpop.permute.xlu0 %453
    %455 = vrot.lane.b32.xlu0 %v338, 119
    %v456 = vpop.permute.xlu0 %455
    %457 = vrot.lane.b32.xlu0 %v342, 119
    %v458 = vpop.permute.xlu0 %457
    %459 = vrot.lane.b32.xlu0 %v346, 119
    %v460 = vpop.permute.xlu0 %459
    %461 = vrot.lane.b32.xlu0 %v331, 119
    %v462 = vpop.permute.xlu0 %461
    %463 = vrot.lane.b32.xlu0 %v335, 119
    %v464 = vpop.permute.xlu0 %463
    %465 = vrot.lane.b32.xlu0 %v339, 119
    %v466 = vpop.permute.xlu0 %465
    %467 = vrot.lane.b32.xlu0 %v343, 119
    %v468 = vpop.permute.xlu0 %467
    %469 = vrot.lane.b32.xlu0 %v347, 119
    %v470 = vpop.permute.xlu0 %469
    %471 = vrot.lane.b32.xlu0 %v332, 119
    %v472 = vpop.permute.xlu0 %471
    %473 = vrot.lane.b32.xlu0 %v336, 119
    %v474 = vpop.permute.xlu0 %473
    %475 = vrot.lane.b32.xlu0 %v340, 119
    %v476 = vpop.permute.xlu0 %475
    %477 = vrot.lane.b32.xlu0 %v344, 119
    %v478 = vpop.permute.xlu0 %477
    %479 = vrot.lane.b32.xlu0 %v348, 119
    %v480 = vpop.permute.xlu0 %479
    %481 = vrot.lane.b32.xlu0 %v333, 119
    %v482 = vpop.permute.xlu0 %481
    %483 = vrot.lane.b32.xlu0 %v337, 119
    %v484 = vpop.permute.xlu0 %483
    %485 = vrot.lane.b32.xlu0 %v341, 119
    %v486 = vpop.permute.xlu0 %485
    %487 = vrot.lane.b32.xlu0 %v345, 119
    %v488 = vpop.permute.xlu0 %487
    %489 = vrot.lane.b32.xlu0 %v349, 119
    %v490 = vpop.permute.xlu0 %489
    %vm491 = vcmp.lt.s32.totalorder %v41, 119
    %v492 = vsel %vm491, %v472, %v482
    %v493 = vsel %vm491, %v474, %v484
    %v494 = vsel %vm491, %v476, %v486
    %v495 = vsel %vm491, %v478, %v488
    %v496 = vsel %vm491, %v480, %v490
    %v497 = vsel %vm491, %v462, %v472
    %v498 = vsel %vm491, %v464, %v474
    %v499 = vsel %vm491, %v466, %v476
    %v500 = vsel %vm491, %v468, %v478
    %v501 = vsel %vm491, %v470, %v480
    %v502 = vsel %vm491, %v452, %v462
    %v503 = vsel %vm491, %v454, %v464
    %v504 = vsel %vm491, %v456, %v466
    %v505 = vsel %vm491, %v458, %v468
    %v506 = vsel %vm491, %v460, %v470
    %v507 = vsel %vm491, %v482, %v452
    %v508 = vsel %vm491, %v484, %v454
    %v509 = vsel %vm491, %v486, %v456
    %v510 = vsel %vm491, %v488, %v458
    %v511 = vsel %vm491, %v490, %v460
    %v512 = vsel %vm443, 1, 0
    %v513 = vsel %vm444, 1, 0
    %v514 = vsel %vm445, 1, 0
    %v515 = vsel %vm446, 1, 0
    %vm516 = vcmp.eq.s32.totalorder %v512, 1
    %vm517 = vcmp.eq.s32.totalorder %v513, 1
    %vm518 = vcmp.eq.s32.totalorder %v514, 1
    %vm519 = vcmp.eq.s32.totalorder %v515, 1
    %v520 = vsel %vm516, %v502, 0.0
    %v521 = vsel %vm517, %v497, 0.0
    %v522 = vsel %vm518, %v492, 0.0
    %v523 = vsel %vm519, %v507, 0.0
    %v524 = vsel %vm516, %v503, 0.0
    %v525 = vsel %vm517, %v498, 0.0
    %v526 = vsel %vm518, %v493, 0.0
    %v527 = vsel %vm519, %v508, 0.0
    %v528 = vsel %vm516, %v504, 0.0
    %v529 = vsel %vm517, %v499, 0.0
    %v530 = vsel %vm518, %v494, 0.0
    %v531 = vsel %vm519, %v509, 0.0
    %v532 = vsel %vm516, %v505, 0.0
    %v533 = vsel %vm517, %v500, 0.0
    %v534 = vsel %vm518, %v495, 0.0
    %v535 = vsel %vm519, %v510, 0.0
    %v536 = vsel %vm516, %v506, 0.0
    %v537 = vsel %vm517, %v501, 0.0
    %v538 = vsel %vm518, %v496, 0.0
    %v539 = vsel %vm519, %v511, 0.0
    %540 = vset.pattern.permute.xlu0 3
    %541 = vperm.xlu0 %540, %v53
    %v542 = vpop.permute.xlu0 %541
    %544 = vset.pattern.permute.xlu0 3
    %545 = vperm.xlu0 %544, %v54
    %v546 = vpop.permute.xlu0 %545
    %548 = vset.pattern.permute.xlu0 3
    %549 = vperm.xlu0 %548, %v55
    %v550 = vpop.permute.xlu0 %549
    %552 = vset.pattern.permute.xlu0 3
    %553 = vperm.xlu0 %552, %v56
    %v554 = vpop.permute.xlu0 %553
    %556 = vset.pattern.permute.xlu0 3
    %557 = vperm.xlu0 %556, %v57
    %v558 = vpop.permute.xlu0 %557
    %v560 = vmul.f32 %v520, %v542
    %v561 = vmul.f32 %v521, %v542
    %v562 = vmul.f32 %v522, %v542
    %v563 = vmul.f32 %v523, %v542
    %v564 = vmul.f32 %v524, %v546
    %v565 = vmul.f32 %v525, %v546
    %v566 = vmul.f32 %v526, %v546
    %v567 = vmul.f32 %v527, %v546
    %v568 = vmul.f32 %v528, %v550
    %v569 = vmul.f32 %v529, %v550
    %v570 = vmul.f32 %v530, %v550
    %v571 = vmul.f32 %v531, %v550
    %v572 = vmul.f32 %v532, %v554
    %v573 = vmul.f32 %v533, %v554
    %v574 = vmul.f32 %v534, %v554
    %v575 = vmul.f32 %v535, %v554
    %v576 = vmul.f32 %v536, %v558
    %v577 = vmul.f32 %v537, %v558
    %v578 = vmul.f32 %v538, %v558
    %v579 = vmul.f32 %v539, %v558
    %580 = vset.pattern.permute.xlu0 4
    %581 = vperm.xlu0 %580, %v53
    %v582 = vpop.permute.xlu0 %581
    %584 = vset.pattern.permute.xlu0 4
    %585 = vperm.xlu0 %584, %v54
    %v586 = vpop.permute.xlu0 %585
    %588 = vset.pattern.permute.xlu0 4
    %589 = vperm.xlu0 %588, %v55
    %v590 = vpop.permute.xlu0 %589
    %592 = vset.pattern.permute.xlu0 4
    %593 = vperm.xlu0 %592, %v56
    %v594 = vpop.permute.xlu0 %593
    %596 = vset.pattern.permute.xlu0 4
    %597 = vperm.xlu0 %596, %v57
    %v598 = vpop.permute.xlu0 %597
    %v600 = vmul.f32 %v330, %v582
    %v601 = vmul.f32 %v331, %v582
    %v602 = vmul.f32 %v332, %v582
    %v603 = vmul.f32 %v333, %v582
    %v604 = vmul.f32 %v334, %v586
    %v605 = vmul.f32 %v335, %v586
    %v606 = vmul.f32 %v336, %v586
    %v607 = vmul.f32 %v337, %v586
    %v608 = vmul.f32 %v338, %v590
    %v609 = vmul.f32 %v339, %v590
    %v610 = vmul.f32 %v340, %v590
    %v611 = vmul.f32 %v341, %v590
    %v612 = vmul.f32 %v342, %v594
    %v613 = vmul.f32 %v343, %v594
    %v614 = vmul.f32 %v344, %v594
    %v615 = vmul.f32 %v345, %v594
    %v616 = vmul.f32 %v346, %v598
    %v617 = vmul.f32 %v347, %v598
    %v618 = vmul.f32 %v348, %v598
    %v619 = vmul.f32 %v349, %v598
    %v620 = vadd.f32 %v560, %v600
    %v621 = vadd.f32 %v561, %v601
    %v622 = vadd.f32 %v562, %v602
    %v623 = vadd.f32 %v563, %v603
    %v624 = vadd.f32 %v564, %v604
    %v625 = vadd.f32 %v565, %v605
    %v626 = vadd.f32 %v566, %v606
    %v627 = vadd.f32 %v567, %v607
    %v628 = vadd.f32 %v568, %v608
    %v629 = vadd.f32 %v569, %v609
    %v630 = vadd.f32 %v570, %v610
    %v631 = vadd.f32 %v571, %v611
    %v632 = vadd.f32 %v572, %v612
    %v633 = vadd.f32 %v573, %v613
    %v634 = vadd.f32 %v574, %v614
    %v635 = vadd.f32 %v575, %v615
    %v636 = vadd.f32 %v576, %v616
    %v637 = vadd.f32 %v577, %v617
    %v638 = vadd.f32 %v578, %v618
    %v639 = vadd.f32 %v579, %v619
    %640 = vrot.lane.b32.xlu0 %v330, 9
    %v641 = vpop.permute.xlu0 %640
    %642 = vrot.lane.b32.xlu0 %v334, 9
    %v643 = vpop.permute.xlu0 %642
    %644 = vrot.lane.b32.xlu0 %v338, 9
    %v645 = vpop.permute.xlu0 %644
    %646 = vrot.lane.b32.xlu0 %v342, 9
    %v647 = vpop.permute.xlu0 %646
    %648 = vrot.lane.b32.xlu0 %v346, 9
    %v649 = vpop.permute.xlu0 %648
    %650 = vrot.lane.b32.xlu0 %v331, 9
    %v651 = vpop.permute.xlu0 %650
    %652 = vrot.lane.b32.xlu0 %v335, 9
    %v653 = vpop.permute.xlu0 %652
    %654 = vrot.lane.b32.xlu0 %v339, 9
    %v655 = vpop.permute.xlu0 %654
    %656 = vrot.lane.b32.xlu0 %v343, 9
    %v657 = vpop.permute.xlu0 %656
    %658 = vrot.lane.b32.xlu0 %v347, 9
    %v659 = vpop.permute.xlu0 %658
    %660 = vrot.lane.b32.xlu0 %v332, 9
    %v661 = vpop.permute.xlu0 %660
    %662 = vrot.lane.b32.xlu0 %v336, 9
    %v663 = vpop.permute.xlu0 %662
    %664 = vrot.lane.b32.xlu0 %v340, 9
    %v665 = vpop.permute.xlu0 %664
    %666 = vrot.lane.b32.xlu0 %v344, 9
    %v667 = vpop.permute.xlu0 %666
    %668 = vrot.lane.b32.xlu0 %v348, 9
    %v669 = vpop.permute.xlu0 %668
    %670 = vrot.lane.b32.xlu0 %v333, 9
    %v671 = vpop.permute.xlu0 %670
    %672 = vrot.lane.b32.xlu0 %v337, 9
    %v673 = vpop.permute.xlu0 %672
    %674 = vrot.lane.b32.xlu0 %v341, 9
    %v675 = vpop.permute.xlu0 %674
    %676 = vrot.lane.b32.xlu0 %v345, 9
    %v677 = vpop.permute.xlu0 %676
    %678 = vrot.lane.b32.xlu0 %v349, 9
    %v679 = vpop.permute.xlu0 %678
    %vm680 = vcmp.lt.s32.totalorder %v41, 9
    %v681 = vsel %vm680, %v661, %v671
    %v682 = vsel %vm680, %v663, %v673
    %v683 = vsel %vm680, %v665, %v675
    %v684 = vsel %vm680, %v667, %v677
    %v685 = vsel %vm680, %v669, %v679
    %v686 = vsel %vm680, %v651, %v661
    %v687 = vsel %vm680, %v653, %v663
    %v688 = vsel %vm680, %v655, %v665
    %v689 = vsel %vm680, %v657, %v667
    %v690 = vsel %vm680, %v659, %v669
    %v691 = vsel %vm680, %v641, %v651
    %v692 = vsel %vm680, %v643, %v653
    %v693 = vsel %vm680, %v645, %v655
    %v694 = vsel %vm680, %v647, %v657
    %v695 = vsel %vm680, %v649, %v659
    %v696 = vsel %vm680, %v671, %v641
    %v697 = vsel %vm680, %v673, %v643
    %v698 = vsel %vm680, %v675, %v645
    %v699 = vsel %vm680, %v677, %v647
    %v700 = vsel %vm680, %v679, %v649
    %v701 = vsel %vm447, 1, 0
    %v702 = vsel %vm448, 1, 0
    %v703 = vsel %vm449, 1, 0
    %v704 = vsel %vm450, 1, 0
    %vm705 = vcmp.eq.s32.totalorder %v701, 1
    %vm706 = vcmp.eq.s32.totalorder %v702, 1
    %vm707 = vcmp.eq.s32.totalorder %v703, 1
    %vm708 = vcmp.eq.s32.totalorder %v704, 1
    %v709 = vsel %vm705, %v696, 0.0
    %v710 = vsel %vm706, %v691, 0.0
    %v711 = vsel %vm707, %v686, 0.0
    %v712 = vsel %vm708, %v681, 0.0
    %v713 = vsel %vm705, %v697, 0.0
    %v714 = vsel %vm706, %v692, 0.0
    %v715 = vsel %vm707, %v687, 0.0
    %v716 = vsel %vm708, %v682, 0.0
    %v717 = vsel %vm705, %v698, 0.0
    %v718 = vsel %vm706, %v693, 0.0
    %v719 = vsel %vm707, %v688, 0.0
    %v720 = vsel %vm708, %v683, 0.0
    %v721 = vsel %vm705, %v699, 0.0
    %v722 = vsel %vm706, %v694, 0.0
    %v723 = vsel %vm707, %v689, 0.0
    %v724 = vsel %vm708, %v684, 0.0
    %v725 = vsel %vm705, %v700, 0.0
    %v726 = vsel %vm706, %v695, 0.0
    %v727 = vsel %vm707, %v690, 0.0
    %v728 = vsel %vm708, %v685, 0.0
    %729 = vset.pattern.permute.xlu0 5
    %730 = vperm.xlu0 %729, %v53
    %v731 = vpop.permute.xlu0 %730
    %733 = vset.pattern.permute.xlu0 5
    %734 = vperm.xlu0 %733, %v54
    %v735 = vpop.permute.xlu0 %734
    %737 = vset.pattern.permute.xlu0 5
    %738 = vperm.xlu0 %737, %v55
    %v739 = vpop.permute.xlu0 %738
    %741 = vset.pattern.permute.xlu0 5
    %742 = vperm.xlu0 %741, %v56
    %v743 = vpop.permute.xlu0 %742
    %745 = vset.pattern.permute.xlu0 5
    %746 = vperm.xlu0 %745, %v57
    %v747 = vpop.permute.xlu0 %746
    %v749 = vmul.f32 %v709, %v731
    %v750 = vmul.f32 %v710, %v731
    %v751 = vmul.f32 %v711, %v731
    %v752 = vmul.f32 %v712, %v731
    %v753 = vmul.f32 %v713, %v735
    %v754 = vmul.f32 %v714, %v735
    %v755 = vmul.f32 %v715, %v735
    %v756 = vmul.f32 %v716, %v735
    %v757 = vmul.f32 %v717, %v739
    %v758 = vmul.f32 %v718, %v739
    %v759 = vmul.f32 %v719, %v739
    %v760 = vmul.f32 %v720, %v739
    %v761 = vmul.f32 %v721, %v743
    %v762 = vmul.f32 %v722, %v743
    %v763 = vmul.f32 %v723, %v743
    %v764 = vmul.f32 %v724, %v743
    %v765 = vmul.f32 %v725, %v747
    %v766 = vmul.f32 %v726, %v747
    %v767 = vmul.f32 %v727, %v747
    %v768 = vmul.f32 %v728, %v747
    %v769 = vadd.f32 %v620, %v749
    %v770 = vadd.f32 %v621, %v750
    %v771 = vadd.f32 %v622, %v751
    %v772 = vadd.f32 %v623, %v752
    %v773 = vadd.f32 %v624, %v753
    %v774 = vadd.f32 %v625, %v754
    %v775 = vadd.f32 %v626, %v755
    %v776 = vadd.f32 %v627, %v756
    %v777 = vadd.f32 %v628, %v757
    %v778 = vadd.f32 %v629, %v758
    %v779 = vadd.f32 %v630, %v759
    %v780 = vadd.f32 %v631, %v760
    %v781 = vadd.f32 %v632, %v761
    %v782 = vadd.f32 %v633, %v762
    %v783 = vadd.f32 %v634, %v763
    %v784 = vadd.f32 %v635, %v764
    %v785 = vadd.f32 %v636, %v765
    %v786 = vadd.f32 %v637, %v766
    %v787 = vadd.f32 %v638, %v767
    %v788 = vadd.f32 %v639, %v768
    %789 = vrot.lane.b32.xlu0 %v170, 119
    %v790 = vpop.permute.xlu0 %789
    %791 = vrot.lane.b32.xlu0 %v174, 119
    %v792 = vpop.permute.xlu0 %791
    %793 = vrot.lane.b32.xlu0 %v180, 119
    %v794 = vpop.permute.xlu0 %793
    %795 = vrot.lane.b32.xlu0 %v184, 119
    %v796 = vpop.permute.xlu0 %795
    %797 = vrot.lane.b32.xlu0 %v190, 119
    %v798 = vpop.permute.xlu0 %797
    %799 = vrot.lane.b32.xlu0 %v172, 119
    %v800 = vpop.permute.xlu0 %799
    %801 = vrot.lane.b32.xlu0 %v176, 119
    %v802 = vpop.permute.xlu0 %801
    %803 = vrot.lane.b32.xlu0 %v182, 119
    %v804 = vpop.permute.xlu0 %803
    %805 = vrot.lane.b32.xlu0 %v186, 119
    %v806 = vpop.permute.xlu0 %805
    %807 = vrot.lane.b32.xlu0 %v192, 119
    %v808 = vpop.permute.xlu0 %807
    %809 = vrot.lane.b32.xlu0 %v231, 119
    %v810 = vpop.permute.xlu0 %809
    %811 = vrot.lane.b32.xlu0 %v235, 119
    %v812 = vpop.permute.xlu0 %811
    %813 = vrot.lane.b32.xlu0 %v241, 119
    %v814 = vpop.permute.xlu0 %813
    %815 = vrot.lane.b32.xlu0 %v245, 119
    %v816 = vpop.permute.xlu0 %815
    %817 = vrot.lane.b32.xlu0 %v251, 119
    %v818 = vpop.permute.xlu0 %817
    %819 = vrot.lane.b32.xlu0 %v233, 119
    %v820 = vpop.permute.xlu0 %819
    %821 = vrot.lane.b32.xlu0 %v237, 119
    %v822 = vpop.permute.xlu0 %821
    %823 = vrot.lane.b32.xlu0 %v243, 119
    %v824 = vpop.permute.xlu0 %823
    %825 = vrot.lane.b32.xlu0 %v247, 119
    %v826 = vpop.permute.xlu0 %825
    %827 = vrot.lane.b32.xlu0 %v253, 119
    %v828 = vpop.permute.xlu0 %827
    %v829 = vsel %vm491, %v810, %v820
    %v830 = vsel %vm491, %v812, %v822
    %v831 = vsel %vm491, %v814, %v824
    %v832 = vsel %vm491, %v816, %v826
    %v833 = vsel %vm491, %v818, %v828
    %v834 = vsel %vm491, %v800, %v810
    %v835 = vsel %vm491, %v802, %v812
    %v836 = vsel %vm491, %v804, %v814
    %v837 = vsel %vm491, %v806, %v816
    %v838 = vsel %vm491, %v808, %v818
    %v839 = vsel %vm491, %v790, %v800
    %v840 = vsel %vm491, %v792, %v802
    %v841 = vsel %vm491, %v794, %v804
    %v842 = vsel %vm491, %v796, %v806
    %v843 = vsel %vm491, %v798, %v808
    %v844 = vsel %vm491, %v820, %v790
    %v845 = vsel %vm491, %v822, %v792
    %v846 = vsel %vm491, %v824, %v794
    %v847 = vsel %vm491, %v826, %v796
    %v848 = vsel %vm491, %v828, %v798
    %v849 = vsel %vm516, %v839, 0.0
    %v850 = vsel %vm517, %v834, 0.0
    %v851 = vsel %vm518, %v829, 0.0
    %v852 = vsel %vm519, %v844, 0.0
    %v853 = vsel %vm516, %v840, 0.0
    %v854 = vsel %vm517, %v835, 0.0
    %v855 = vsel %vm518, %v830, 0.0
    %v856 = vsel %vm519, %v845, 0.0
    %v857 = vsel %vm516, %v841, 0.0
    %v858 = vsel %vm517, %v836, 0.0
    %v859 = vsel %vm518, %v831, 0.0
    %v860 = vsel %vm519, %v846, 0.0
    %v861 = vsel %vm516, %v842, 0.0
    %v862 = vsel %vm517, %v837, 0.0
    %v863 = vsel %vm518, %v832, 0.0
    %v864 = vsel %vm519, %v847, 0.0
    %v865 = vsel %vm516, %v843, 0.0
    %v866 = vsel %vm517, %v838, 0.0
    %v867 = vsel %vm518, %v833, 0.0
    %v868 = vsel %vm519, %v848, 0.0
    %869 = vset.pattern.permute.xlu0 6
    %870 = vperm.xlu0 %869, %v53
    %v871 = vpop.permute.xlu0 %870
    %873 = vset.pattern.permute.xlu0 6
    %874 = vperm.xlu0 %873, %v54
    %v875 = vpop.permute.xlu0 %874
    %877 = vset.pattern.permute.xlu0 6
    %878 = vperm.xlu0 %877, %v55
    %v879 = vpop.permute.xlu0 %878
    %881 = vset.pattern.permute.xlu0 6
    %882 = vperm.xlu0 %881, %v56
    %v883 = vpop.permute.xlu0 %882
    %885 = vset.pattern.permute.xlu0 6
    %886 = vperm.xlu0 %885, %v57
    %v887 = vpop.permute.xlu0 %886
    %v889 = vmul.f32 %v849, %v871
    %v890 = vmul.f32 %v850, %v871
    %v891 = vmul.f32 %v851, %v871
    %v892 = vmul.f32 %v852, %v871
    %v893 = vmul.f32 %v853, %v875
    %v894 = vmul.f32 %v854, %v875
    %v895 = vmul.f32 %v855, %v875
    %v896 = vmul.f32 %v856, %v875
    %v897 = vmul.f32 %v857, %v879
    %v898 = vmul.f32 %v858, %v879
    %v899 = vmul.f32 %v859, %v879
    %v900 = vmul.f32 %v860, %v879
    %v901 = vmul.f32 %v861, %v883
    %v902 = vmul.f32 %v862, %v883
    %v903 = vmul.f32 %v863, %v883
    %v904 = vmul.f32 %v864, %v883
    %v905 = vmul.f32 %v865, %v887
    %v906 = vmul.f32 %v866, %v887
    %v907 = vmul.f32 %v867, %v887
    %v908 = vmul.f32 %v868, %v887
    %v909 = vadd.f32 %v769, %v889
    %v910 = vadd.f32 %v770, %v890
    %v911 = vadd.f32 %v771, %v891
    %v912 = vadd.f32 %v772, %v892
    %v913 = vadd.f32 %v773, %v893
    %v914 = vadd.f32 %v774, %v894
    %v915 = vadd.f32 %v775, %v895
    %v916 = vadd.f32 %v776, %v896
    %v917 = vadd.f32 %v777, %v897
    %v918 = vadd.f32 %v778, %v898
    %v919 = vadd.f32 %v779, %v899
    %v920 = vadd.f32 %v780, %v900
    %v921 = vadd.f32 %v781, %v901
    %v922 = vadd.f32 %v782, %v902
    %v923 = vadd.f32 %v783, %v903
    %v924 = vadd.f32 %v784, %v904
    %v925 = vadd.f32 %v785, %v905
    %v926 = vadd.f32 %v786, %v906
    %v927 = vadd.f32 %v787, %v907
    %v928 = vadd.f32 %v788, %v908
    %929 = vset.pattern.permute.xlu0 7
    %930 = vperm.xlu0 %929, %v53
    %v931 = vpop.permute.xlu0 %930
    %933 = vset.pattern.permute.xlu0 7
    %934 = vperm.xlu0 %933, %v54
    %v935 = vpop.permute.xlu0 %934
    %937 = vset.pattern.permute.xlu0 7
    %938 = vperm.xlu0 %937, %v55
    %v939 = vpop.permute.xlu0 %938
    %941 = vset.pattern.permute.xlu0 7
    %942 = vperm.xlu0 %941, %v56
    %v943 = vpop.permute.xlu0 %942
    %945 = vset.pattern.permute.xlu0 7
    %946 = vperm.xlu0 %945, %v57
    %v947 = vpop.permute.xlu0 %946
    %v949 = vmul.f32 %v170, %v931
    %v950 = vmul.f32 %v172, %v931
    %v951 = vmul.f32 %v231, %v931
    %v952 = vmul.f32 %v233, %v931
    %v953 = vmul.f32 %v174, %v935
    %v954 = vmul.f32 %v176, %v935
    %v955 = vmul.f32 %v235, %v935
    %v956 = vmul.f32 %v237, %v935
    %v957 = vmul.f32 %v180, %v939
    %v958 = vmul.f32 %v182, %v939
    %v959 = vmul.f32 %v241, %v939
    %v960 = vmul.f32 %v243, %v939
    %v961 = vmul.f32 %v184, %v943
    %v962 = vmul.f32 %v186, %v943
    %v963 = vmul.f32 %v245, %v943
    %v964 = vmul.f32 %v247, %v943
    %v965 = vmul.f32 %v190, %v947
    %v966 = vmul.f32 %v192, %v947
    %v967 = vmul.f32 %v251, %v947
    %v968 = vmul.f32 %v253, %v947
    %v969 = vadd.f32 %v909, %v949
    %v970 = vadd.f32 %v910, %v950
    %v971 = vadd.f32 %v911, %v951
    %v972 = vadd.f32 %v912, %v952
    %v973 = vadd.f32 %v913, %v953
    %v974 = vadd.f32 %v914, %v954
    %v975 = vadd.f32 %v915, %v955
    %v976 = vadd.f32 %v916, %v956
    %v977 = vadd.f32 %v917, %v957
    %v978 = vadd.f32 %v918, %v958
    %v979 = vadd.f32 %v919, %v959
    %v980 = vadd.f32 %v920, %v960
    %v981 = vadd.f32 %v921, %v961
    %v982 = vadd.f32 %v922, %v962
    %v983 = vadd.f32 %v923, %v963
    %v984 = vadd.f32 %v924, %v964
    %v985 = vadd.f32 %v925, %v965
    %v986 = vadd.f32 %v926, %v966
    %v987 = vadd.f32 %v927, %v967
    %v988 = vadd.f32 %v928, %v968
    %989 = vrot.lane.b32.xlu0 %v170, 9
    %v990 = vpop.permute.xlu0 %989
    %991 = vrot.lane.b32.xlu0 %v174, 9
    %v992 = vpop.permute.xlu0 %991
    %993 = vrot.lane.b32.xlu0 %v180, 9
    %v994 = vpop.permute.xlu0 %993
    %995 = vrot.lane.b32.xlu0 %v184, 9
    %v996 = vpop.permute.xlu0 %995
    %997 = vrot.lane.b32.xlu0 %v190, 9
    %v998 = vpop.permute.xlu0 %997
    %999 = vrot.lane.b32.xlu0 %v172, 9
    %v1000 = vpop.permute.xlu0 %999
    %1001 = vrot.lane.b32.xlu0 %v176, 9
    %v1002 = vpop.permute.xlu0 %1001
    %1003 = vrot.lane.b32.xlu0 %v182, 9
    %v1004 = vpop.permute.xlu0 %1003
    %1005 = vrot.lane.b32.xlu0 %v186, 9
    %v1006 = vpop.permute.xlu0 %1005
    %1007 = vrot.lane.b32.xlu0 %v192, 9
    %v1008 = vpop.permute.xlu0 %1007
    %1009 = vrot.lane.b32.xlu0 %v231, 9
    %v1010 = vpop.permute.xlu0 %1009
    %1011 = vrot.lane.b32.xlu0 %v235, 9
    %v1012 = vpop.permute.xlu0 %1011
    %1013 = vrot.lane.b32.xlu0 %v241, 9
    %v1014 = vpop.permute.xlu0 %1013
    %1015 = vrot.lane.b32.xlu0 %v245, 9
    %v1016 = vpop.permute.xlu0 %1015
    %1017 = vrot.lane.b32.xlu0 %v251, 9
    %v1018 = vpop.permute.xlu0 %1017
    %1019 = vrot.lane.b32.xlu0 %v233, 9
    %v1020 = vpop.permute.xlu0 %1019
    %1021 = vrot.lane.b32.xlu0 %v237, 9
    %v1022 = vpop.permute.xlu0 %1021
    %1023 = vrot.lane.b32.xlu0 %v243, 9
    %v1024 = vpop.permute.xlu0 %1023
    %1025 = vrot.lane.b32.xlu0 %v247, 9
    %v1026 = vpop.permute.xlu0 %1025
    %1027 = vrot.lane.b32.xlu0 %v253, 9
    %v1028 = vpop.permute.xlu0 %1027
    %v1029 = vsel %vm680, %v1010, %v1020
    %v1030 = vsel %vm680, %v1012, %v1022
    %v1031 = vsel %vm680, %v1014, %v1024
    %v1032 = vsel %vm680, %v1016, %v1026
    %v1033 = vsel %vm680, %v1018, %v1028
    %v1034 = vsel %vm680, %v1000, %v1010
    %v1035 = vsel %vm680, %v1002, %v1012
    %v1036 = vsel %vm680, %v1004, %v1014
    %v1037 = vsel %vm680, %v1006, %v1016
    %v1038 = vsel %vm680, %v1008, %v1018
    %v1039 = vsel %vm680, %v990, %v1000
    %v1040 = vsel %vm680, %v992, %v1002
    %v1041 = vsel %vm680, %v994, %v1004
    %v1042 = vsel %vm680, %v996, %v1006
    %v1043 = vsel %vm680, %v998, %v1008
    %v1044 = vsel %vm680, %v1020, %v990
    %v1045 = vsel %vm680, %v1022, %v992
    %v1046 = vsel %vm680, %v1024, %v994
    %v1047 = vsel %vm680, %v1026, %v996
    %v1048 = vsel %vm680, %v1028, %v998
    %v1049 = vsel %vm705, %v1044, 0.0
    %v1050 = vsel %vm706, %v1039, 0.0
    %v1051 = vsel %vm707, %v1034, 0.0
    %v1052 = vsel %vm708, %v1029, 0.0
    %v1053 = vsel %vm705, %v1045, 0.0
    %v1054 = vsel %vm706, %v1040, 0.0
    %v1055 = vsel %vm707, %v1035, 0.0
    %v1056 = vsel %vm708, %v1030, 0.0
    %v1057 = vsel %vm705, %v1046, 0.0
    %v1058 = vsel %vm706, %v1041, 0.0
    %v1059 = vsel %vm707, %v1036, 0.0
    %v1060 = vsel %vm708, %v1031, 0.0
    %v1061 = vsel %vm705, %v1047, 0.0
    %v1062 = vsel %vm706, %v1042, 0.0
    %v1063 = vsel %vm707, %v1037, 0.0
    %v1064 = vsel %vm708, %v1032, 0.0
    %v1065 = vsel %vm705, %v1048, 0.0
    %v1066 = vsel %vm706, %v1043, 0.0
    %v1067 = vsel %vm707, %v1038, 0.0
    %v1068 = vsel %vm708, %v1033, 0.0
    %1069 = vset.pattern.permute.xlu0 8
    %1070 = vperm.xlu0 %1069, %v53
    %v1071 = vpop.permute.xlu0 %1070
    %1073 = vset.pattern.permute.xlu0 8
    %1074 = vperm.xlu0 %1073, %v54
    %v1075 = vpop.permute.xlu0 %1074
    %1077 = vset.pattern.permute.xlu0 8
    %1078 = vperm.xlu0 %1077, %v55
    %v1079 = vpop.permute.xlu0 %1078
    %1081 = vset.pattern.permute.xlu0 8
    %1082 = vperm.xlu0 %1081, %v56
    %v1083 = vpop.permute.xlu0 %1082
    %1085 = vset.pattern.permute.xlu0 8
    %1086 = vperm.xlu0 %1085, %v57
    %v1087 = vpop.permute.xlu0 %1086
    %v1089 = vmul.f32 %v1049, %v1071
    %v1090 = vmul.f32 %v1050, %v1071
    %v1091 = vmul.f32 %v1051, %v1071
    %v1092 = vmul.f32 %v1052, %v1071
    %v1093 = vmul.f32 %v1053, %v1075
    %v1094 = vmul.f32 %v1054, %v1075
    %v1095 = vmul.f32 %v1055, %v1075
    %v1096 = vmul.f32 %v1056, %v1075
    %v1097 = vmul.f32 %v1057, %v1079
    %v1098 = vmul.f32 %v1058, %v1079
    %v1099 = vmul.f32 %v1059, %v1079
    %v1100 = vmul.f32 %v1060, %v1079
    %v1101 = vmul.f32 %v1061, %v1083
    %v1102 = vmul.f32 %v1062, %v1083
    %v1103 = vmul.f32 %v1063, %v1083
    %v1104 = vmul.f32 %v1064, %v1083
    %v1105 = vmul.f32 %v1065, %v1087
    %v1106 = vmul.f32 %v1066, %v1087
    %v1107 = vmul.f32 %v1067, %v1087
    %v1108 = vmul.f32 %v1068, %v1087
    %v1109 = vadd.f32 %v969, %v1089
    %v1110 = vadd.f32 %v970, %v1090
    %v1111 = vadd.f32 %v971, %v1091
    %v1112 = vadd.f32 %v972, %v1092
    %v1113 = vadd.f32 %v973, %v1093
    %v1114 = vadd.f32 %v974, %v1094
    %v1115 = vadd.f32 %v975, %v1095
    %v1116 = vadd.f32 %v976, %v1096
    %v1117 = vadd.f32 %v977, %v1097
    %v1118 = vadd.f32 %v978, %v1098
    %v1119 = vadd.f32 %v979, %v1099
    %v1120 = vadd.f32 %v980, %v1100
    %v1121 = vadd.f32 %v981, %v1101
    %v1122 = vadd.f32 %v982, %v1102
    %v1123 = vadd.f32 %v983, %v1103
    %v1124 = vadd.f32 %v984, %v1104
    %v1125 = vadd.f32 %v985, %v1105
    %v1126 = vadd.f32 %v986, %v1106
    %v1127 = vadd.f32 %v987, %v1107
    %v1128 = vadd.f32 %v988, %v1108
    %1129 = vrot.lane.b32.xlu0 %v423, 119
    %v1130 = vpop.permute.xlu0 %1129
    %1131 = vrot.lane.b32.xlu0 %v427, 119
    %v1132 = vpop.permute.xlu0 %1131
    %1133 = vrot.lane.b32.xlu0 %v431, 119
    %v1134 = vpop.permute.xlu0 %1133
    %1135 = vrot.lane.b32.xlu0 %v435, 119
    %v1136 = vpop.permute.xlu0 %1135
    %1137 = vrot.lane.b32.xlu0 %v439, 119
    %v1138 = vpop.permute.xlu0 %1137
    %1139 = vrot.lane.b32.xlu0 %v424, 119
    %v1140 = vpop.permute.xlu0 %1139
    %1141 = vrot.lane.b32.xlu0 %v428, 119
    %v1142 = vpop.permute.xlu0 %1141
    %1143 = vrot.lane.b32.xlu0 %v432, 119
    %v1144 = vpop.permute.xlu0 %1143
    %1145 = vrot.lane.b32.xlu0 %v436, 119
    %v1146 = vpop.permute.xlu0 %1145
    %1147 = vrot.lane.b32.xlu0 %v440, 119
    %v1148 = vpop.permute.xlu0 %1147
    %1149 = vrot.lane.b32.xlu0 %v425, 119
    %v1150 = vpop.permute.xlu0 %1149
    %1151 = vrot.lane.b32.xlu0 %v429, 119
    %v1152 = vpop.permute.xlu0 %1151
    %1153 = vrot.lane.b32.xlu0 %v433, 119
    %v1154 = vpop.permute.xlu0 %1153
    %1155 = vrot.lane.b32.xlu0 %v437, 119
    %v1156 = vpop.permute.xlu0 %1155
    %1157 = vrot.lane.b32.xlu0 %v441, 119
    %v1158 = vpop.permute.xlu0 %1157
    %1159 = vrot.lane.b32.xlu0 %v426, 119
    %v1160 = vpop.permute.xlu0 %1159
    %1161 = vrot.lane.b32.xlu0 %v430, 119
    %v1162 = vpop.permute.xlu0 %1161
    %1163 = vrot.lane.b32.xlu0 %v434, 119
    %v1164 = vpop.permute.xlu0 %1163
    %1165 = vrot.lane.b32.xlu0 %v438, 119
    %v1166 = vpop.permute.xlu0 %1165
    %1167 = vrot.lane.b32.xlu0 %v442, 119
    %v1168 = vpop.permute.xlu0 %1167
    %v1169 = vsel %vm491, %v1150, %v1160
    %v1170 = vsel %vm491, %v1152, %v1162
    %v1171 = vsel %vm491, %v1154, %v1164
    %v1172 = vsel %vm491, %v1156, %v1166
    %v1173 = vsel %vm491, %v1158, %v1168
    %v1174 = vsel %vm491, %v1140, %v1150
    %v1175 = vsel %vm491, %v1142, %v1152
    %v1176 = vsel %vm491, %v1144, %v1154
    %v1177 = vsel %vm491, %v1146, %v1156
    %v1178 = vsel %vm491, %v1148, %v1158
    %v1179 = vsel %vm491, %v1130, %v1140
    %v1180 = vsel %vm491, %v1132, %v1142
    %v1181 = vsel %vm491, %v1134, %v1144
    %v1182 = vsel %vm491, %v1136, %v1146
    %v1183 = vsel %vm491, %v1138, %v1148
    %v1184 = vsel %vm491, %v1160, %v1130
    %v1185 = vsel %vm491, %v1162, %v1132
    %v1186 = vsel %vm491, %v1164, %v1134
    %v1187 = vsel %vm491, %v1166, %v1136
    %v1188 = vsel %vm491, %v1168, %v1138
    %v1189 = vsel %vm516, %v1179, 0.0
    %v1190 = vsel %vm517, %v1174, 0.0
    %v1191 = vsel %vm518, %v1169, 0.0
    %v1192 = vsel %vm519, %v1184, 0.0
    %v1193 = vsel %vm516, %v1180, 0.0
    %v1194 = vsel %vm517, %v1175, 0.0
    %v1195 = vsel %vm518, %v1170, 0.0
    %v1196 = vsel %vm519, %v1185, 0.0
    %v1197 = vsel %vm516, %v1181, 0.0
    %v1198 = vsel %vm517, %v1176, 0.0
    %v1199 = vsel %vm518, %v1171, 0.0
    %v1200 = vsel %vm519, %v1186, 0.0
    %v1201 = vsel %vm516, %v1182, 0.0
    %v1202 = vsel %vm517, %v1177, 0.0
    %v1203 = vsel %vm518, %v1172, 0.0
    %v1204 = vsel %vm519, %v1187, 0.0
    %v1205 = vsel %vm516, %v1183, 0.0
    %v1206 = vsel %vm517, %v1178, 0.0
    %v1207 = vsel %vm518, %v1173, 0.0
    %v1208 = vsel %vm519, %v1188, 0.0
    %1209 = vset.pattern.permute.xlu0 9
    %1210 = vperm.xlu0 %1209, %v53
    %v1211 = vpop.permute.xlu0 %1210
    %1213 = vset.pattern.permute.xlu0 9
    %1214 = vperm.xlu0 %1213, %v54
    %v1215 = vpop.permute.xlu0 %1214
    %1217 = vset.pattern.permute.xlu0 9
    %1218 = vperm.xlu0 %1217, %v55
    %v1219 = vpop.permute.xlu0 %1218
    %1221 = vset.pattern.permute.xlu0 9
    %1222 = vperm.xlu0 %1221, %v56
    %v1223 = vpop.permute.xlu0 %1222
    %1225 = vset.pattern.permute.xlu0 9
    %1226 = vperm.xlu0 %1225, %v57
    %v1227 = vpop.permute.xlu0 %1226
    %v1229 = vmul.f32 %v1189, %v1211
    %v1230 = vmul.f32 %v1190, %v1211
    %v1231 = vmul.f32 %v1191, %v1211
    %v1232 = vmul.f32 %v1192, %v1211
    %v1233 = vmul.f32 %v1193, %v1215
    %v1234 = vmul.f32 %v1194, %v1215
    %v1235 = vmul.f32 %v1195, %v1215
    %v1236 = vmul.f32 %v1196, %v1215
    %v1237 = vmul.f32 %v1197, %v1219
    %v1238 = vmul.f32 %v1198, %v1219
    %v1239 = vmul.f32 %v1199, %v1219
    %v1240 = vmul.f32 %v1200, %v1219
    %v1241 = vmul.f32 %v1201, %v1223
    %v1242 = vmul.f32 %v1202, %v1223
    %v1243 = vmul.f32 %v1203, %v1223
    %v1244 = vmul.f32 %v1204, %v1223
    %v1245 = vmul.f32 %v1205, %v1227
    %v1246 = vmul.f32 %v1206, %v1227
    %v1247 = vmul.f32 %v1207, %v1227
    %v1248 = vmul.f32 %v1208, %v1227
    %v1249 = vadd.f32 %v1109, %v1229
    %v1250 = vadd.f32 %v1110, %v1230
    %v1251 = vadd.f32 %v1111, %v1231
    %v1252 = vadd.f32 %v1112, %v1232
    %v1253 = vadd.f32 %v1113, %v1233
    %v1254 = vadd.f32 %v1114, %v1234
    %v1255 = vadd.f32 %v1115, %v1235
    %v1256 = vadd.f32 %v1116, %v1236
    %v1257 = vadd.f32 %v1117, %v1237
    %v1258 = vadd.f32 %v1118, %v1238
    %v1259 = vadd.f32 %v1119, %v1239
    %v1260 = vadd.f32 %v1120, %v1240
    %v1261 = vadd.f32 %v1121, %v1241
    %v1262 = vadd.f32 %v1122, %v1242
    %v1263 = vadd.f32 %v1123, %v1243
    %v1264 = vadd.f32 %v1124, %v1244
    %v1265 = vadd.f32 %v1125, %v1245
    %v1266 = vadd.f32 %v1126, %v1246
    %v1267 = vadd.f32 %v1127, %v1247
    %v1268 = vadd.f32 %v1128, %v1248
    %1269 = vset.pattern.permute.xlu0 10
    %1270 = vperm.xlu0 %1269, %v53
    %v1271 = vpop.permute.xlu0 %1270
    %1273 = vset.pattern.permute.xlu0 10
    %1274 = vperm.xlu0 %1273, %v54
    %v1275 = vpop.permute.xlu0 %1274
    %1277 = vset.pattern.permute.xlu0 10
    %1278 = vperm.xlu0 %1277, %v55
    %v1279 = vpop.permute.xlu0 %1278
    %1281 = vset.pattern.permute.xlu0 10
    %1282 = vperm.xlu0 %1281, %v56
    %v1283 = vpop.permute.xlu0 %1282
    %1285 = vset.pattern.permute.xlu0 10
    %1286 = vperm.xlu0 %1285, %v57
    %v1287 = vpop.permute.xlu0 %1286
    %v1289 = vmul.f32 %v423, %v1271
    %v1290 = vmul.f32 %v424, %v1271
    %v1291 = vmul.f32 %v425, %v1271
    %v1292 = vmul.f32 %v426, %v1271
    %v1293 = vmul.f32 %v427, %v1275
    %v1294 = vmul.f32 %v428, %v1275
    %v1295 = vmul.f32 %v429, %v1275
    %v1296 = vmul.f32 %v430, %v1275
    %v1297 = vmul.f32 %v431, %v1279
    %v1298 = vmul.f32 %v432, %v1279
    %v1299 = vmul.f32 %v433, %v1279
    %v1300 = vmul.f32 %v434, %v1279
    %v1301 = vmul.f32 %v435, %v1283
    %v1302 = vmul.f32 %v436, %v1283
    %v1303 = vmul.f32 %v437, %v1283
    %v1304 = vmul.f32 %v438, %v1283
    %v1305 = vmul.f32 %v439, %v1287
    %v1306 = vmul.f32 %v440, %v1287
    %v1307 = vmul.f32 %v441, %v1287
    %v1308 = vmul.f32 %v442, %v1287
    %v1309 = vadd.f32 %v1249, %v1289
    %v1310 = vadd.f32 %v1250, %v1290
    %v1311 = vadd.f32 %v1251, %v1291
    %v1312 = vadd.f32 %v1252, %v1292
    %v1313 = vadd.f32 %v1253, %v1293
    %v1314 = vadd.f32 %v1254, %v1294
    %v1315 = vadd.f32 %v1255, %v1295
    %v1316 = vadd.f32 %v1256, %v1296
    %v1317 = vadd.f32 %v1257, %v1297
    %v1318 = vadd.f32 %v1258, %v1298
    %v1319 = vadd.f32 %v1259, %v1299
    %v1320 = vadd.f32 %v1260, %v1300
    %v1321 = vadd.f32 %v1261, %v1301
    %v1322 = vadd.f32 %v1262, %v1302
    %v1323 = vadd.f32 %v1263, %v1303
    %v1324 = vadd.f32 %v1264, %v1304
    %v1325 = vadd.f32 %v1265, %v1305
    %v1326 = vadd.f32 %v1266, %v1306
    %v1327 = vadd.f32 %v1267, %v1307
    %v1328 = vadd.f32 %v1268, %v1308
    %1329 = vrot.lane.b32.xlu0 %v423, 9
    %v1330 = vpop.permute.xlu0 %1329
    %1331 = vrot.lane.b32.xlu0 %v427, 9
    %v1332 = vpop.permute.xlu0 %1331
    %1333 = vrot.lane.b32.xlu0 %v431, 9
    %v1334 = vpop.permute.xlu0 %1333
    %1335 = vrot.lane.b32.xlu0 %v435, 9
    %v1336 = vpop.permute.xlu0 %1335
    %1337 = vrot.lane.b32.xlu0 %v439, 9
    %v1338 = vpop.permute.xlu0 %1337
    %1339 = vrot.lane.b32.xlu0 %v424, 9
    %v1340 = vpop.permute.xlu0 %1339
    %1341 = vrot.lane.b32.xlu0 %v428, 9
    %v1342 = vpop.permute.xlu0 %1341
    %1343 = vrot.lane.b32.xlu0 %v432, 9
    %v1344 = vpop.permute.xlu0 %1343
    %1345 = vrot.lane.b32.xlu0 %v436, 9
    %v1346 = vpop.permute.xlu0 %1345
    %1347 = vrot.lane.b32.xlu0 %v440, 9
    %v1348 = vpop.permute.xlu0 %1347
    %1349 = vrot.lane.b32.xlu0 %v425, 9
    %v1350 = vpop.permute.xlu0 %1349
    %1351 = vrot.lane.b32.xlu0 %v429, 9
    %v1352 = vpop.permute.xlu0 %1351
    %1353 = vrot.lane.b32.xlu0 %v433, 9
    %v1354 = vpop.permute.xlu0 %1353
    %1355 = vrot.lane.b32.xlu0 %v437, 9
    %v1356 = vpop.permute.xlu0 %1355
    %1357 = vrot.lane.b32.xlu0 %v441, 9
    %v1358 = vpop.permute.xlu0 %1357
    %1359 = vrot.lane.b32.xlu0 %v426, 9
    %v1360 = vpop.permute.xlu0 %1359
    %1361 = vrot.lane.b32.xlu0 %v430, 9
    %v1362 = vpop.permute.xlu0 %1361
    %1363 = vrot.lane.b32.xlu0 %v434, 9
    %v1364 = vpop.permute.xlu0 %1363
    %1365 = vrot.lane.b32.xlu0 %v438, 9
    %v1366 = vpop.permute.xlu0 %1365
    %1367 = vrot.lane.b32.xlu0 %v442, 9
    %v1368 = vpop.permute.xlu0 %1367
    %v1369 = vsel %vm680, %v1350, %v1360
    %v1370 = vsel %vm680, %v1352, %v1362
    %v1371 = vsel %vm680, %v1354, %v1364
    %v1372 = vsel %vm680, %v1356, %v1366
    %v1373 = vsel %vm680, %v1358, %v1368
    %v1374 = vsel %vm680, %v1340, %v1350
    %v1375 = vsel %vm680, %v1342, %v1352
    %v1376 = vsel %vm680, %v1344, %v1354
    %v1377 = vsel %vm680, %v1346, %v1356
    %v1378 = vsel %vm680, %v1348, %v1358
    %v1379 = vsel %vm680, %v1330, %v1340
    %v1380 = vsel %vm680, %v1332, %v1342
    %v1381 = vsel %vm680, %v1334, %v1344
    %v1382 = vsel %vm680, %v1336, %v1346
    %v1383 = vsel %vm680, %v1338, %v1348
    %v1384 = vsel %vm680, %v1360, %v1330
    %v1385 = vsel %vm680, %v1362, %v1332
    %v1386 = vsel %vm680, %v1364, %v1334
    %v1387 = vsel %vm680, %v1366, %v1336
    %v1388 = vsel %vm680, %v1368, %v1338
    %v1389 = vsel %vm705, %v1384, 0.0
    %v1390 = vsel %vm706, %v1379, 0.0
    %v1391 = vsel %vm707, %v1374, 0.0
    %v1392 = vsel %vm708, %v1369, 0.0
    %v1393 = vsel %vm705, %v1385, 0.0
    %v1394 = vsel %vm706, %v1380, 0.0
    %v1395 = vsel %vm707, %v1375, 0.0
    %v1396 = vsel %vm708, %v1370, 0.0
    %v1397 = vsel %vm705, %v1386, 0.0
    %v1398 = vsel %vm706, %v1381, 0.0
    %v1399 = vsel %vm707, %v1376, 0.0
    %v1400 = vsel %vm708, %v1371, 0.0
    %v1401 = vsel %vm705, %v1387, 0.0
    %v1402 = vsel %vm706, %v1382, 0.0
    %v1403 = vsel %vm707, %v1377, 0.0
    %v1404 = vsel %vm708, %v1372, 0.0
    %v1405 = vsel %vm705, %v1388, 0.0
    %v1406 = vsel %vm706, %v1383, 0.0
    %v1407 = vsel %vm707, %v1378, 0.0
    %v1408 = vsel %vm708, %v1373, 0.0
    %1409 = vset.pattern.permute.xlu0 11
    %1410 = vperm.xlu0 %1409, %v53
    %v1411 = vpop.permute.xlu0 %1410
    %1413 = vset.pattern.permute.xlu0 11
    %1414 = vperm.xlu0 %1413, %v54
    %v1415 = vpop.permute.xlu0 %1414
    %1417 = vset.pattern.permute.xlu0 11
    %1418 = vperm.xlu0 %1417, %v55
    %v1419 = vpop.permute.xlu0 %1418
    %1421 = vset.pattern.permute.xlu0 11
    %1422 = vperm.xlu0 %1421, %v56
    %v1423 = vpop.permute.xlu0 %1422
    %1425 = vset.pattern.permute.xlu0 11
    %1426 = vperm.xlu0 %1425, %v57
    %v1427 = vpop.permute.xlu0 %1426
    %v1429 = vmul.f32 %v1389, %v1411
    %v1430 = vmul.f32 %v1390, %v1411
    %v1431 = vmul.f32 %v1391, %v1411
    %v1432 = vmul.f32 %v1392, %v1411
    %v1433 = vmul.f32 %v1393, %v1415
    %v1434 = vmul.f32 %v1394, %v1415
    %v1435 = vmul.f32 %v1395, %v1415
    %v1436 = vmul.f32 %v1396, %v1415
    %v1437 = vmul.f32 %v1397, %v1419
    %v1438 = vmul.f32 %v1398, %v1419
    %v1439 = vmul.f32 %v1399, %v1419
    %v1440 = vmul.f32 %v1400, %v1419
    %v1441 = vmul.f32 %v1401, %v1423
    %v1442 = vmul.f32 %v1402, %v1423
    %v1443 = vmul.f32 %v1403, %v1423
    %v1444 = vmul.f32 %v1404, %v1423
    %v1445 = vmul.f32 %v1405, %v1427
    %v1446 = vmul.f32 %v1406, %v1427
    %v1447 = vmul.f32 %v1407, %v1427
    %v1448 = vmul.f32 %v1408, %v1427
    %v1449 = vadd.f32 %v1309, %v1429
    %v1450 = vadd.f32 %v1310, %v1430
    %v1451 = vadd.f32 %v1311, %v1431
    %v1452 = vadd.f32 %v1312, %v1432
    %v1453 = vadd.f32 %v1313, %v1433
    %v1454 = vadd.f32 %v1314, %v1434
    %v1455 = vadd.f32 %v1315, %v1435
    %v1456 = vadd.f32 %v1316, %v1436
    %v1457 = vadd.f32 %v1317, %v1437
    %v1458 = vadd.f32 %v1318, %v1438
    %v1459 = vadd.f32 %v1319, %v1439
    %v1460 = vadd.f32 %v1320, %v1440
    %v1461 = vadd.f32 %v1321, %v1441
    %v1462 = vadd.f32 %v1322, %v1442
    %v1463 = vadd.f32 %v1323, %v1443
    %v1464 = vadd.f32 %v1324, %v1444
    %v1465 = vadd.f32 %v1325, %v1445
    %v1466 = vadd.f32 %v1326, %v1446
    %v1467 = vadd.f32 %v1327, %v1447
    %v1468 = vadd.f32 %v1328, %v1448
    %1469 = vset.pattern.permute.xlu0 12
    %1470 = vperm.xlu0 %1469, %v53
    %v1471 = vpop.permute.xlu0 %1470
    %1473 = vset.pattern.permute.xlu0 12
    %1474 = vperm.xlu0 %1473, %v54
    %v1475 = vpop.permute.xlu0 %1474
    %1477 = vset.pattern.permute.xlu0 12
    %1478 = vperm.xlu0 %1477, %v55
    %v1479 = vpop.permute.xlu0 %1478
    %1481 = vset.pattern.permute.xlu0 12
    %1482 = vperm.xlu0 %1481, %v56
    %v1483 = vpop.permute.xlu0 %1482
    %1485 = vset.pattern.permute.xlu0 12
    %1486 = vperm.xlu0 %1485, %v57
    %v1487 = vpop.permute.xlu0 %1486
    %v1489 = vadd.f32 %v1449, %v1471
    %v1490 = vadd.f32 %v1450, %v1471
    %v1491 = vadd.f32 %v1451, %v1471
    %v1492 = vadd.f32 %v1452, %v1471
    %v1493 = vadd.f32 %v1453, %v1475
    %v1494 = vadd.f32 %v1454, %v1475
    %v1495 = vadd.f32 %v1455, %v1475
    %v1496 = vadd.f32 %v1456, %v1475
    %v1497 = vadd.f32 %v1457, %v1479
    %v1498 = vadd.f32 %v1458, %v1479
    %v1499 = vadd.f32 %v1459, %v1479
    %v1500 = vadd.f32 %v1460, %v1479
    %v1501 = vadd.f32 %v1461, %v1483
    %v1502 = vadd.f32 %v1462, %v1483
    %v1503 = vadd.f32 %v1463, %v1483
    %v1504 = vadd.f32 %v1464, %v1483
    %v1505 = vadd.f32 %v1465, %v1487
    %v1506 = vadd.f32 %v1466, %v1487
    %v1507 = vadd.f32 %v1467, %v1487
    %v1508 = vadd.f32 %v1468, %v1487
    %v1509 = vld [vmem:[#allocation5 + $0x28] sm:$0xff]
    %v1510 = vld [vmem:[#allocation5 + $0x30] sm:$0xff]
    %v1511 = vld [vmem:[#allocation5 + $0x38] sm:$0xff]
    %v1512 = vld [vmem:[#allocation5 + $0x40] sm:$0xff]
    %v1513 = vld [vmem:[#allocation5 + $0x48] sm:$0xf]
    %v1514 = vpack.c.bf16 %v1510, %v1509
    %v1515 = vpack.c.bf16 %v1512, %v1511
    %v1516 = vpack.c.bf16 %v1513, %v1513
    %v1517 = vpack.c.bf16 %v1493, %v1489
    %v1518 = vpack.c.bf16 %v1494, %v1490
    %v1519 = vpack.c.bf16 %v1495, %v1491
    %v1520 = vpack.c.bf16 %v1496, %v1492
    %v1521 = vpack.c.bf16 %v1501, %v1497
    %v1522 = vpack.c.bf16 %v1502, %v1498
    %v1523 = vpack.c.bf16 %v1503, %v1499
    %v1524 = vpack.c.bf16 %v1504, %v1500
    %v1525 = vpack.c.bf16 %v1505, %v1505
    %v1526 = vpack.c.bf16 %v1506, %v1506
    %v1527 = vpack.c.bf16 %v1507, %v1507
    %v1528 = vpack.c.bf16 %v1508, %v1508
    %1530 = vset.pattern.permute.xlu0 36
    %1531 = vperm.xlu0 %1530, %v1509
    %v1532 = vpop.permute.xlu0 %1531
    %1535 = vset.pattern.permute.xlu0 36
    %1536 = vperm.xlu0 %1535, %v1510
    %v1537 = vpop.permute.xlu0 %1536
    %1540 = vset.pattern.permute.xlu0 36
    %1541 = vperm.xlu0 %1540, %v1511
    %v1542 = vpop.permute.xlu0 %1541
    %1545 = vset.pattern.permute.xlu0 36
    %1546 = vperm.xlu0 %1545, %v1512
    %v1547 = vpop.permute.xlu0 %1546
    %1550 = vset.pattern.permute.xlu0 36
    %1551 = vperm.xlu0 %1550, %v1513
    %v1552 = vpop.permute.xlu0 %1551
    %vm1554 = vcmask 293888
    %v1556 = vsel %vm1554, %v1514, 0
    %v1559 = vsel %vm1554, %v1515, 0
    %v1562 = vsel %vm1554, %v1516, 0
    %vm1564 = vcmask 1041408
    %v1566 = vsel %vm1564, %v1525, 0
    %v1569 = vsel %vm1564, %v1526, 0
    %v1572 = vsel %vm1564, %v1527, 0
    %v1575 = vsel %vm1564, %v1528, 0
    %1577 = vmatprep.subr.bf16.mxu0 %v1518
    %1578 = vmatpush1.bf16.msra.mxu0 %v1517
    %1579 = vmatprep.subr.bf16.mxu0 %v1522
    %1580 = vmatpush1.bf16.msra.mxu0 %v1521
    %1581 = vmatprep.subr.bf16.mxu0 %v1569
    %1582 = vmatpush1.bf16.msra.mxu0 %v1566
    %1583 = vmatprep.subr.bf16.mxu0 0
    %1584 = vmatpush1.bf16.msra.mxu0 0
    %1585 = vmatprep.subr.bf16.mxu0 0
    %1586 = vmatpush1.bf16.msra.mxu0 0
    %1587 = vmatprep.subr.bf16.mxu0 0
    %1588 = vmatpush1.bf16.msra.mxu0 0
    %1589 = vmatprep.subr.bf16.mxu0 0
    %1590 = vmatpush1.bf16.msra.mxu0 0
    %1591 = vmatprep.subr.bf16.mxu0 0
    %1592 = vmatpush1.bf16.msra.mxu0 0
    %1593 = vmatprep.subr.bf16.mxu0 0
    %1594 = vmatpush1.bf16.msra.mxu0 0
    %1595 = vmatprep.subr.bf16.mxu0 0
    %1596 = vmatpush1.bf16.msra.mxu0 0
    %1597 = vmatprep.subr.bf16.mxu0 0
    %1598 = vmatpush1.bf16.msra.mxu0 0
    %1599 = vmatprep.subr.bf16.mxu0 0
    %1600 = vmatpush1.bf16.msra.mxu0 0
    %1601 = vmatprep.subr.bf16.mxu0 0
    %1602 = vmatpush1.bf16.msra.mxu0 0
    %1603 = vmatprep.subr.bf16.mxu0 0
    %1604 = vmatpush1.bf16.msra.mxu0 0
    %1605 = vmatprep.subr.bf16.mxu0 0
    %1606 = vmatpush1.bf16.msra.mxu0 0
    %1607 = vmatprep.subr.bf16.mxu0 0
    %1608 = vmatpush1.bf16.msra.mxu0 0
    %1609 = vmatprep.mubr.bf16.mxu0 0
    %1610 = vmatmul.mubr.bf16.gmra.mrb[0].mxu0 %v1556
    %v1611 = vpop.f32.mrb[0].mxu0
    %v1612 = vadd.f32 %v1532, %v1611
    %v1613 = vpop.f32.mrb[0].mxu0
    %v1614 = vadd.f32 %v1532, %v1613
    %v1615 = vpop.f32.mrb[0].mxu0
    %v1616 = vadd.f32 %v1537, %v1615
    %v1617 = vpop.f32.mrb[0].mxu0
    %v1618 = vadd.f32 %v1537, %v1617
    %1619 = vmatprep.mubr.bf16.mxu0 0
    %1620 = vmatmul.mubr.bf16.gmra.mrb[0].mxu0 %v1559
    %v1621 = vpop.f32.mrb[0].mxu0
    %v1622 = vadd.f32 %v1542, %v1621
    %v1623 = vpop.f32.mrb[0].mxu0
    %v1624 = vadd.f32 %v1542, %v1623
    %v1625 = vpop.f32.mrb[0].mxu0
    %v1626 = vadd.f32 %v1547, %v1625
    %v1627 = vpop.f32.mrb[0].mxu0
    %v1628 = vadd.f32 %v1547, %v1627
    %1629 = vmatprep.mubr.bf16.mxu0 0
    %1630 = vmatmul.mubr.bf16.gmra.mrb[0].mxu0 %v1562
    %v1631 = vpop.f32.mrb[0].mxu0
    %v1632 = vadd.f32 %v1552, %v1631
    %v1633 = vpop.f32.mrb[0].mxu0
    %v1634 = vadd.f32 %v1552, %v1633
    %v1635 = vpop.f32.mrb[0].mxu0
    %v1636 = vpop.f32.mrb[0].mxu0
    %1637 = vdwg.mxu0
    %1638 = vmatprep.subr.bf16.mxu0 %v1520
    %1639 = vmatpush1.bf16.msra.mxu0 %v1519
    %1640 = vmatprep.subr.bf16.mxu0 %v1524
    %1641 = vmatpush1.bf16.msra.mxu0 %v1523
    %1642 = vmatprep.subr.bf16.mxu0 %v1575
    %1643 = vmatpush1.bf16.msra.mxu0 %v1572
    %1644 = vmatprep.subr.bf16.mxu0 0
    %1645 = vmatpush1.bf16.msra.mxu0 0
    %1646 = vmatprep.subr.bf16.mxu0 0
    %1647 = vmatpush1.bf16.msra.mxu0 0
    %1648 = vmatprep.subr.bf16.mxu0 0
    %1649 = vmatpush1.bf16.msra.mxu0 0
    %1650 = vmatprep.subr.bf16.mxu0 0
    %1651 = vmatpush1.bf16.msra.mxu0 0
    %1652 = vmatprep.subr.bf16.mxu0 0
    %1653 = vmatpush1.bf16.msra.mxu0 0
    %1654 = vmatprep.subr.bf16.mxu0 0
    %1655 = vmatpush1.bf16.msra.mxu0 0
    %1656 = vmatprep.subr.bf16.mxu0 0
    %1657 = vmatpush1.bf16.msra.mxu0 0
    %1658 = vmatprep.subr.bf16.mxu0 0
    %1659 = vmatpush1.bf16.msra.mxu0 0
    %1660 = vmatprep.subr.bf16.mxu0 0
    %1661 = vmatpush1.bf16.msra.mxu0 0
    %1662 = vmatprep.subr.bf16.mxu0 0
    %1663 = vmatpush1.bf16.msra.mxu0 0
    %1664 = vmatprep.subr.bf16.mxu0 0
    %1665 = vmatpush1.bf16.msra.mxu0 0
    %1666 = vmatprep.subr.bf16.mxu0 0
    %1667 = vmatpush1.bf16.msra.mxu0 0
    %1668 = vmatprep.subr.bf16.mxu0 0
    %1669 = vmatpush1.bf16.msra.mxu0 0
    %1670 = vmatprep.mubr.bf16.mxu0 0
    %1671 = vmatmul.mubr.bf16.gmra.mrb[0].mxu0 %v1556
    %v1672 = vpop.f32.mrb[0].mxu0
    %v1673 = vadd.f32 %v1532, %v1672
    %v1674 = vpop.f32.mrb[0].mxu0
    %v1675 = vadd.f32 %v1532, %v1674
    %v1676 = vpop.f32.mrb[0].mxu0
    %v1677 = vadd.f32 %v1537, %v1676
    %v1678 = vpop.f32.mrb[0].mxu0
    %v1679 = vadd.f32 %v1537, %v1678
    %1680 = vmatprep.mubr.bf16.mxu0 0
    %1681 = vmatmul.mubr.bf16.gmra.mrb[0].mxu0 %v1559
    %v1682 = vpop.f32.mrb[0].mxu0
    %v1683 = vadd.f32 %v1542, %v1682
    %v1684 = vpop.f32.mrb[0].mxu0
    %v1685 = vadd.f32 %v1542, %v1684
    %v1686 = vpop.f32.mrb[0].mxu0
    %v1687 = vadd.f32 %v1547, %v1686
    %v1688 = vpop.f32.mrb[0].mxu0
    %v1689 = vadd.f32 %v1547, %v1688
    %1690 = vmatprep.mubr.bf16.mxu0 0
    %1691 = vmatmul.mubr.bf16.gmra.mrb[0].mxu0 %v1562
    %v1692 = vpop.f32.mrb[0].mxu0
    %v1693 = vadd.f32 %v1552, %v1692
    %v1694 = vpop.f32.mrb[0].mxu0
    %v1695 = vadd.f32 %v1552, %v1694
    %v1696 = vpop.f32.mrb[0].mxu0
    %v1697 = vpop.f32.mrb[0].mxu0
    %1698 = vdwg.mxu0
    %1699 = vrot.lane.b32.xlu0 %v1612, 80
    %v1700 = vpop.permute.xlu0 %1699
    %1701 = vrot.lane.b32.xlu0 %v1616, 80
    %v1702 = vpop.permute.xlu0 %1701
    %1703 = vrot.lane.b32.xlu0 %v1622, 80
    %v1704 = vpop.permute.xlu0 %1703
    %1705 = vrot.lane.b32.xlu0 %v1626, 80
    %v1706 = vpop.permute.xlu0 %1705
    %1707 = vrot.lane.b32.xlu0 %v1632, 80
    %v1708 = vpop.permute.xlu0 %1707
    %1709 = vrot.lane.b32.xlu0 %v1614, 80
    %v1710 = vpop.permute.xlu0 %1709
    %1711 = vrot.lane.b32.xlu0 %v1618, 80
    %v1712 = vpop.permute.xlu0 %1711
    %1713 = vrot.lane.b32.xlu0 %v1624, 80
    %v1714 = vpop.permute.xlu0 %1713
    %1715 = vrot.lane.b32.xlu0 %v1628, 80
    %v1716 = vpop.permute.xlu0 %1715
    %1717 = vrot.lane.b32.xlu0 %v1634, 80
    %v1718 = vpop.permute.xlu0 %1717
    %1719 = vrot.lane.b32.xlu0 %v1673, 80
    %v1720 = vpop.permute.xlu0 %1719
    %1721 = vrot.lane.b32.xlu0 %v1677, 80
    %v1722 = vpop.permute.xlu0 %1721
    %1723 = vrot.lane.b32.xlu0 %v1683, 80
    %v1724 = vpop.permute.xlu0 %1723
    %1725 = vrot.lane.b32.xlu0 %v1687, 80
    %v1726 = vpop.permute.xlu0 %1725
    %1727 = vrot.lane.b32.xlu0 %v1693, 80
    %v1728 = vpop.permute.xlu0 %1727
    %1729 = vrot.lane.b32.xlu0 %v1675, 80
    %v1730 = vpop.permute.xlu0 %1729
    %1731 = vrot.lane.b32.xlu0 %v1679, 80
    %v1732 = vpop.permute.xlu0 %1731
    %1733 = vrot.lane.b32.xlu0 %v1685, 80
    %v1734 = vpop.permute.xlu0 %1733
    %1735 = vrot.lane.b32.xlu0 %v1689, 80
    %v1736 = vpop.permute.xlu0 %1735
    %1737 = vrot.lane.b32.xlu0 %v1695, 80
    %v1738 = vpop.permute.xlu0 %1737
    %vm1739 = vcmp.lt.s32.totalorder %v41, 80
    %v1740 = vsel %vm1739, %v1720, %v1730
    %v1741 = vsel %vm1739, %v1722, %v1732
    %v1742 = vsel %vm1739, %v1724, %v1734
    %v1743 = vsel %vm1739, %v1726, %v1736
    %v1744 = vsel %vm1739, %v1728, %v1738
    %v1745 = vsel %vm1739, %v1710, %v1720
    %v1746 = vsel %vm1739, %v1712, %v1722
    %v1747 = vsel %vm1739, %v1714, %v1724
    %v1748 = vsel %vm1739, %v1716, %v1726
    %v1749 = vsel %vm1739, %v1718, %v1728
    %v1750 = vsel %vm1739, %v1700, %v1710
    %v1751 = vsel %vm1739, %v1702, %v1712
    %v1752 = vsel %vm1739, %v1704, %v1714
    %v1753 = vsel %vm1739, %v1706, %v1716
    %v1754 = vsel %vm1739, %v1708, %v1718
    %v1755 = vsel %vm1739, %v1730, %v1700
    %v1756 = vsel %vm1739, %v1732, %v1702
    %v1757 = vsel %vm1739, %v1734, %v1704
    %v1758 = vsel %vm1739, %v1736, %v1706
    %v1759 = vsel %vm1739, %v1738, %v1708
    %vm1760 = vcmp.lt.s32.totalorder %v45, 208
    %vm1761 = vcmp.lt.s32.totalorder %v46, 208
    %vm1762 = vcmp.lt.s32.totalorder %v47, 208
    %vm1763 = vcmp.lt.s32.totalorder %v48, 208
    %v1764 = vsel %vm1760, 1, 0
    %v1765 = vsel %vm1761, 1, 0
    %v1766 = vsel %vm1762, 1, 0
    %v1767 = vsel %vm1763, 1, 0
    %vm1768 = vcmp.eq.s32.totalorder %v1764, 1
    %vm1769 = vcmp.eq.s32.totalorder %v1765, 1
    %vm1770 = vcmp.eq.s32.totalorder %v1766, 1
    %vm1771 = vcmp.eq.s32.totalorder %v1767, 1
    %v1772 = vsel %vm1768, %v1750, 0.0
    %v1773 = vsel %vm1769, %v1745, 0.0
    %v1774 = vsel %vm1770, %v1740, 0.0
    %v1775 = vsel %vm1771, %v1755, 0.0
    %v1776 = vsel %vm1768, %v1751, 0.0
    %v1777 = vsel %vm1769, %v1746, 0.0
    %v1778 = vsel %vm1770, %v1741, 0.0
    %v1779 = vsel %vm1771, %v1756, 0.0
    %v1780 = vsel %vm1768, %v1752, 0.0
    %v1781 = vsel %vm1769, %v1747, 0.0
    %v1782 = vsel %vm1770, %v1742, 0.0
    %v1783 = vsel %vm1771, %v1757, 0.0
    %v1784 = vsel %vm1768, %v1753, 0.0
    %v1785 = vsel %vm1769, %v1748, 0.0
    %v1786 = vsel %vm1770, %v1743, 0.0
    %v1787 = vsel %vm1771, %v1758, 0.0
    %v1788 = vsel %vm1768, %v1754, 0.0
    %v1789 = vsel %vm1769, %v1749, 0.0
    %v1790 = vsel %vm1770, %v1744, 0.0
    %v1791 = vsel %vm1771, %v1759, 0.0
    %1792 = vrot.lane.b32.xlu0 %v1612, 48
    %v1793 = vpop.permute.xlu0 %1792
    %1794 = vrot.lane.b32.xlu0 %v1616, 48
    %v1795 = vpop.permute.xlu0 %1794
    %1796 = vrot.lane.b32.xlu0 %v1622, 48
    %v1797 = vpop.permute.xlu0 %1796
    %1798 = vrot.lane.b32.xlu0 %v1626, 48
    %v1799 = vpop.permute.xlu0 %1798
    %1800 = vrot.lane.b32.xlu0 %v1632, 48
    %v1801 = vpop.permute.xlu0 %1800
    %1802 = vrot.lane.b32.xlu0 %v1614, 48
    %v1803 = vpop.permute.xlu0 %1802
    %1804 = vrot.lane.b32.xlu0 %v1618, 48
    %v1805 = vpop.permute.xlu0 %1804
    %1806 = vrot.lane.b32.xlu0 %v1624, 48
    %v1807 = vpop.permute.xlu0 %1806
    %1808 = vrot.lane.b32.xlu0 %v1628, 48
    %v1809 = vpop.permute.xlu0 %1808
    %1810 = vrot.lane.b32.xlu0 %v1634, 48
    %v1811 = vpop.permute.xlu0 %1810
    %1812 = vrot.lane.b32.xlu0 %v1673, 48
    %v1813 = vpop.permute.xlu0 %1812
    %1814 = vrot.lane.b32.xlu0 %v1677, 48
    %v1815 = vpop.permute.xlu0 %1814
    %1816 = vrot.lane.b32.xlu0 %v1683, 48
    %v1817 = vpop.permute.xlu0 %1816
    %1818 = vrot.lane.b32.xlu0 %v1687, 48
    %v1819 = vpop.permute.xlu0 %1818
    %1820 = vrot.lane.b32.xlu0 %v1693, 48
    %v1821 = vpop.permute.xlu0 %1820
    %1822 = vrot.lane.b32.xlu0 %v1675, 48
    %v1823 = vpop.permute.xlu0 %1822
    %1824 = vrot.lane.b32.xlu0 %v1679, 48
    %v1825 = vpop.permute.xlu0 %1824
    %1826 = vrot.lane.b32.xlu0 %v1685, 48
    %v1827 = vpop.permute.xlu0 %1826
    %1828 = vrot.lane.b32.xlu0 %v1689, 48
    %v1829 = vpop.permute.xlu0 %1828
    %1830 = vrot.lane.b32.xlu0 %v1695, 48
    %v1831 = vpop.permute.xlu0 %1830
    %vm1832 = vcmp.lt.s32.totalorder %v41, 48
    %v1833 = vsel %vm1832, %v1813, %v1823
    %v1834 = vsel %vm1832, %v1815, %v1825
    %v1835 = vsel %vm1832, %v1817, %v1827
    %v1836 = vsel %vm1832, %v1819, %v1829
    %v1837 = vsel %vm1832, %v1821, %v1831
    %v1838 = vsel %vm1832, %v1803, %v1813
    %v1839 = vsel %vm1832, %v1805, %v1815
    %v1840 = vsel %vm1832, %v1807, %v1817
    %v1841 = vsel %vm1832, %v1809, %v1819
    %v1842 = vsel %vm1832, %v1811, %v1821
    %v1843 = vsel %vm1832, %v1793, %v1803
    %v1844 = vsel %vm1832, %v1795, %v1805
    %v1845 = vsel %vm1832, %v1797, %v1807
    %v1846 = vsel %vm1832, %v1799, %v1809
    %v1847 = vsel %vm1832, %v1801, %v1811
    %v1848 = vsel %vm1832, %v1823, %v1793
    %v1849 = vsel %vm1832, %v1825, %v1795
    %v1850 = vsel %vm1832, %v1827, %v1797
    %v1851 = vsel %vm1832, %v1829, %v1799
    %v1852 = vsel %vm1832, %v1831, %v1801
    %vm1853 = vcmp.ge.s32.totalorder %v45, 48
    %vm1854 = vcmp.ge.s32.totalorder %v46, 48
    %vm1855 = vcmp.ge.s32.totalorder %v47, 48
    %vm1856 = vcmp.ge.s32.totalorder %v48, 48
    %v1857 = vsel %vm1853, 1, 0
    %v1858 = vsel %vm1854, 1, 0
    %v1859 = vsel %vm1855, 1, 0
    %v1860 = vsel %vm1856, 1, 0
    %vm1861 = vcmp.eq.s32.totalorder %v1857, 1
    %vm1862 = vcmp.eq.s32.totalorder %v1858, 1
    %vm1863 = vcmp.eq.s32.totalorder %v1859, 1
    %vm1864 = vcmp.eq.s32.totalorder %v1860, 1
    %v1865 = vsel %vm1861, %v1848, 0.0
    %v1866 = vsel %vm1862, %v1843, 0.0
    %v1867 = vsel %vm1863, %v1838, 0.0
    %v1868 = vsel %vm1864, %v1833, 0.0
    %v1869 = vsel %vm1861, %v1849, 0.0
    %v1870 = vsel %vm1862, %v1844, 0.0
    %v1871 = vsel %vm1863, %v1839, 0.0
    %v1872 = vsel %vm1864, %v1834, 0.0
    %v1873 = vsel %vm1861, %v1850, 0.0
    %v1874 = vsel %vm1862, %v1845, 0.0
    %v1875 = vsel %vm1863, %v1840, 0.0
    %v1876 = vsel %vm1864, %v1835, 0.0
    %v1877 = vsel %vm1861, %v1851, 0.0
    %v1878 = vsel %vm1862, %v1846, 0.0
    %v1879 = vsel %vm1863, %v1841, 0.0
    %v1880 = vsel %vm1864, %v1836, 0.0
    %v1881 = vsel %vm1861, %v1852, 0.0
    %v1882 = vsel %vm1862, %v1847, 0.0
    %v1883 = vsel %vm1863, %v1842, 0.0
    %v1884 = vsel %vm1864, %v1837, 0.0
    %vm1885 = vcmp.lt.s32.totalorder %v49, 13
    %vm1886 = vcmp.lt.s32.totalorder %v50, 13
    %vm1887 = vcmp.lt.s32.totalorder %v51, 13
    %vm1888 = vcmp.lt.s32.totalorder %v52, 13
    %vm1889 = vcmp.ge.s32.totalorder %v49, 3
    %vm1890 = vcmp.ge.s32.totalorder %v50, 3
    %vm1891 = vcmp.ge.s32.totalorder %v51, 3
    %vm1892 = vcmp.ge.s32.totalorder %v52, 3
    %1893 = vrot.lane.b32.xlu0 %v1772, 125
    %v1894 = vpop.permute.xlu0 %1893
    %1895 = vrot.lane.b32.xlu0 %v1776, 125
    %v1896 = vpop.permute.xlu0 %1895
    %1897 = vrot.lane.b32.xlu0 %v1780, 125
    %v1898 = vpop.permute.xlu0 %1897
    %1899 = vrot.lane.b32.xlu0 %v1784, 125
    %v1900 = vpop.permute.xlu0 %1899
    %1901 = vrot.lane.b32.xlu0 %v1788, 125
    %v1902 = vpop.permute.xlu0 %1901
    %1903 = vrot.lane.b32.xlu0 %v1773, 125
    %v1904 = vpop.permute.xlu0 %1903
    %1905 = vrot.lane.b32.xlu0 %v1777, 125
    %v1906 = vpop.permute.xlu0 %1905
    %1907 = vrot.lane.b32.xlu0 %v1781, 125
    %v1908 = vpop.permute.xlu0 %1907
    %1909 = vrot.lane.b32.xlu0 %v1785, 125
    %v1910 = vpop.permute.xlu0 %1909
    %1911 = vrot.lane.b32.xlu0 %v1789, 125
    %v1912 = vpop.permute.xlu0 %1911
    %1913 = vrot.lane.b32.xlu0 %v1774, 125
    %v1914 = vpop.permute.xlu0 %1913
    %1915 = vrot.lane.b32.xlu0 %v1778, 125
    %v1916 = vpop.permute.xlu0 %1915
    %1917 = vrot.lane.b32.xlu0 %v1782, 125
    %v1918 = vpop.permute.xlu0 %1917
    %1919 = vrot.lane.b32.xlu0 %v1786, 125
    %v1920 = vpop.permute.xlu0 %1919
    %1921 = vrot.lane.b32.xlu0 %v1790, 125
    %v1922 = vpop.permute.xlu0 %1921
    %1923 = vrot.lane.b32.xlu0 %v1775, 125
    %v1924 = vpop.permute.xlu0 %1923
    %1925 = vrot.lane.b32.xlu0 %v1779, 125
    %v1926 = vpop.permute.xlu0 %1925
    %1927 = vrot.lane.b32.xlu0 %v1783, 125
    %v1928 = vpop.permute.xlu0 %1927
    %1929 = vrot.lane.b32.xlu0 %v1787, 125
    %v1930 = vpop.permute.xlu0 %1929
    %1931 = vrot.lane.b32.xlu0 %v1791, 125
    %v1932 = vpop.permute.xlu0 %1931
    %vm1933 = vcmp.lt.s32.totalorder %v41, 125
    %v1934 = vsel %vm1933, %v1914, %v1924
    %v1935 = vsel %vm1933, %v1916, %v1926
    %v1936 = vsel %vm1933, %v1918, %v1928
    %v1937 = vsel %vm1933, %v1920, %v1930
    %v1938 = vsel %vm1933, %v1922, %v1932
    %v1939 = vsel %vm1933, %v1904, %v1914
    %v1940 = vsel %vm1933, %v1906, %v1916
    %v1941 = vsel %vm1933, %v1908, %v1918
    %v1942 = vsel %vm1933, %v1910, %v1920
    %v1943 = vsel %vm1933, %v1912, %v1922
    %v1944 = vsel %vm1933, %v1894, %v1904
    %v1945 = vsel %vm1933, %v1896, %v1906
    %v1946 = vsel %vm1933, %v1898, %v1908
    %v1947 = vsel %vm1933, %v1900, %v1910
    %v1948 = vsel %vm1933, %v1902, %v1912
    %v1949 = vsel %vm1933, %v1924, %v1894
    %v1950 = vsel %vm1933, %v1926, %v1896
    %v1951 = vsel %vm1933, %v1928, %v1898
    %v1952 = vsel %vm1933, %v1930, %v1900
    %v1953 = vsel %vm1933, %v1932, %v1902
    %v1954 = vsel %vm1885, 1, 0
    %v1955 = vsel %vm1886, 1, 0
    %v1956 = vsel %vm1887, 1, 0
    %v1957 = vsel %vm1888, 1, 0
    %vm1958 = vcmp.eq.s32.totalorder %v1954, 1
    %vm1959 = vcmp.eq.s32.totalorder %v1955, 1
    %vm1960 = vcmp.eq.s32.totalorder %v1956, 1
    %vm1961 = vcmp.eq.s32.totalorder %v1957, 1
    %v1962 = vsel %vm1958, %v1944, 0.0
    %v1963 = vsel %vm1959, %v1939, 0.0
    %v1964 = vsel %vm1960, %v1934, 0.0
    %v1965 = vsel %vm1961, %v1949, 0.0
    %v1966 = vsel %vm1958, %v1945, 0.0
    %v1967 = vsel %vm1959, %v1940, 0.0
    %v1968 = vsel %vm1960, %v1935, 0.0
    %v1969 = vsel %vm1961, %v1950, 0.0
    %v1970 = vsel %vm1958, %v1946, 0.0
    %v1971 = vsel %vm1959, %v1941, 0.0
    %v1972 = vsel %vm1960, %v1936, 0.0
    %v1973 = vsel %vm1961, %v1951, 0.0
    %v1974 = vsel %vm1958, %v1947, 0.0
    %v1975 = vsel %vm1959, %v1942, 0.0
    %v1976 = vsel %vm1960, %v1937, 0.0
    %v1977 = vsel %vm1961, %v1952, 0.0
    %v1978 = vsel %vm1958, %v1948, 0.0
    %v1979 = vsel %vm1959, %v1943, 0.0
    %v1980 = vsel %vm1960, %v1938, 0.0
    %v1981 = vsel %vm1961, %v1953, 0.0
    %1982 = vset.pattern.permute.xlu0 37
    %1983 = vperm.xlu0 %1982, %v1509
    %v1984 = vpop.permute.xlu0 %1983
    %1986 = vset.pattern.permute.xlu0 37
    %1987 = vperm.xlu0 %1986, %v1510
    %v1988 = vpop.permute.xlu0 %1987
    %1990 = vset.pattern.permute.xlu0 37
    %1991 = vperm.xlu0 %1990, %v1511
    %v1992 = vpop.permute.xlu0 %1991
    %1994 = vset.pattern.permute.xlu0 37
    %1995 = vperm.xlu0 %1994, %v1512
    %v1996 = vpop.permute.xlu0 %1995
    %1998 = vset.pattern.permute.xlu0 37
    %1999 = vperm.xlu0 %1998, %v1513
    %v2000 = vpop.permute.xlu0 %1999
    %v2002 = vmul.f32 %v1962, %v1984
    %v2003 = vmul.f32 %v1963, %v1984
    %v2004 = vmul.f32 %v1964, %v1984
    %v2005 = vmul.f32 %v1965, %v1984
    %v2006 = vmul.f32 %v1966, %v1988
    %v2007 = vmul.f32 %v1967, %v1988
    %v2008 = vmul.f32 %v1968, %v1988
    %v2009 = vmul.f32 %v1969, %v1988
    %v2010 = vmul.f32 %v1970, %v1992
    %v2011 = vmul.f32 %v1971, %v1992
    %v2012 = vmul.f32 %v1972, %v1992
    %v2013 = vmul.f32 %v1973, %v1992
    %v2014 = vmul.f32 %v1974, %v1996
    %v2015 = vmul.f32 %v1975, %v1996
    %v2016 = vmul.f32 %v1976, %v1996
    %v2017 = vmul.f32 %v1977, %v1996
    %v2018 = vmul.f32 %v1978, %v2000
    %v2019 = vmul.f32 %v1979, %v2000
    %v2020 = vmul.f32 %v1980, %v2000
    %v2021 = vmul.f32 %v1981, %v2000
    %2022 = vset.pattern.permute.xlu0 38
    %2023 = vperm.xlu0 %2022, %v1509
    %v2024 = vpop.permute.xlu0 %2023
    %2026 = vset.pattern.permute.xlu0 38
    %2027 = vperm.xlu0 %2026, %v1510
    %v2028 = vpop.permute.xlu0 %2027
    %2030 = vset.pattern.permute.xlu0 38
    %2031 = vperm.xlu0 %2030, %v1511
    %v2032 = vpop.permute.xlu0 %2031
    %2034 = vset.pattern.permute.xlu0 38
    %2035 = vperm.xlu0 %2034, %v1512
    %v2036 = vpop.permute.xlu0 %2035
    %2038 = vset.pattern.permute.xlu0 38
    %2039 = vperm.xlu0 %2038, %v1513
    %v2040 = vpop.permute.xlu0 %2039
    %v2042 = vmul.f32 %v1772, %v2024
    %v2043 = vmul.f32 %v1773, %v2024
    %v2044 = vmul.f32 %v1774, %v2024
    %v2045 = vmul.f32 %v1775, %v2024
    %v2046 = vmul.f32 %v1776, %v2028
    %v2047 = vmul.f32 %v1777, %v2028
    %v2048 = vmul.f32 %v1778, %v2028
    %v2049 = vmul.f32 %v1779, %v2028
    %v2050 = vmul.f32 %v1780, %v2032
    %v2051 = vmul.f32 %v1781, %v2032
    %v2052 = vmul.f32 %v1782, %v2032
    %v2053 = vmul.f32 %v1783, %v2032
    %v2054 = vmul.f32 %v1784, %v2036
    %v2055 = vmul.f32 %v1785, %v2036
    %v2056 = vmul.f32 %v1786, %v2036
    %v2057 = vmul.f32 %v1787, %v2036
    %v2058 = vmul.f32 %v1788, %v2040
    %v2059 = vmul.f32 %v1789, %v2040
    %v2060 = vmul.f32 %v1790, %v2040
    %v2061 = vmul.f32 %v1791, %v2040
    %v2062 = vadd.f32 %v2002, %v2042
    %v2063 = vadd.f32 %v2003, %v2043
    %v2064 = vadd.f32 %v2004, %v2044
    %v2065 = vadd.f32 %v2005, %v2045
    %v2066 = vadd.f32 %v2006, %v2046
    %v2067 = vadd.f32 %v2007, %v2047
    %v2068 = vadd.f32 %v2008, %v2048
    %v2069 = vadd.f32 %v2009, %v2049
    %v2070 = vadd.f32 %v2010, %v2050
    %v2071 = vadd.f32 %v2011, %v2051
    %v2072 = vadd.f32 %v2012, %v2052
    %v2073 = vadd.f32 %v2013, %v2053
    %v2074 = vadd.f32 %v2014, %v2054
    %v2075 = vadd.f32 %v2015, %v2055
    %v2076 = vadd.f32 %v2016, %v2056
    %v2077 = vadd.f32 %v2017, %v2057
    %v2078 = vadd.f32 %v2018, %v2058
    %v2079 = vadd.f32 %v2019, %v2059
    %v2080 = vadd.f32 %v2020, %v2060
    %v2081 = vadd.f32 %v2021, %v2061
    %2082 = vrot.lane.b32.xlu0 %v1772, 3
    %v2083 = vpop.permute.xlu0 %2082
    %2084 = vrot.lane.b32.xlu0 %v1776, 3
    %v2085 = vpop.permute.xlu0 %2084
    %2086 = vrot.lane.b32.xlu0 %v1780, 3
    %v2087 = vpop.permute.xlu0 %2086
    %2088 = vrot.lane.b32.xlu0 %v1784, 3
    %v2089 = vpop.permute.xlu0 %2088
    %2090 = vrot.lane.b32.xlu0 %v1788, 3
    %v2091 = vpop.permute.xlu0 %2090
    %2092 = vrot.lane.b32.xlu0 %v1773, 3
    %v2093 = vpop.permute.xlu0 %2092
    %2094 = vrot.lane.b32.xlu0 %v1777, 3
    %v2095 = vpop.permute.xlu0 %2094
    %2096 = vrot.lane.b32.xlu0 %v1781, 3
    %v2097 = vpop.permute.xlu0 %2096
    %2098 = vrot.lane.b32.xlu0 %v1785, 3
    %v2099 = vpop.permute.xlu0 %2098
    %2100 = vrot.lane.b32.xlu0 %v1789, 3
    %v2101 = vpop.permute.xlu0 %2100
    %2102 = vrot.lane.b32.xlu0 %v1774, 3
    %v2103 = vpop.permute.xlu0 %2102
    %2104 = vrot.lane.b32.xlu0 %v1778, 3
    %v2105 = vpop.permute.xlu0 %2104
    %2106 = vrot.lane.b32.xlu0 %v1782, 3
    %v2107 = vpop.permute.xlu0 %2106
    %2108 = vrot.lane.b32.xlu0 %v1786, 3
    %v2109 = vpop.permute.xlu0 %2108
    %2110 = vrot.lane.b32.xlu0 %v1790, 3
    %v2111 = vpop.permute.xlu0 %2110
    %2112 = vrot.lane.b32.xlu0 %v1775, 3
    %v2113 = vpop.permute.xlu0 %2112
    %2114 = vrot.lane.b32.xlu0 %v1779, 3
    %v2115 = vpop.permute.xlu0 %2114
    %2116 = vrot.lane.b32.xlu0 %v1783, 3
    %v2117 = vpop.permute.xlu0 %2116
    %2118 = vrot.lane.b32.xlu0 %v1787, 3
    %v2119 = vpop.permute.xlu0 %2118
    %2120 = vrot.lane.b32.xlu0 %v1791, 3
    %v2121 = vpop.permute.xlu0 %2120
    %vm2122 = vcmp.lt.s32.totalorder %v41, 3
    %v2123 = vsel %vm2122, %v2103, %v2113
    %v2124 = vsel %vm2122, %v2105, %v2115
    %v2125 = vsel %vm2122, %v2107, %v2117
    %v2126 = vsel %vm2122, %v2109, %v2119
    %v2127 = vsel %vm2122, %v2111, %v2121
    %v2128 = vsel %vm2122, %v2093, %v2103
    %v2129 = vsel %vm2122, %v2095, %v2105
    %v2130 = vsel %vm2122, %v2097, %v2107
    %v2131 = vsel %vm2122, %v2099, %v2109
    %v2132 = vsel %vm2122, %v2101, %v2111
    %v2133 = vsel %vm2122, %v2083, %v2093
    %v2134 = vsel %vm2122, %v2085, %v2095
    %v2135 = vsel %vm2122, %v2087, %v2097
    %v2136 = vsel %vm2122, %v2089, %v2099
    %v2137 = vsel %vm2122, %v2091, %v2101
    %v2138 = vsel %vm2122, %v2113, %v2083
    %v2139 = vsel %vm2122, %v2115, %v2085
    %v2140 = vsel %vm2122, %v2117, %v2087
    %v2141 = vsel %vm2122, %v2119, %v2089
    %v2142 = vsel %vm2122, %v2121, %v2091
    %v2143 = vsel %vm1889, 1, 0
    %v2144 = vsel %vm1890, 1, 0
    %v2145 = vsel %vm1891, 1, 0
    %v2146 = vsel %vm1892, 1, 0
    %vm2147 = vcmp.eq.s32.totalorder %v2143, 1
    %vm2148 = vcmp.eq.s32.totalorder %v2144, 1
    %vm2149 = vcmp.eq.s32.totalorder %v2145, 1
    %vm2150 = vcmp.eq.s32.totalorder %v2146, 1
    %v2151 = vsel %vm2147, %v2138, 0.0
    %v2152 = vsel %vm2148, %v2133, 0.0
    %v2153 = vsel %vm2149, %v2128, 0.0
    %v2154 = vsel %vm2150, %v2123, 0.0
    %v2155 = vsel %vm2147, %v2139, 0.0
    %v2156 = vsel %vm2148, %v2134, 0.0
    %v2157 = vsel %vm2149, %v2129, 0.0
    %v2158 = vsel %vm2150, %v2124, 0.0
    %v2159 = vsel %vm2147, %v2140, 0.0
    %v2160 = vsel %vm2148, %v2135, 0.0
    %v2161 = vsel %vm2149, %v2130, 0.0
    %v2162 = vsel %vm2150, %v2125, 0.0
    %v2163 = vsel %vm2147, %v2141, 0.0
    %v2164 = vsel %vm2148, %v2136, 0.0
    %v2165 = vsel %vm2149, %v2131, 0.0
    %v2166 = vsel %vm2150, %v2126, 0.0
    %v2167 = vsel %vm2147, %v2142, 0.0
    %v2168 = vsel %vm2148, %v2137, 0.0
    %v2169 = vsel %vm2149, %v2132, 0.0
    %v2170 = vsel %vm2150, %v2127, 0.0
    %2171 = vset.pattern.permute.xlu0 39
    %2172 = vperm.xlu0 %2171, %v1509
    %v2173 = vpop.permute.xlu0 %2172
    %2175 = vset.pattern.permute.xlu0 39
    %2176 = vperm.xlu0 %2175, %v1510
    %v2177 = vpop.permute.xlu0 %2176
    %2179 = vset.pattern.permute.xlu0 39
    %2180 = vperm.xlu0 %2179, %v1511
    %v2181 = vpop.permute.xlu0 %2180
    %2183 = vset.pattern.permute.xlu0 39
    %2184 = vperm.xlu0 %2183, %v1512
    %v2185 = vpop.permute.xlu0 %2184
    %2187 = vset.pattern.permute.xlu0 39
    %2188 = vperm.xlu0 %2187, %v1513
    %v2189 = vpop.permute.xlu0 %2188
    %v2191 = vmul.f32 %v2151, %v2173
    %v2192 = vmul.f32 %v2152, %v2173
    %v2193 = vmul.f32 %v2153, %v2173
    %v2194 = vmul.f32 %v2154, %v2173
    %v2195 = vmul.f32 %v2155, %v2177
    %v2196 = vmul.f32 %v2156, %v2177
    %v2197 = vmul.f32 %v2157, %v2177
    %v2198 = vmul.f32 %v2158, %v2177
    %v2199 = vmul.f32 %v2159, %v2181
    %v2200 = vmul.f32 %v2160, %v2181
    %v2201 = vmul.f32 %v2161, %v2181
    %v2202 = vmul.f32 %v2162, %v2181
    %v2203 = vmul.f32 %v2163, %v2185
    %v2204 = vmul.f32 %v2164, %v2185
    %v2205 = vmul.f32 %v2165, %v2185
    %v2206 = vmul.f32 %v2166, %v2185
    %v2207 = vmul.f32 %v2167, %v2189
    %v2208 = vmul.f32 %v2168, %v2189
    %v2209 = vmul.f32 %v2169, %v2189
    %v2210 = vmul.f32 %v2170, %v2189
    %v2211 = vadd.f32 %v2062, %v2191
    %v2212 = vadd.f32 %v2063, %v2192
    %v2213 = vadd.f32 %v2064, %v2193
    %v2214 = vadd.f32 %v2065, %v2194
    %v2215 = vadd.f32 %v2066, %v2195
    %v2216 = vadd.f32 %v2067, %v2196
    %v2217 = vadd.f32 %v2068, %v2197
    %v2218 = vadd.f32 %v2069, %v2198
    %v2219 = vadd.f32 %v2070, %v2199
    %v2220 = vadd.f32 %v2071, %v2200
    %v2221 = vadd.f32 %v2072, %v2201
    %v2222 = vadd.f32 %v2073, %v2202
    %v2223 = vadd.f32 %v2074, %v2203
    %v2224 = vadd.f32 %v2075, %v2204
    %v2225 = vadd.f32 %v2076, %v2205
    %v2226 = vadd.f32 %v2077, %v2206
    %v2227 = vadd.f32 %v2078, %v2207
    %v2228 = vadd.f32 %v2079, %v2208
    %v2229 = vadd.f32 %v2080, %v2209
    %v2230 = vadd.f32 %v2081, %v2210
    %2231 = vrot.lane.b32.xlu0 %v1612, 125
    %v2232 = vpop.permute.xlu0 %2231
    %2233 = vrot.lane.b32.xlu0 %v1616, 125
    %v2234 = vpop.permute.xlu0 %2233
    %2235 = vrot.lane.b32.xlu0 %v1622, 125
    %v2236 = vpop.permute.xlu0 %2235
    %2237 = vrot.lane.b32.xlu0 %v1626, 125
    %v2238 = vpop.permute.xlu0 %2237
    %2239 = vrot.lane.b32.xlu0 %v1632, 125
    %v2240 = vpop.permute.xlu0 %2239
    %2241 = vrot.lane.b32.xlu0 %v1614, 125
    %v2242 = vpop.permute.xlu0 %2241
    %2243 = vrot.lane.b32.xlu0 %v1618, 125
    %v2244 = vpop.permute.xlu0 %2243
    %2245 = vrot.lane.b32.xlu0 %v1624, 125
    %v2246 = vpop.permute.xlu0 %2245
    %2247 = vrot.lane.b32.xlu0 %v1628, 125
    %v2248 = vpop.permute.xlu0 %2247
    %2249 = vrot.lane.b32.xlu0 %v1634, 125
    %v2250 = vpop.permute.xlu0 %2249
    %2251 = vrot.lane.b32.xlu0 %v1673, 125
    %v2252 = vpop.permute.xlu0 %2251
    %2253 = vrot.lane.b32.xlu0 %v1677, 125
    %v2254 = vpop.permute.xlu0 %2253
    %2255 = vrot.lane.b32.xlu0 %v1683, 125
    %v2256 = vpop.permute.xlu0 %2255
    %2257 = vrot.lane.b32.xlu0 %v1687, 125
    %v2258 = vpop.permute.xlu0 %2257
    %2259 = vrot.lane.b32.xlu0 %v1693, 125
    %v2260 = vpop.permute.xlu0 %2259
    %2261 = vrot.lane.b32.xlu0 %v1675, 125
    %v2262 = vpop.permute.xlu0 %2261
    %2263 = vrot.lane.b32.xlu0 %v1679, 125
    %v2264 = vpop.permute.xlu0 %2263
    %2265 = vrot.lane.b32.xlu0 %v1685, 125
    %v2266 = vpop.permute.xlu0 %2265
    %2267 = vrot.lane.b32.xlu0 %v1689, 125
    %v2268 = vpop.permute.xlu0 %2267
    %2269 = vrot.lane.b32.xlu0 %v1695, 125
    %v2270 = vpop.permute.xlu0 %2269
    %v2271 = vsel %vm1933, %v2252, %v2262
    %v2272 = vsel %vm1933, %v2254, %v2264
    %v2273 = vsel %vm1933, %v2256, %v2266
    %v2274 = vsel %vm1933, %v2258, %v2268
    %v2275 = vsel %vm1933, %v2260, %v2270
    %v2276 = vsel %vm1933, %v2242, %v2252
    %v2277 = vsel %vm1933, %v2244, %v2254
    %v2278 = vsel %vm1933, %v2246, %v2256
    %v2279 = vsel %vm1933, %v2248, %v2258
    %v2280 = vsel %vm1933, %v2250, %v2260
    %v2281 = vsel %vm1933, %v2232, %v2242
    %v2282 = vsel %vm1933, %v2234, %v2244
    %v2283 = vsel %vm1933, %v2236, %v2246
    %v2284 = vsel %vm1933, %v2238, %v2248
    %v2285 = vsel %vm1933, %v2240, %v2250
    %v2286 = vsel %vm1933, %v2262, %v2232
    %v2287 = vsel %vm1933, %v2264, %v2234
    %v2288 = vsel %vm1933, %v2266, %v2236
    %v2289 = vsel %vm1933, %v2268, %v2238
    %v2290 = vsel %vm1933, %v2270, %v2240
    %v2291 = vsel %vm1958, %v2281, 0.0
    %v2292 = vsel %vm1959, %v2276, 0.0
    %v2293 = vsel %vm1960, %v2271, 0.0
    %v2294 = vsel %vm1961, %v2286, 0.0
    %v2295 = vsel %vm1958, %v2282, 0.0
    %v2296 = vsel %vm1959, %v2277, 0.0
    %v2297 = vsel %vm1960, %v2272, 0.0
    %v2298 = vsel %vm1961, %v2287, 0.0
    %v2299 = vsel %vm1958, %v2283, 0.0
    %v2300 = vsel %vm1959, %v2278, 0.0
    %v2301 = vsel %vm1960, %v2273, 0.0
    %v2302 = vsel %vm1961, %v2288, 0.0
    %v2303 = vsel %vm1958, %v2284, 0.0
    %v2304 = vsel %vm1959, %v2279, 0.0
    %v2305 = vsel %vm1960, %v2274, 0.0
    %v2306 = vsel %vm1961, %v2289, 0.0
    %v2307 = vsel %vm1958, %v2285, 0.0
    %v2308 = vsel %vm1959, %v2280, 0.0
    %v2309 = vsel %vm1960, %v2275, 0.0
    %v2310 = vsel %vm1961, %v2290, 0.0
    %2311 = vset.pattern.permute.xlu0 40
    %2312 = vperm.xlu0 %2311, %v1509
    %v2313 = vpop.permute.xlu0 %2312
    %2315 = vset.pattern.permute.xlu0 40
    %2316 = vperm.xlu0 %2315, %v1510
    %v2317 = vpop.permute.xlu0 %2316
    %2319 = vset.pattern.permute.xlu0 40
    %2320 = vperm.xlu0 %2319, %v1511
    %v2321 = vpop.permute.xlu0 %2320
    %2323 = vset.pattern.permute.xlu0 40
    %2324 = vperm.xlu0 %2323, %v1512
    %v2325 = vpop.permute.xlu0 %2324
    %2327 = vset.pattern.permute.xlu0 40
    %2328 = vperm.xlu0 %2327, %v1513
    %v2329 = vpop.permute.xlu0 %2328
    %v2331 = vmul.f32 %v2291, %v2313
    %v2332 = vmul.f32 %v2292, %v2313
    %v2333 = vmul.f32 %v2293, %v2313
    %v2334 = vmul.f32 %v2294, %v2313
    %v2335 = vmul.f32 %v2295, %v2317
    %v2336 = vmul.f32 %v2296, %v2317
    %v2337 = vmul.f32 %v2297, %v2317
    %v2338 = vmul.f32 %v2298, %v2317
    %v2339 = vmul.f32 %v2299, %v2321
    %v2340 = vmul.f32 %v2300, %v2321
    %v2341 = vmul.f32 %v2301, %v2321
    %v2342 = vmul.f32 %v2302, %v2321
    %v2343 = vmul.f32 %v2303, %v2325
    %v2344 = vmul.f32 %v2304, %v2325
    %v2345 = vmul.f32 %v2305, %v2325
    %v2346 = vmul.f32 %v2306, %v2325
    %v2347 = vmul.f32 %v2307, %v2329
    %v2348 = vmul.f32 %v2308, %v2329
    %v2349 = vmul.f32 %v2309, %v2329
    %v2350 = vmul.f32 %v2310, %v2329
    %v2351 = vadd.f32 %v2211, %v2331
    %v2352 = vadd.f32 %v2212, %v2332
    %v2353 = vadd.f32 %v2213, %v2333
    %v2354 = vadd.f32 %v2214, %v2334
    %v2355 = vadd.f32 %v2215, %v2335
    %v2356 = vadd.f32 %v2216, %v2336
    %v2357 = vadd.f32 %v2217, %v2337
    %v2358 = vadd.f32 %v2218, %v2338
    %v2359 = vadd.f32 %v2219, %v2339
    %v2360 = vadd.f32 %v2220, %v2340
    %v2361 = vadd.f32 %v2221, %v2341
    %v2362 = vadd.f32 %v2222, %v2342
    %v2363 = vadd.f32 %v2223, %v2343
    %v2364 = vadd.f32 %v2224, %v2344
    %v2365 = vadd.f32 %v2225, %v2345
    %v2366 = vadd.f32 %v2226, %v2346
    %v2367 = vadd.f32 %v2227, %v2347
    %v2368 = vadd.f32 %v2228, %v2348
    %v2369 = vadd.f32 %v2229, %v2349
    %v2370 = vadd.f32 %v2230, %v2350
    %2371 = vset.pattern.permute.xlu0 41
    %2372 = vperm.xlu0 %2371, %v1509
    %v2373 = vpop.permute.xlu0 %2372
    %2375 = vset.pattern.permute.xlu0 41
    %2376 = vperm.xlu0 %2375, %v1510
    %v2377 = vpop.permute.xlu0 %2376
    %2379 = vset.pattern.permute.xlu0 41
    %2380 = vperm.xlu0 %2379, %v1511
    %v2381 = vpop.permute.xlu0 %2380
    %2383 = vset.pattern.permute.xlu0 41
    %2384 = vperm.xlu0 %2383, %v1512
    %v2385 = vpop.permute.xlu0 %2384
    %2387 = vset.pattern.permute.xlu0 41
    %2388 = vperm.xlu0 %2387, %v1513
    %v2389 = vpop.permute.xlu0 %2388
    %v2391 = vmul.f32 %v1612, %v2373
    %v2392 = vmul.f32 %v1614, %v2373
    %v2393 = vmul.f32 %v1673, %v2373
    %v2394 = vmul.f32 %v1675, %v2373
    %v2395 = vmul.f32 %v1616, %v2377
    %v2396 = vmul.f32 %v1618, %v2377
    %v2397 = vmul.f32 %v1677, %v2377
    %v2398 = vmul.f32 %v1679, %v2377
    %v2399 = vmul.f32 %v1622, %v2381
    %v2400 = vmul.f32 %v1624, %v2381
    %v2401 = vmul.f32 %v1683, %v2381
    %v2402 = vmul.f32 %v1685, %v2381
    %v2403 = vmul.f32 %v1626, %v2385
    %v2404 = vmul.f32 %v1628, %v2385
    %v2405 = vmul.f32 %v1687, %v2385
    %v2406 = vmul.f32 %v1689, %v2385
    %v2407 = vmul.f32 %v1632, %v2389
    %v2408 = vmul.f32 %v1634, %v2389
    %v2409 = vmul.f32 %v1693, %v2389
    %v2410 = vmul.f32 %v1695, %v2389
    %v2411 = vadd.f32 %v2351, %v2391
    %v2412 = vadd.f32 %v2352, %v2392
    %v2413 = vadd.f32 %v2353, %v2393
    %v2414 = vadd.f32 %v2354, %v2394
    %v2415 = vadd.f32 %v2355, %v2395
    %v2416 = vadd.f32 %v2356, %v2396
    %v2417 = vadd.f32 %v2357, %v2397
    %v2418 = vadd.f32 %v2358, %v2398
    %v2419 = vadd.f32 %v2359, %v2399
    %v2420 = vadd.f32 %v2360, %v2400
    %v2421 = vadd.f32 %v2361, %v2401
    %v2422 = vadd.f32 %v2362, %v2402
    %v2423 = vadd.f32 %v2363, %v2403
    %v2424 = vadd.f32 %v2364, %v2404
    %v2425 = vadd.f32 %v2365, %v2405
    %v2426 = vadd.f32 %v2366, %v2406
    %v2427 = vadd.f32 %v2367, %v2407
    %v2428 = vadd.f32 %v2368, %v2408
    %v2429 = vadd.f32 %v2369, %v2409
    %v2430 = vadd.f32 %v2370, %v2410
    %2431 = vrot.lane.b32.xlu0 %v1612, 3
    %v2432 = vpop.permute.xlu0 %2431
    %2433 = vrot.lane.b32.xlu0 %v1616, 3
    %v2434 = vpop.permute.xlu0 %2433
    %2435 = vrot.lane.b32.xlu0 %v1622, 3
    %v2436 = vpop.permute.xlu0 %2435
    %2437 = vrot.lane.b32.xlu0 %v1626, 3
    %v2438 = vpop.permute.xlu0 %2437
    %2439 = vrot.lane.b32.xlu0 %v1632, 3
    %v2440 = vpop.permute.xlu0 %2439
    %2441 = vrot.lane.b32.xlu0 %v1614, 3
    %v2442 = vpop.permute.xlu0 %2441
    %2443 = vrot.lane.b32.xlu0 %v1618, 3
    %v2444 = vpop.permute.xlu0 %2443
    %2445 = vrot.lane.b32.xlu0 %v1624, 3
    %v2446 = vpop.permute.xlu0 %2445
    %2447 = vrot.lane.b32.xlu0 %v1628, 3
    %v2448 = vpop.permute.xlu0 %2447
    %2449 = vrot.lane.b32.xlu0 %v1634, 3
    %v2450 = vpop.permute.xlu0 %2449
    %2451 = vrot.lane.b32.xlu0 %v1673, 3
    %v2452 = vpop.permute.xlu0 %2451
    %2453 = vrot.lane.b32.xlu0 %v1677, 3
    %v2454 = vpop.permute.xlu0 %2453
    %2455 = vrot.lane.b32.xlu0 %v1683, 3
    %v2456 = vpop.permute.xlu0 %2455
    %2457 = vrot.lane.b32.xlu0 %v1687, 3
    %v2458 = vpop.permute.xlu0 %2457
    %2459 = vrot.lane.b32.xlu0 %v1693, 3
    %v2460 = vpop.permute.xlu0 %2459
    %2461 = vrot.lane.b32.xlu0 %v1675, 3
    %v2462 = vpop.permute.xlu0 %2461
    %2463 = vrot.lane.b32.xlu0 %v1679, 3
    %v2464 = vpop.permute.xlu0 %2463
    %2465 = vrot.lane.b32.xlu0 %v1685, 3
    %v2466 = vpop.permute.xlu0 %2465
    %2467 = vrot.lane.b32.xlu0 %v1689, 3
    %v2468 = vpop.permute.xlu0 %2467
    %2469 = vrot.lane.b32.xlu0 %v1695, 3
    %v2470 = vpop.permute.xlu0 %2469
    %v2471 = vsel %vm2122, %v2452, %v2462
    %v2472 = vsel %vm2122, %v2454, %v2464
    %v2473 = vsel %vm2122, %v2456, %v2466
    %v2474 = vsel %vm2122, %v2458, %v2468
    %v2475 = vsel %vm2122, %v2460, %v2470
    %v2476 = vsel %vm2122, %v2442, %v2452
    %v2477 = vsel %vm2122, %v2444, %v2454
    %v2478 = vsel %vm2122, %v2446, %v2456
    %v2479 = vsel %vm2122, %v2448, %v2458
    %v2480 = vsel %vm2122, %v2450, %v2460
    %v2481 = vsel %vm2122, %v2432, %v2442
    %v2482 = vsel %vm2122, %v2434, %v2444
    %v2483 = vsel %vm2122, %v2436, %v2446
    %v2484 = vsel %vm2122, %v2438, %v2448
    %v2485 = vsel %vm2122, %v2440, %v2450
    %v2486 = vsel %vm2122, %v2462, %v2432
    %v2487 = vsel %vm2122, %v2464, %v2434
    %v2488 = vsel %vm2122, %v2466, %v2436
    %v2489 = vsel %vm2122, %v2468, %v2438
    %v2490 = vsel %vm2122, %v2470, %v2440
    %v2491 = vsel %vm2147, %v2486, 0.0
    %v2492 = vsel %vm2148, %v2481, 0.0
    %v2493 = vsel %vm2149, %v2476, 0.0
    %v2494 = vsel %vm2150, %v2471, 0.0
    %v2495 = vsel %vm2147, %v2487, 0.0
    %v2496 = vsel %vm2148, %v2482, 0.0
    %v2497 = vsel %vm2149, %v2477, 0.0
    %v2498 = vsel %vm2150, %v2472, 0.0
    %v2499 = vsel %vm2147, %v2488, 0.0
    %v2500 = vsel %vm2148, %v2483, 0.0
    %v2501 = vsel %vm2149, %v2478, 0.0
    %v2502 = vsel %vm2150, %v2473, 0.0
    %v2503 = vsel %vm2147, %v2489, 0.0
    %v2504 = vsel %vm2148, %v2484, 0.0
    %v2505 = vsel %vm2149, %v2479, 0.0
    %v2506 = vsel %vm2150, %v2474, 0.0
    %v2507 = vsel %vm2147, %v2490, 0.0
    %v2508 = vsel %vm2148, %v2485, 0.0
    %v2509 = vsel %vm2149, %v2480, 0.0
    %v2510 = vsel %vm2150, %v2475, 0.0
    %2511 = vset.pattern.permute.xlu0 42
    %2512 = vperm.xlu0 %2511, %v1509
    %v2513 = vpop.permute.xlu0 %2512
    %2515 = vset.pattern.permute.xlu0 42
    %2516 = vperm.xlu0 %2515, %v1510
    %v2517 = vpop.permute.xlu0 %2516
    %2519 = vset.pattern.permute.xlu0 42
    %2520 = vperm.xlu0 %2519, %v1511
    %v2521 = vpop.permute.xlu0 %2520
    %2523 = vset.pattern.permute.xlu0 42
    %2524 = vperm.xlu0 %2523, %v1512
    %v2525 = vpop.permute.xlu0 %2524
    %2527 = vset.pattern.permute.xlu0 42
    %2528 = vperm.xlu0 %2527, %v1513
    %v2529 = vpop.permute.xlu0 %2528
    %v2531 = vmul.f32 %v2491, %v2513
    %v2532 = vmul.f32 %v2492, %v2513
    %v2533 = vmul.f32 %v2493, %v2513
    %v2534 = vmul.f32 %v2494, %v2513
    %v2535 = vmul.f32 %v2495, %v2517
    %v2536 = vmul.f32 %v2496, %v2517
    %v2537 = vmul.f32 %v2497, %v2517
    %v2538 = vmul.f32 %v2498, %v2517
    %v2539 = vmul.f32 %v2499, %v2521
    %v2540 = vmul.f32 %v2500, %v2521
    %v2541 = vmul.f32 %v2501, %v2521
    %v2542 = vmul.f32 %v2502, %v2521
    %v2543 = vmul.f32 %v2503, %v2525
    %v2544 = vmul.f32 %v2504, %v2525
    %v2545 = vmul.f32 %v2505, %v2525
    %v2546 = vmul.f32 %v2506, %v2525
    %v2547 = vmul.f32 %v2507, %v2529
    %v2548 = vmul.f32 %v2508, %v2529
    %v2549 = vmul.f32 %v2509, %v2529
    %v2550 = vmul.f32 %v2510, %v2529
    %v2551 = vadd.f32 %v2411, %v2531
    %v2552 = vadd.f32 %v2412, %v2532
    %v2553 = vadd.f32 %v2413, %v2533
    %v2554 = vadd.f32 %v2414, %v2534
    %v2555 = vadd.f32 %v2415, %v2535
    %v2556 = vadd.f32 %v2416, %v2536
    %v2557 = vadd.f32 %v2417, %v2537
    %v2558 = vadd.f32 %v2418, %v2538
    %v2559 = vadd.f32 %v2419, %v2539
    %v2560 = vadd.f32 %v2420, %v2540
    %v2561 = vadd.f32 %v2421, %v2541
    %v2562 = vadd.f32 %v2422, %v2542
    %v2563 = vadd.f32 %v2423, %v2543
    %v2564 = vadd.f32 %v2424, %v2544
    %v2565 = vadd.f32 %v2425, %v2545
    %v2566 = vadd.f32 %v2426, %v2546
    %v2567 = vadd.f32 %v2427, %v2547
    %v2568 = vadd.f32 %v2428, %v2548
    %v2569 = vadd.f32 %v2429, %v2549
    %v2570 = vadd.f32 %v2430, %v2550
    %2571 = vrot.lane.b32.xlu0 %v1865, 125
    %v2572 = vpop.permute.xlu0 %2571
    %2573 = vrot.lane.b32.xlu0 %v1869, 125
    %v2574 = vpop.permute.xlu0 %2573
    %2575 = vrot.lane.b32.xlu0 %v1873, 125
    %v2576 = vpop.permute.xlu0 %2575
    %2577 = vrot.lane.b32.xlu0 %v1877, 125
    %v2578 = vpop.permute.xlu0 %2577
    %2579 = vrot.lane.b32.xlu0 %v1881, 125
    %v2580 = vpop.permute.xlu0 %2579
    %2581 = vrot.lane.b32.xlu0 %v1866, 125
    %v2582 = vpop.permute.xlu0 %2581
    %2583 = vrot.lane.b32.xlu0 %v1870, 125
    %v2584 = vpop.permute.xlu0 %2583
    %2585 = vrot.lane.b32.xlu0 %v1874, 125
    %v2586 = vpop.permute.xlu0 %2585
    %2587 = vrot.lane.b32.xlu0 %v1878, 125
    %v2588 = vpop.permute.xlu0 %2587
    %2589 = vrot.lane.b32.xlu0 %v1882, 125
    %v2590 = vpop.permute.xlu0 %2589
    %2591 = vrot.lane.b32.xlu0 %v1867, 125
    %v2592 = vpop.permute.xlu0 %2591
    %2593 = vrot.lane.b32.xlu0 %v1871, 125
    %v2594 = vpop.permute.xlu0 %2593
    %2595 = vrot.lane.b32.xlu0 %v1875, 125
    %v2596 = vpop.permute.xlu0 %2595
    %2597 = vrot.lane.b32.xlu0 %v1879, 125
    %v2598 = vpop.permute.xlu0 %2597
    %2599 = vrot.lane.b32.xlu0 %v1883, 125
    %v2600 = vpop.permute.xlu0 %2599
    %2601 = vrot.lane.b32.xlu0 %v1868, 125
    %v2602 = vpop.permute.xlu0 %2601
    %2603 = vrot.lane.b32.xlu0 %v1872, 125
    %v2604 = vpop.permute.xlu0 %2603
    %2605 = vrot.lane.b32.xlu0 %v1876, 125
    %v2606 = vpop.permute.xlu0 %2605
    %2607 = vrot.lane.b32.xlu0 %v1880, 125
    %v2608 = vpop.permute.xlu0 %2607
    %2609 = vrot.lane.b32.xlu0 %v1884, 125
    %v2610 = vpop.permute.xlu0 %2609
    %v2611 = vsel %vm1933, %v2592, %v2602
    %v2612 = vsel %vm1933, %v2594, %v2604
    %v2613 = vsel %vm1933, %v2596, %v2606
    %v2614 = vsel %vm1933, %v2598, %v2608
    %v2615 = vsel %vm1933, %v2600, %v2610
    %v2616 = vsel %vm1933, %v2582, %v2592
    %v2617 = vsel %vm1933, %v2584, %v2594
    %v2618 = vsel %vm1933, %v2586, %v2596
    %v2619 = vsel %vm1933, %v2588, %v2598
    %v2620 = vsel %vm1933, %v2590, %v2600
    %v2621 = vsel %vm1933, %v2572, %v2582
    %v2622 = vsel %vm1933, %v2574, %v2584
    %v2623 = vsel %vm1933, %v2576, %v2586
    %v2624 = vsel %vm1933, %v2578, %v2588
    %v2625 = vsel %vm1933, %v2580, %v2590
    %v2626 = vsel %vm1933, %v2602, %v2572
    %v2627 = vsel %vm1933, %v2604, %v2574
    %v2628 = vsel %vm1933, %v2606, %v2576
    %v2629 = vsel %vm1933, %v2608, %v2578
    %v2630 = vsel %vm1933, %v2610, %v2580
    %v2631 = vsel %vm1958, %v2621, 0.0
    %v2632 = vsel %vm1959, %v2616, 0.0
    %v2633 = vsel %vm1960, %v2611, 0.0
    %v2634 = vsel %vm1961, %v2626, 0.0
    %v2635 = vsel %vm1958, %v2622, 0.0
    %v2636 = vsel %vm1959, %v2617, 0.0
    %v2637 = vsel %vm1960, %v2612, 0.0
    %v2638 = vsel %vm1961, %v2627, 0.0
    %v2639 = vsel %vm1958, %v2623, 0.0
    %v2640 = vsel %vm1959, %v2618, 0.0
    %v2641 = vsel %vm1960, %v2613, 0.0
    %v2642 = vsel %vm1961, %v2628, 0.0
    %v2643 = vsel %vm1958, %v2624, 0.0
    %v2644 = vsel %vm1959, %v2619, 0.0
    %v2645 = vsel %vm1960, %v2614, 0.0
    %v2646 = vsel %vm1961, %v2629, 0.0
    %v2647 = vsel %vm1958, %v2625, 0.0
    %v2648 = vsel %vm1959, %v2620, 0.0
    %v2649 = vsel %vm1960, %v2615, 0.0
    %v2650 = vsel %vm1961, %v2630, 0.0
    %2651 = vset.pattern.permute.xlu0 43
    %2652 = vperm.xlu0 %2651, %v1509
    %v2653 = vpop.permute.xlu0 %2652
    %2655 = vset.pattern.permute.xlu0 43
    %2656 = vperm.xlu0 %2655, %v1510
    %v2657 = vpop.permute.xlu0 %2656
    %2659 = vset.pattern.permute.xlu0 43
    %2660 = vperm.xlu0 %2659, %v1511
    %v2661 = vpop.permute.xlu0 %2660
    %2663 = vset.pattern.permute.xlu0 43
    %2664 = vperm.xlu0 %2663, %v1512
    %v2665 = vpop.permute.xlu0 %2664
    %2667 = vset.pattern.permute.xlu0 43
    %2668 = vperm.xlu0 %2667, %v1513
    %v2669 = vpop.permute.xlu0 %2668
    %v2671 = vmul.f32 %v2631, %v2653
    %v2672 = vmul.f32 %v2632, %v2653
    %v2673 = vmul.f32 %v2633, %v2653
    %v2674 = vmul.f32 %v2634, %v2653
    %v2675 = vmul.f32 %v2635, %v2657
    %v2676 = vmul.f32 %v2636, %v2657
    %v2677 = vmul.f32 %v2637, %v2657
    %v2678 = vmul.f32 %v2638, %v2657
    %v2679 = vmul.f32 %v2639, %v2661
    %v2680 = vmul.f32 %v2640, %v2661
    %v2681 = vmul.f32 %v2641, %v2661
    %v2682 = vmul.f32 %v2642, %v2661
    %v2683 = vmul.f32 %v2643, %v2665
    %v2684 = vmul.f32 %v2644, %v2665
    %v2685 = vmul.f32 %v2645, %v2665
    %v2686 = vmul.f32 %v2646, %v2665
    %v2687 = vmul.f32 %v2647, %v2669
    %v2688 = vmul.f32 %v2648, %v2669
    %v2689 = vmul.f32 %v2649, %v2669
    %v2690 = vmul.f32 %v2650, %v2669
    %v2691 = vadd.f32 %v2551, %v2671
    %v2692 = vadd.f32 %v2552, %v2672
    %v2693 = vadd.f32 %v2553, %v2673
    %v2694 = vadd.f32 %v2554, %v2674
    %v2695 = vadd.f32 %v2555, %v2675
    %v2696 = vadd.f32 %v2556, %v2676
    %v2697 = vadd.f32 %v2557, %v2677
    %v2698 = vadd.f32 %v2558, %v2678
    %v2699 = vadd.f32 %v2559, %v2679
    %v2700 = vadd.f32 %v2560, %v2680
    %v2701 = vadd.f32 %v2561, %v2681
    %v2702 = vadd.f32 %v2562, %v2682
    %v2703 = vadd.f32 %v2563, %v2683
    %v2704 = vadd.f32 %v2564, %v2684
    %v2705 = vadd.f32 %v2565, %v2685
    %v2706 = vadd.f32 %v2566, %v2686
    %v2707 = vadd.f32 %v2567, %v2687
    %v2708 = vadd.f32 %v2568, %v2688
    %v2709 = vadd.f32 %v2569, %v2689
    %v2710 = vadd.f32 %v2570, %v2690
    %2711 = vset.pattern.permute.xlu0 44
    %2712 = vperm.xlu0 %2711, %v1509
    %v2713 = vpop.permute.xlu0 %2712
    %2715 = vset.pattern.permute.xlu0 44
    %2716 = vperm.xlu0 %2715, %v1510
    %v2717 = vpop.permute.xlu0 %2716
    %2719 = vset.pattern.permute.xlu0 44
    %2720 = vperm.xlu0 %2719, %v1511
    %v2721 = vpop.permute.xlu0 %2720
    %2723 = vset.pattern.permute.xlu0 44
    %2724 = vperm.xlu0 %2723, %v1512
    %v2725 = vpop.permute.xlu0 %2724
    %2727 = vset.pattern.permute.xlu0 44
    %2728 = vperm.xlu0 %2727, %v1513
    %v2729 = vpop.permute.xlu0 %2728
    %v2731 = vmul.f32 %v1865, %v2713
    %v2732 = vmul.f32 %v1866, %v2713
    %v2733 = vmul.f32 %v1867, %v2713
    %v2734 = vmul.f32 %v1868, %v2713
    %v2735 = vmul.f32 %v1869, %v2717
    %v2736 = vmul.f32 %v1870, %v2717
    %v2737 = vmul.f32 %v1871, %v2717
    %v2738 = vmul.f32 %v1872, %v2717
    %v2739 = vmul.f32 %v1873, %v2721
    %v2740 = vmul.f32 %v1874, %v2721
    %v2741 = vmul.f32 %v1875, %v2721
    %v2742 = vmul.f32 %v1876, %v2721
    %v2743 = vmul.f32 %v1877, %v2725
    %v2744 = vmul.f32 %v1878, %v2725
    %v2745 = vmul.f32 %v1879, %v2725
    %v2746 = vmul.f32 %v1880, %v2725
    %v2747 = vmul.f32 %v1881, %v2729
    %v2748 = vmul.f32 %v1882, %v2729
    %v2749 = vmul.f32 %v1883, %v2729
    %v2750 = vmul.f32 %v1884, %v2729
    %v2751 = vadd.f32 %v2691, %v2731
    %v2752 = vadd.f32 %v2692, %v2732
    %v2753 = vadd.f32 %v2693, %v2733
    %v2754 = vadd.f32 %v2694, %v2734
    %v2755 = vadd.f32 %v2695, %v2735
    %v2756 = vadd.f32 %v2696, %v2736
    %v2757 = vadd.f32 %v2697, %v2737
    %v2758 = vadd.f32 %v2698, %v2738
    %v2759 = vadd.f32 %v2699, %v2739
    %v2760 = vadd.f32 %v2700, %v2740
    %v2761 = vadd.f32 %v2701, %v2741
    %v2762 = vadd.f32 %v2702, %v2742
    %v2763 = vadd.f32 %v2703, %v2743
    %v2764 = vadd.f32 %v2704, %v2744
    %v2765 = vadd.f32 %v2705, %v2745
    %v2766 = vadd.f32 %v2706, %v2746
    %v2767 = vadd.f32 %v2707, %v2747
    %v2768 = vadd.f32 %v2708, %v2748
    %v2769 = vadd.f32 %v2709, %v2749
    %v2770 = vadd.f32 %v2710, %v2750
    %2771 = vrot.lane.b32.xlu0 %v1865, 3
    %v2772 = vpop.permute.xlu0 %2771
    %2773 = vrot.lane.b32.xlu0 %v1869, 3
    %v2774 = vpop.permute.xlu0 %2773
    %2775 = vrot.lane.b32.xlu0 %v1873, 3
    %v2776 = vpop.permute.xlu0 %2775
    %2777 = vrot.lane.b32.xlu0 %v1877, 3
    %v2778 = vpop.permute.xlu0 %2777
    %2779 = vrot.lane.b32.xlu0 %v1881, 3
    %v2780 = vpop.permute.xlu0 %2779
    %2781 = vrot.lane.b32.xlu0 %v1866, 3
    %v2782 = vpop.permute.xlu0 %2781
    %2783 = vrot.lane.b32.xlu0 %v1870, 3
    %v2784 = vpop.permute.xlu0 %2783
    %2785 = vrot.lane.b32.xlu0 %v1874, 3
    %v2786 = vpop.permute.xlu0 %2785
    %2787 = vrot.lane.b32.xlu0 %v1878, 3
    %v2788 = vpop.permute.xlu0 %2787
    %2789 = vrot.lane.b32.xlu0 %v1882, 3
    %v2790 = vpop.permute.xlu0 %2789
    %2791 = vrot.lane.b32.xlu0 %v1867, 3
    %v2792 = vpop.permute.xlu0 %2791
    %2793 = vrot.lane.b32.xlu0 %v1871, 3
    %v2794 = vpop.permute.xlu0 %2793
    %2795 = vrot.lane.b32.xlu0 %v1875, 3
    %v2796 = vpop.permute.xlu0 %2795
    %2797 = vrot.lane.b32.xlu0 %v1879, 3
    %v2798 = vpop.permute.xlu0 %2797
    %2799 = vrot.lane.b32.xlu0 %v1883, 3
    %v2800 = vpop.permute.xlu0 %2799
    %2801 = vrot.lane.b32.xlu0 %v1868, 3
    %v2802 = vpop.permute.xlu0 %2801
    %2803 = vrot.lane.b32.xlu0 %v1872, 3
    %v2804 = vpop.permute.xlu0 %2803
    %2805 = vrot.lane.b32.xlu0 %v1876, 3
    %v2806 = vpop.permute.xlu0 %2805
    %2807 = vrot.lane.b32.xlu0 %v1880, 3
    %v2808 = vpop.permute.xlu0 %2807
    %2809 = vrot.lane.b32.xlu0 %v1884, 3
    %v2810 = vpop.permute.xlu0 %2809
    %v2811 = vsel %vm2122, %v2792, %v2802
    %v2812 = vsel %vm2122, %v2794, %v2804
    %v2813 = vsel %vm2122, %v2796, %v2806
    %v2814 = vsel %vm2122, %v2798, %v2808
    %v2815 = vsel %vm2122, %v2800, %v2810
    %v2816 = vsel %vm2122, %v2782, %v2792
    %v2817 = vsel %vm2122, %v2784, %v2794
    %v2818 = vsel %vm2122, %v2786, %v2796
    %v2819 = vsel %vm2122, %v2788, %v2798
    %v2820 = vsel %vm2122, %v2790, %v2800
    %v2821 = vsel %vm2122, %v2772, %v2782
    %v2822 = vsel %vm2122, %v2774, %v2784
    %v2823 = vsel %vm2122, %v2776, %v2786
    %v2824 = vsel %vm2122, %v2778, %v2788
    %v2825 = vsel %vm2122, %v2780, %v2790
    %v2826 = vsel %vm2122, %v2802, %v2772
    %v2827 = vsel %vm2122, %v2804, %v2774
    %v2828 = vsel %vm2122, %v2806, %v2776
    %v2829 = vsel %vm2122, %v2808, %v2778
    %v2830 = vsel %vm2122, %v2810, %v2780
    %v2831 = vsel %vm2147, %v2826, 0.0
    %v2832 = vsel %vm2148, %v2821, 0.0
    %v2833 = vsel %vm2149, %v2816, 0.0
    %v2834 = vsel %vm2150, %v2811, 0.0
    %v2835 = vsel %vm2147, %v2827, 0.0
    %v2836 = vsel %vm2148, %v2822, 0.0
    %v2837 = vsel %vm2149, %v2817, 0.0
    %v2838 = vsel %vm2150, %v2812, 0.0
    %v2839 = vsel %vm2147, %v2828, 0.0
    %v2840 = vsel %vm2148, %v2823, 0.0
    %v2841 = vsel %vm2149, %v2818, 0.0
    %v2842 = vsel %vm2150, %v2813, 0.0
    %v2843 = vsel %vm2147, %v2829, 0.0
    %v2844 = vsel %vm2148, %v2824, 0.0
    %v2845 = vsel %vm2149, %v2819, 0.0
    %v2846 = vsel %vm2150, %v2814, 0.0
    %v2847 = vsel %vm2147, %v2830, 0.0
    %v2848 = vsel %vm2148, %v2825, 0.0
    %v2849 = vsel %vm2149, %v2820, 0.0
    %v2850 = vsel %vm2150, %v2815, 0.0
    %2851 = vset.pattern.permute.xlu0 45
    %2852 = vperm.xlu0 %2851, %v1509
    %v2853 = vpop.permute.xlu0 %2852
    %2855 = vset.pattern.permute.xlu0 45
    %2856 = vperm.xlu0 %2855, %v1510
    %v2857 = vpop.permute.xlu0 %2856
    %2859 = vset.pattern.permute.xlu0 45
    %2860 = vperm.xlu0 %2859, %v1511
    %v2861 = vpop.permute.xlu0 %2860
    %2863 = vset.pattern.permute.xlu0 45
    %2864 = vperm.xlu0 %2863, %v1512
    %v2865 = vpop.permute.xlu0 %2864
    %2867 = vset.pattern.permute.xlu0 45
    %2868 = vperm.xlu0 %2867, %v1513
    %v2869 = vpop.permute.xlu0 %2868
    %v2871 = vmul.f32 %v2831, %v2853
    %v2872 = vmul.f32 %v2832, %v2853
    %v2873 = vmul.f32 %v2833, %v2853
    %v2874 = vmul.f32 %v2834, %v2853
    %v2875 = vmul.f32 %v2835, %v2857
    %v2876 = vmul.f32 %v2836, %v2857
    %v2877 = vmul.f32 %v2837, %v2857
    %v2878 = vmul.f32 %v2838, %v2857
    %v2879 = vmul.f32 %v2839, %v2861
    %v2880 = vmul.f32 %v2840, %v2861
    %v2881 = vmul.f32 %v2841, %v2861
    %v2882 = vmul.f32 %v2842, %v2861
    %v2883 = vmul.f32 %v2843, %v2865
    %v2884 = vmul.f32 %v2844, %v2865
    %v2885 = vmul.f32 %v2845, %v2865
    %v2886 = vmul.f32 %v2846, %v2865
    %v2887 = vmul.f32 %v2847, %v2869
    %v2888 = vmul.f32 %v2848, %v2869
    %v2889 = vmul.f32 %v2849, %v2869
    %v2890 = vmul.f32 %v2850, %v2869
    %v2891 = vadd.f32 %v2751, %v2871
    %v2892 = vadd.f32 %v2752, %v2872
    %v2893 = vadd.f32 %v2753, %v2873
    %v2894 = vadd.f32 %v2754, %v2874
    %v2895 = vadd.f32 %v2755, %v2875
    %v2896 = vadd.f32 %v2756, %v2876
    %v2897 = vadd.f32 %v2757, %v2877
    %v2898 = vadd.f32 %v2758, %v2878
    %v2899 = vadd.f32 %v2759, %v2879
    %v2900 = vadd.f32 %v2760, %v2880
    %v2901 = vadd.f32 %v2761, %v2881
    %v2902 = vadd.f32 %v2762, %v2882
    %v2903 = vadd.f32 %v2763, %v2883
    %v2904 = vadd.f32 %v2764, %v2884
    %v2905 = vadd.f32 %v2765, %v2885
    %v2906 = vadd.f32 %v2766, %v2886
    %v2907 = vadd.f32 %v2767, %v2887
    %v2908 = vadd.f32 %v2768, %v2888
    %v2909 = vadd.f32 %v2769, %v2889
    %v2910 = vadd.f32 %v2770, %v2890
    %2911 = vset.pattern.permute.xlu0 46
    %2912 = vperm.xlu0 %2911, %v1509
    %v2913 = vpop.permute.xlu0 %2912
    %2915 = vset.pattern.permute.xlu0 46
    %2916 = vperm.xlu0 %2915, %v1510
    %v2917 = vpop.permute.xlu0 %2916
    %2919 = vset.pattern.permute.xlu0 46
    %2920 = vperm.xlu0 %2919, %v1511
    %v2921 = vpop.permute.xlu0 %2920
    %2923 = vset.pattern.permute.xlu0 46
    %2924 = vperm.xlu0 %2923, %v1512
    %v2925 = vpop.permute.xlu0 %2924
    %2927 = vset.pattern.permute.xlu0 46
    %2928 = vperm.xlu0 %2927, %v1513
    %v2929 = vpop.permute.xlu0 %2928
    %v2931 = vadd.f32 %v2891, %v2913
    %v2932 = vadd.f32 %v2892, %v2913
    %v2933 = vadd.f32 %v2893, %v2913
    %v2934 = vadd.f32 %v2894, %v2913
    %v2935 = vadd.f32 %v2895, %v2917
    %v2936 = vadd.f32 %v2896, %v2917
    %v2937 = vadd.f32 %v2897, %v2917
    %v2938 = vadd.f32 %v2898, %v2917
    %v2939 = vadd.f32 %v2899, %v2921
    %v2940 = vadd.f32 %v2900, %v2921
    %v2941 = vadd.f32 %v2901, %v2921
    %v2942 = vadd.f32 %v2902, %v2921
    %v2943 = vadd.f32 %v2903, %v2925
    %v2944 = vadd.f32 %v2904, %v2925
    %v2945 = vadd.f32 %v2905, %v2925
    %v2946 = vadd.f32 %v2906, %v2925
    %v2947 = vadd.f32 %v2907, %v2929
    %v2948 = vadd.f32 %v2908, %v2929
    %v2949 = vadd.f32 %v2909, %v2929
    %v2950 = vadd.f32 %v2910, %v2929
    %v2951 = vld [vmem:[#allocation5 + $0x50] sm:$0x7]
    %v2952 = vpack.c.bf16 %v2951, %v2951
    %v2953 = vpack.c.bf16 %v2935, %v2931
    %v2954 = vpack.c.bf16 %v2936, %v2932
    %v2955 = vpack.c.bf16 %v2937, %v2933
    %v2956 = vpack.c.bf16 %v2938, %v2934
    %v2957 = vpack.c.bf16 %v2943, %v2939
    %v2958 = vpack.c.bf16 %v2944, %v2940
    %v2959 = vpack.c.bf16 %v2945, %v2941
    %v2960 = vpack.c.bf16 %v2946, %v2942
    %v2961 = vpack.c.bf16 %v2947, %v2947
    %v2962 = vpack.c.bf16 %v2948, %v2948
    %v2963 = vpack.c.bf16 %v2949, %v2949
    %v2964 = vpack.c.bf16 %v2950, %v2950
    %2966 = vset.pattern.permute.xlu0 36
    %2967 = vperm.xlu0 %2966, %v2951
    %v2968 = vpop.permute.xlu0 %2967
    %v2971 = vsel %vm1554, %v2952, 0
    %v2974 = vsel %vm1564, %v2961, 0
    %v2977 = vsel %vm1564, %v2962, 0
    %v2980 = vsel %vm1564, %v2963, 0
    %v2983 = vsel %vm1564, %v2964, 0
    %2985 = vmatprep.subr.bf16.mxu0 %v2954
    %2986 = vmatpush1.bf16.msra.mxu0 %v2953
    %2987 = vmatprep.subr.bf16.mxu0 %v2958
    %2988 = vmatpush1.bf16.msra.mxu0 %v2957
    %2989 = vmatprep.subr.bf16.mxu0 %v2977
    %2990 = vmatpush1.bf16.msra.mxu0 %v2974
    %2991 = vmatprep.subr.bf16.mxu0 0
    %2992 = vmatpush1.bf16.msra.mxu0 0
    %2993 = vmatprep.subr.bf16.mxu0 0
    %2994 = vmatpush1.bf16.msra.mxu0 0
    %2995 = vmatprep.subr.bf16.mxu0 0
    %2996 = vmatpush1.bf16.msra.mxu0 0
    %2997 = vmatprep.subr.bf16.mxu0 0
    %2998 = vmatpush1.bf16.msra.mxu0 0
    %2999 = vmatprep.subr.bf16.mxu0 0
    %3000 = vmatpush1.bf16.msra.mxu0 0
    %3001 = vmatprep.subr.bf16.mxu0 0
    %3002 = vmatpush1.bf16.msra.mxu0 0
    %3003 = vmatprep.subr.bf16.mxu0 0
    %3004 = vmatpush1.bf16.msra.mxu0 0
    %3005 = vmatprep.subr.bf16.mxu0 0
    %3006 = vmatpush1.bf16.msra.mxu0 0
    %3007 = vmatprep.subr.bf16.mxu0 0
    %3008 = vmatpush1.bf16.msra.mxu0 0
    %3009 = vmatprep.subr.bf16.mxu0 0
    %3010 = vmatpush1.bf16.msra.mxu0 0
    %3011 = vmatprep.subr.bf16.mxu0 0
    %3012 = vmatpush1.bf16.msra.mxu0 0
    %3013 = vmatprep.subr.bf16.mxu0 0
    %3014 = vmatpush1.bf16.msra.mxu0 0
    %3015 = vmatprep.subr.bf16.mxu0 0
    %3016 = vmatpush1.bf16.msra.mxu0 0
    %3017 = vmatprep.mubr.bf16.mxu0 0
    %3018 = vmatmul.mubr.bf16.gmra.mrb[0].mxu0 %v2971
    %v3019 = vpop.f32.mrb[0].mxu0
    %v3020 = vadd.f32 %v2968, %v3019
    %v3021 = vpop.f32.mrb[0].mxu0
    %v3022 = vadd.f32 %v2968, %v3021
    %v3023 = vpop.f32.mrb[0].mxu0
    %v3024 = vpop.f32.mrb[0].mxu0
    %3025 = vdwg.mxu0
    %3026 = vmatprep.subr.bf16.mxu0 %v2956
    %3027 = vmatpush1.bf16.msra.mxu0 %v2955
    %3028 = vmatprep.subr.bf16.mxu0 %v2960
    %3029 = vmatpush1.bf16.msra.mxu0 %v2959
    %3030 = vmatprep.subr.bf16.mxu0 %v2983
    %3031 = vmatpush1.bf16.msra.mxu0 %v2980
    %3032 = vmatprep.subr.bf16.mxu0 0
    %3033 = vmatpush1.bf16.msra.mxu0 0
    %3034 = vmatprep.subr.bf16.mxu0 0
    %3035 = vmatpush1.bf16.msra.mxu0 0
    %3036 = vmatprep.subr.bf16.mxu0 0
    %3037 = vmatpush1.bf16.msra.mxu0 0
    %3038 = vmatprep.subr.bf16.mxu0 0
    %3039 = vmatpush1.bf16.msra.mxu0 0
    %3040 = vmatprep.subr.bf16.mxu0 0
    %3041 = vmatpush1.bf16.msra.mxu0 0
    %3042 = vmatprep.subr.bf16.mxu0 0
    %3043 = vmatpush1.bf16.msra.mxu0 0
    %3044 = vmatprep.subr.bf16.mxu0 0
    %3045 = vmatpush1.bf16.msra.mxu0 0
    %3046 = vmatprep.subr.bf16.mxu0 0
    %3047 = vmatpush1.bf16.msra.mxu0 0
    %3048 = vmatprep.subr.bf16.mxu0 0
    %3049 = vmatpush1.bf16.msra.mxu0 0
    %3050 = vmatprep.subr.bf16.mxu0 0
    %3051 = vmatpush1.bf16.msra.mxu0 0
    %3052 = vmatprep.subr.bf16.mxu0 0
    %3053 = vmatpush1.bf16.msra.mxu0 0
    %3054 = vmatprep.subr.bf16.mxu0 0
    %3055 = vmatpush1.bf16.msra.mxu0 0
    %3056 = vmatprep.subr.bf16.mxu0 0
    %3057 = vmatpush1.bf16.msra.mxu0 0
    %3058 = vmatprep.mubr.bf16.mxu0 0
    %3059 = vmatmul.mubr.bf16.gmra.mrb[0].mxu0 %v2971
    %v3060 = vpop.f32.mrb[0].mxu0
    %v3061 = vadd.f32 %v2968, %v3060
    %v3062 = vpop.f32.mrb[0].mxu0
    %v3063 = vadd.f32 %v2968, %v3062
    %v3064 = vpop.f32.mrb[0].mxu0
    %v3065 = vpop.f32.mrb[0].mxu0
    %3066 = vdwg.mxu0
    %3067 = vrot.lane.b32.xlu0 %v3020, 112
    %v3068 = vpop.permute.xlu0 %3067
    %3069 = vrot.lane.b32.xlu0 %v3022, 112
    %v3070 = vpop.permute.xlu0 %3069
    %3071 = vrot.lane.b32.xlu0 %v3061, 112
    %v3072 = vpop.permute.xlu0 %3071
    %3073 = vrot.lane.b32.xlu0 %v3063, 112
    %v3074 = vpop.permute.xlu0 %3073
    %v3075 = vsel %vm297, %v3072, %v3074
    %v3076 = vsel %vm297, %v3070, %v3072
    %v3077 = vsel %vm297, %v3068, %v3070
    %v3078 = vsel %vm297, %v3074, %v3068
    %vm3079 = vcmp.lt.s32.totalorder %v45, 240
    %vm3080 = vcmp.lt.s32.totalorder %v46, 240
    %vm3081 = vcmp.lt.s32.totalorder %v47, 240
    %vm3082 = vcmp.lt.s32.totalorder %v48, 240
    %v3083 = vsel %vm3079, 1, 0
    %v3084 = vsel %vm3080, 1, 0
    %v3085 = vsel %vm3081, 1, 0
    %v3086 = vsel %vm3082, 1, 0
    %vm3087 = vcmp.eq.s32.totalorder %v3083, 1
    %vm3088 = vcmp.eq.s32.totalorder %v3084, 1
    %vm3089 = vcmp.eq.s32.totalorder %v3085, 1
    %vm3090 = vcmp.eq.s32.totalorder %v3086, 1
    %v3091 = vsel %vm3087, %v3077, 0.0
    %v3092 = vsel %vm3088, %v3076, 0.0
    %v3093 = vsel %vm3089, %v3075, 0.0
    %v3094 = vsel %vm3090, %v3078, 0.0
    %3095 = vrot.lane.b32.xlu0 %v3020, 16
    %v3096 = vpop.permute.xlu0 %3095
    %3097 = vrot.lane.b32.xlu0 %v3022, 16
    %v3098 = vpop.permute.xlu0 %3097
    %3099 = vrot.lane.b32.xlu0 %v3061, 16
    %v3100 = vpop.permute.xlu0 %3099
    %3101 = vrot.lane.b32.xlu0 %v3063, 16
    %v3102 = vpop.permute.xlu0 %3101
    %v3103 = vsel %vm390, %v3100, %v3102
    %v3104 = vsel %vm390, %v3098, %v3100
    %v3105 = vsel %vm390, %v3096, %v3098
    %v3106 = vsel %vm390, %v3102, %v3096
    %vm3107 = vcmp.ge.s32.totalorder %v45, 16
    %vm3108 = vcmp.ge.s32.totalorder %v46, 16
    %vm3109 = vcmp.ge.s32.totalorder %v47, 16
    %vm3110 = vcmp.ge.s32.totalorder %v48, 16
    %v3111 = vsel %vm3107, 1, 0
    %v3112 = vsel %vm3108, 1, 0
    %v3113 = vsel %vm3109, 1, 0
    %v3114 = vsel %vm3110, 1, 0
    %vm3115 = vcmp.eq.s32.totalorder %v3111, 1
    %vm3116 = vcmp.eq.s32.totalorder %v3112, 1
    %vm3117 = vcmp.eq.s32.totalorder %v3113, 1
    %vm3118 = vcmp.eq.s32.totalorder %v3114, 1
    %v3119 = vsel %vm3115, %v3106, 0.0
    %v3120 = vsel %vm3116, %v3105, 0.0
    %v3121 = vsel %vm3117, %v3104, 0.0
    %v3122 = vsel %vm3118, %v3103, 0.0
    %vm3123 = vcmp.lt.s32.totalorder %v49, 15
    %vm3124 = vcmp.lt.s32.totalorder %v50, 15
    %vm3125 = vcmp.lt.s32.totalorder %v51, 15
    %vm3126 = vcmp.lt.s32.totalorder %v52, 15
    %vm3127 = vcmp.ge.s32.totalorder %v49, 1
    %vm3128 = vcmp.ge.s32.totalorder %v50, 1
    %vm3129 = vcmp.ge.s32.totalorder %v51, 1
    %vm3130 = vcmp.ge.s32.totalorder %v52, 1
    %3131 = vrot.lane.b32.xlu0 %v3091, 127
    %v3132 = vpop.permute.xlu0 %3131
    %3133 = vrot.lane.b32.xlu0 %v3092, 127
    %v3134 = vpop.permute.xlu0 %3133
    %3135 = vrot.lane.b32.xlu0 %v3093, 127
    %v3136 = vpop.permute.xlu0 %3135
    %3137 = vrot.lane.b32.xlu0 %v3094, 127
    %v3138 = vpop.permute.xlu0 %3137
    %vm3139 = vcmp.lt.s32.totalorder %v41, 127
    %v3140 = vsel %vm3139, %v3136, %v3138
    %v3141 = vsel %vm3139, %v3134, %v3136
    %v3142 = vsel %vm3139, %v3132, %v3134
    %v3143 = vsel %vm3139, %v3138, %v3132
    %v3144 = vsel %vm3123, 1, 0
    %v3145 = vsel %vm3124, 1, 0
    %v3146 = vsel %vm3125, 1, 0
    %v3147 = vsel %vm3126, 1, 0
    %vm3148 = vcmp.eq.s32.totalorder %v3144, 1
    %vm3149 = vcmp.eq.s32.totalorder %v3145, 1
    %vm3150 = vcmp.eq.s32.totalorder %v3146, 1
    %vm3151 = vcmp.eq.s32.totalorder %v3147, 1
    %v3152 = vsel %vm3148, %v3142, 0.0
    %v3153 = vsel %vm3149, %v3141, 0.0
    %v3154 = vsel %vm3150, %v3140, 0.0
    %v3155 = vsel %vm3151, %v3143, 0.0
    %3156 = vset.pattern.permute.xlu0 37
    %3157 = vperm.xlu0 %3156, %v2951
    %v3158 = vpop.permute.xlu0 %3157
    %v3160 = vmul.f32 %v3152, %v3158
    %v3161 = vmul.f32 %v3153, %v3158
    %v3162 = vmul.f32 %v3154, %v3158
    %v3163 = vmul.f32 %v3155, %v3158
    %3164 = vset.pattern.permute.xlu0 38
    %3165 = vperm.xlu0 %3164, %v2951
    %v3166 = vpop.permute.xlu0 %3165
    %v3168 = vmul.f32 %v3091, %v3166
    %v3169 = vmul.f32 %v3092, %v3166
    %v3170 = vmul.f32 %v3093, %v3166
    %v3171 = vmul.f32 %v3094, %v3166
    %v3172 = vadd.f32 %v3160, %v3168
    %v3173 = vadd.f32 %v3161, %v3169
    %v3174 = vadd.f32 %v3162, %v3170
    %v3175 = vadd.f32 %v3163, %v3171
    %3176 = vrot.lane.b32.xlu0 %v3091, 1
    %v3177 = vpop.permute.xlu0 %3176
    %3178 = vrot.lane.b32.xlu0 %v3092, 1
    %v3179 = vpop.permute.xlu0 %3178
    %3180 = vrot.lane.b32.xlu0 %v3093, 1
    %v3181 = vpop.permute.xlu0 %3180
    %3182 = vrot.lane.b32.xlu0 %v3094, 1
    %v3183 = vpop.permute.xlu0 %3182
    %vm3184 = vcmp.lt.s32.totalorder %v41, 1
    %v3185 = vsel %vm3184, %v3181, %v3183
    %v3186 = vsel %vm3184, %v3179, %v3181
    %v3187 = vsel %vm3184, %v3177, %v3179
    %v3188 = vsel %vm3184, %v3183, %v3177
    %v3189 = vsel %vm3127, 1, 0
    %v3190 = vsel %vm3128, 1, 0
    %v3191 = vsel %vm3129, 1, 0
    %v3192 = vsel %vm3130, 1, 0
    %vm3193 = vcmp.eq.s32.totalorder %v3189, 1
    %vm3194 = vcmp.eq.s32.totalorder %v3190, 1
    %vm3195 = vcmp.eq.s32.totalorder %v3191, 1
    %vm3196 = vcmp.eq.s32.totalorder %v3192, 1
    %v3197 = vsel %vm3193, %v3188, 0.0
    %v3198 = vsel %vm3194, %v3187, 0.0
    %v3199 = vsel %vm3195, %v3186, 0.0
    %v3200 = vsel %vm3196, %v3185, 0.0
    %3201 = vset.pattern.permute.xlu0 39
    %3202 = vperm.xlu0 %3201, %v2951
    %v3203 = vpop.permute.xlu0 %3202
    %v3205 = vmul.f32 %v3197, %v3203
    %v3206 = vmul.f32 %v3198, %v3203
    %v3207 = vmul.f32 %v3199, %v3203
    %v3208 = vmul.f32 %v3200, %v3203
    %v3209 = vadd.f32 %v3172, %v3205
    %v3210 = vadd.f32 %v3173, %v3206
    %v3211 = vadd.f32 %v3174, %v3207
    %v3212 = vadd.f32 %v3175, %v3208
    %3213 = vrot.lane.b32.xlu0 %v3020, 127
    %v3214 = vpop.permute.xlu0 %3213
    %3215 = vrot.lane.b32.xlu0 %v3022, 127
    %v3216 = vpop.permute.xlu0 %3215
    %3217 = vrot.lane.b32.xlu0 %v3061, 127
    %v3218 = vpop.permute.xlu0 %3217
    %3219 = vrot.lane.b32.xlu0 %v3063, 127
    %v3220 = vpop.permute.xlu0 %3219
    %v3221 = vsel %vm3139, %v3218, %v3220
    %v3222 = vsel %vm3139, %v3216, %v3218
    %v3223 = vsel %vm3139, %v3214, %v3216
    %v3224 = vsel %vm3139, %v3220, %v3214
    %v3225 = vsel %vm3148, %v3223, 0.0
    %v3226 = vsel %vm3149, %v3222, 0.0
    %v3227 = vsel %vm3150, %v3221, 0.0
    %v3228 = vsel %vm3151, %v3224, 0.0
    %3229 = vset.pattern.permute.xlu0 40
    %3230 = vperm.xlu0 %3229, %v2951
    %v3231 = vpop.permute.xlu0 %3230
    %v3233 = vmul.f32 %v3225, %v3231
    %v3234 = vmul.f32 %v3226, %v3231
    %v3235 = vmul.f32 %v3227, %v3231
    %v3236 = vmul.f32 %v3228, %v3231
    %v3237 = vadd.f32 %v3209, %v3233
    %v3238 = vadd.f32 %v3210, %v3234
    %v3239 = vadd.f32 %v3211, %v3235
    %v3240 = vadd.f32 %v3212, %v3236
    %3241 = vset.pattern.permute.xlu0 41
    %3242 = vperm.xlu0 %3241, %v2951
    %v3243 = vpop.permute.xlu0 %3242
    %v3245 = vmul.f32 %v3020, %v3243
    %v3246 = vmul.f32 %v3022, %v3243
    %v3247 = vmul.f32 %v3061, %v3243
    %v3248 = vmul.f32 %v3063, %v3243
    %v3249 = vadd.f32 %v3237, %v3245
    %v3250 = vadd.f32 %v3238, %v3246
    %v3251 = vadd.f32 %v3239, %v3247
    %v3252 = vadd.f32 %v3240, %v3248
    %3253 = vrot.lane.b32.xlu0 %v3020, 1
    %v3254 = vpop.permute.xlu0 %3253
    %3255 = vrot.lane.b32.xlu0 %v3022, 1
    %v3256 = vpop.permute.xlu0 %3255
    %3257 = vrot.lane.b32.xlu0 %v3061, 1
    %v3258 = vpop.permute.xlu0 %3257
    %3259 = vrot.lane.b32.xlu0 %v3063, 1
    %v3260 = vpop.permute.xlu0 %3259
    %v3261 = vsel %vm3184, %v3258, %v3260
    %v3262 = vsel %vm3184, %v3256, %v3258
    %v3263 = vsel %vm3184, %v3254, %v3256
    %v3264 = vsel %vm3184, %v3260, %v3254
    %v3265 = vsel %vm3193, %v3264, 0.0
    %v3266 = vsel %vm3194, %v3263, 0.0
    %v3267 = vsel %vm3195, %v3262, 0.0
    %v3268 = vsel %vm3196, %v3261, 0.0
    %3269 = vset.pattern.permute.xlu0 42
    %3270 = vperm.xlu0 %3269, %v2951
    %v3271 = vpop.permute.xlu0 %3270
    %v3273 = vmul.f32 %v3265, %v3271
    %v3274 = vmul.f32 %v3266, %v3271
    %v3275 = vmul.f32 %v3267, %v3271
    %v3276 = vmul.f32 %v3268, %v3271
    %v3277 = vadd.f32 %v3249, %v3273
    %v3278 = vadd.f32 %v3250, %v3274
    %v3279 = vadd.f32 %v3251, %v3275
    %v3280 = vadd.f32 %v3252, %v3276
    %3281 = vrot.lane.b32.xlu0 %v3119, 127
    %v3282 = vpop.permute.xlu0 %3281
    %3283 = vrot.lane.b32.xlu0 %v3120, 127
    %v3284 = vpop.permute.xlu0 %3283
    %3285 = vrot.lane.b32.xlu0 %v3121, 127
    %v3286 = vpop.permute.xlu0 %3285
    %3287 = vrot.lane.b32.xlu0 %v3122, 127
    %v3288 = vpop.permute.xlu0 %3287
    %v3289 = vsel %vm3139, %v3286, %v3288
    %v3290 = vsel %vm3139, %v3284, %v3286
    %v3291 = vsel %vm3139, %v3282, %v3284
    %v3292 = vsel %vm3139, %v3288, %v3282
    %v3293 = vsel %vm3148, %v3291, 0.0
    %v3294 = vsel %vm3149, %v3290, 0.0
    %v3295 = vsel %vm3150, %v3289, 0.0
    %v3296 = vsel %vm3151, %v3292, 0.0
    %3297 = vset.pattern.permute.xlu0 43
    %3298 = vperm.xlu0 %3297, %v2951
    %v3299 = vpop.permute.xlu0 %3298
    %v3301 = vmul.f32 %v3293, %v3299
    %v3302 = vmul.f32 %v3294, %v3299
    %v3303 = vmul.f32 %v3295, %v3299
    %v3304 = vmul.f32 %v3296, %v3299
    %v3305 = vadd.f32 %v3277, %v3301
    %v3306 = vadd.f32 %v3278, %v3302
    %v3307 = vadd.f32 %v3279, %v3303
    %v3308 = vadd.f32 %v3280, %v3304
    %3309 = vset.pattern.permute.xlu0 44
    %3310 = vperm.xlu0 %3309, %v2951
    %v3311 = vpop.permute.xlu0 %3310
    %v3313 = vmul.f32 %v3119, %v3311
    %v3314 = vmul.f32 %v3120, %v3311
    %v3315 = vmul.f32 %v3121, %v3311
    %v3316 = vmul.f32 %v3122, %v3311
    %v3317 = vadd.f32 %v3305, %v3313
    %v3318 = vadd.f32 %v3306, %v3314
    %v3319 = vadd.f32 %v3307, %v3315
    %v3320 = vadd.f32 %v3308, %v3316
    %3321 = vrot.lane.b32.xlu0 %v3119, 1
    %v3322 = vpop.permute.xlu0 %3321
    %3323 = vrot.lane.b32.xlu0 %v3120, 1
    %v3324 = vpop.permute.xlu0 %3323
    %3325 = vrot.lane.b32.xlu0 %v3121, 1
    %v3326 = vpop.permute.xlu0 %3325
    %3327 = vrot.lane.b32.xlu0 %v3122, 1
    %v3328 = vpop.permute.xlu0 %3327
    %v3329 = vsel %vm3184, %v3326, %v3328
    %v3330 = vsel %vm3184, %v3324, %v3326
    %v3331 = vsel %vm3184, %v3322, %v3324
    %v3332 = vsel %vm3184, %v3328, %v3322
    %v3333 = vsel %vm3193, %v3332, 0.0
    %v3334 = vsel %vm3194, %v3331, 0.0
    %v3335 = vsel %vm3195, %v3330, 0.0
    %v3336 = vsel %vm3196, %v3329, 0.0
    %3337 = vset.pattern.permute.xlu0 45
    %3338 = vperm.xlu0 %3337, %v2951
    %v3339 = vpop.permute.xlu0 %3338
    %v3341 = vmul.f32 %v3333, %v3339
    %v3342 = vmul.f32 %v3334, %v3339
    %v3343 = vmul.f32 %v3335, %v3339
    %v3344 = vmul.f32 %v3336, %v3339
    %v3345 = vadd.f32 %v3317, %v3341
    %v3346 = vadd.f32 %v3318, %v3342
    %v3347 = vadd.f32 %v3319, %v3343
    %v3348 = vadd.f32 %v3320, %v3344
    %3349 = vset.pattern.permute.xlu0 46
    %3350 = vperm.xlu0 %3349, %v2951
    %v3351 = vpop.permute.xlu0 %3350
    %v3353 = vadd.f32 %v3345, %v3351
    %v3354 = vadd.f32 %v3346, %v3351
    %v3355 = vadd.f32 %v3347, %v3351
    %v3356 = vadd.f32 %v3348, %v3351
    %v3361 = vcombine.low %v3353, %v3354
    %v3362 = vcombine.low %v3355, %v3356
    %3365 = vst [vmem:[#allocation7] sm:$0x77] %v3361
    %3366 = vst [vmem:[#allocation7 + $0x8] sm:$0x77] %v3362
    // Predicated region
    $region18: #{tpu_custom_call.1} parent=1 // pred_check
      _
    $region19: #{tpu_custom_call.1} parent=1 // pred_check_branch
      %3368 = sbr.rel (0) target = $region21
    $region20: #{tpu_custom_call.1} parent=1 // pred_region
      %s3370 = ssub.s32 256, 256
      %3371 = vsyncadd [#allocation4], %s3370
      %s3373 = sshll.u32 [#allocation7], 4
      %s3374 = int_to_ptr.vmem [resolvable:$true] %s3373
      %3376 = dma.vmem_to_hbm [thread:$0]  %s3374, 256, %s2, [#allocation4]
    $region21: #{tpu_custom_call.1} parent=1 // pred_fallthru
      _
    // Predicated region
    $region22: #{tpu_custom_call.1} parent=1 // pred_check
      _
    $region23: #{tpu_custom_call.1} parent=1 // pred_check_branch
      %3378 = sbr.rel (0) target = $region25
    $region24: #{tpu_custom_call.1} parent=1 // pred_region
      %3379 = dma.done [#allocation4], 256
    $region25: #{tpu_custom_call.1} parent=1 // pred_fallthru
      _
    %3380 = vsyncpa [#allocation3], 1
    %3381 = vsyncpa [#allocation6], 1
    %3382 = vsyncpa [#allocation4], 1

</llo_original>
